<compile_context>
chip_gen: v7x
topology: tpu7x:2x2x1
jax: 0.10.0
libtpu: 0.0.40
codegen_flags: <defaults>
</compile_context>

<pallas_src>
import functools

import numpy as np
import jax
import jax.numpy as jnp
from jax import lax
from jax.experimental import pallas as pl
from jax.experimental.pallas import tpu as pltpu

VARIANCE_BOUND = 0.1
N_MODELS = 5
H_IN, W_IN = 20, 10            # Net() hard-codes input_shape=(20, 10)
W_PAD = 16                     # input width zero-padded 10 -> 16
FILTERS = 32
N_FC = 256
H1, W1 = 18, 8                 # after conv1 (valid 3x3)
H2, W2 = 16, 6                 # after conv2
H3, W3 = 14, 4                 # after conv3
C1, C2, C3 = W1 * FILTERS, W2 * FILTERS, W3 * FILTERS   # 256, 192, 128
FLAT_IN = H3 * C3              # 1792, flatten order (h, w, c)
FC2_PAD = 8                    # fc_out's 2 outputs zero-padded to 8 lanes
ROWS = H1                      # fixed per-sample row stride of every activation


# ------------------------------ Pallas kernel ------------------------------

def _ensemble_kernel(x_ref, w1_ref, w2_ref, w3_ref, wf1_ref, wf2_ref, b_ref,
                     o_ref, *, batch):
    """One grid step == one ensemble member; everything stays in VMEM."""
    f32, bf16 = jnp.float32, jnp.bfloat16
    nr1 = batch * ROWS      # rows of h1 (all valid)
    nr2 = nr1 - 2           # rows of the h2 slab (trailing garbage rows/sample
    nr3 = nr1 - 4           # rows of the h3 slab   are never read downstream)

    def mm(a, w):           # bf16 x bf16 MXU matmul with f32 accumulation
        return jnp.dot(a, w, preferred_element_type=f32)

    # Consolidated per-model biases (one DMA instead of five).
    b1 = b_ref[0, 0:1, :]              # (1, 256)
    b2 = b_ref[0, 1:2, 0:C2]           # (1, 192)
    b3 = b_ref[0, 2:3, 0:C3]           # (1, 128)
    bf1 = b_ref[0, 3:4, :]             # (1, 256)
    bf2 = b_ref[0, 4:5, 0:FC2_PAD]     # (1, 8)

    # conv1: one matmul; the 3 H-taps are pre-concatenated along K in the
    # shared (model-independent, already-bf16) lhs built once in the wrapper.
    h1 = jnp.maximum(mm(x_ref[...], w1_ref[0]) + b1, 0.0)        # (nr1, 256) f32
    h1b = h1.astype(bf16)

    # conv2 / conv3: 3 accumulating matmuls over the H taps against per-tap
    # block-Toeplitz weights (the W/channel taps live inside the weight).
    acc = mm(h1b[0:nr2, :], w2_ref[0, 0])
    for dy in (1, 2):
        acc = acc + mm(h1b[dy:dy + nr2, :], w2_ref[0, dy])
    h2b = jnp.maximum(acc + b2, 0.0).astype(bf16)                # (nr2, 192)

    acc = mm(h2b[0:nr3, :], w3_ref[0, 0])
    for dy in (1, 2):
        acc = acc + mm(h2b[dy:dy + nr3, :], w3_ref[0, dy])
    h3b = jnp.maximum(acc + b3, 0.0).astype(bf16)                # (nr3, 128)

    # fc1 as 14 accumulating matmuls over the H3 rows (static 128-row slices of
    # wf1) -- no (B, 1792) lane-concatenated flatten slab is ever built.
    def rows_at(h):          # rows (b, h) for all samples -> (batch, C3)
        if batch == 1:
            return h3b[h:h + 1, :]
        return jnp.concatenate(
            [h3b[b * ROWS + h:b * ROWS + h + 1, :] for b in range(batch)],
            axis=0)

    z1 = mm(rows_at(0), wf1_ref[0, 0:C3, :])
    for h in range(1, H3):
        z1 = z1 + mm(rows_at(h), wf1_ref[0, h * C3:(h + 1) * C3, :])
    z1b = jnp.maximum(z1 + bf1, 0.0).astype(bf16)                # (batch, 256)

    # fc_out (output lanes zero-padded 2 -> 8).  Sigmoid / output bounds / the
    # ensemble mean are a tiny JAX epilogue (keeps array constants out of the
    # kernel and the model grid axis fully parallel).
    o_ref[0] = mm(z1b, wf2_ref[0]) + bf2                         # (batch, 8) f32


# ------------------------------ wrapper ------------------------------

def ensemble_forward(packed, x_nchw, n_models=None):
    """Eval-mode Ensemble.forward.

    Faithful to PyTorch: torch.mean(torch.stack(r)) is a SCALAR mean over
    models, batch AND both output heads.
    """
    # TODO(synk): the training branch (random sub-model selection via
    # torch.randint, which also references an undefined `n`) is not translated.
    x = x_nchw.astype(jnp.float32)[:, 0]                         # (B, 20, 10)
    B = x.shape[0]
    xp = jnp.pad(x, ((0, 0), (0, 0), (0, W_PAD - W_IN)))         # (B, 20, 16)
    # Shared conv1 lhs: rows=(b, y) at stride ROWS, lanes=(dy, w); pre-cast to
    # bf16 so the (tiny) shared DMA is half-width and no in-kernel cast runs.
    x_lhs = jnp.concatenate([xp[:, dy:dy + H1, :] for dy in range(3)], axis=-1)
    x_lhs = x_lhs.reshape(B * H1, 3 * W_PAD).astype(jnp.bfloat16)

    m_grid = packed["w1t"].shape[0]        # may include megacore-padding dummies
    m_real = n_models if n_models is not None else m_grid

    per_model = pl.pallas_call(
        functools.partial(_ensemble_kernel, batch=B),
        out_shape=jax.ShapeDtypeStruct((m_grid, B, FC2_PAD), jnp.float32),
        grid_spec=pltpu.PrefetchScalarGridSpec(
            num_scalar_prefetch=0,
            grid=(m_grid,),
            in_specs=[
                pl.BlockSpec((B * H1, 3 * W_PAD), lambda m: (0, 0)),
                pl.BlockSpec((1, 3 * W_PAD, C1), lambda m: (m, 0, 0)),
                pl.BlockSpec((1, 3, C1, C2), lambda m: (m, 0, 0, 0)),
                pl.BlockSpec((1, 3, C2, C3), lambda m: (m, 0, 0, 0)),
                pl.BlockSpec((1, FLAT_IN, N_FC), lambda m: (m, 0, 0)),
                pl.BlockSpec((1, N_FC, FC2_PAD), lambda m: (m, 0, 0)),
                pl.BlockSpec((1, 8, N_FC), lambda m: (m, 0, 0)),
            ],
            out_specs=pl.BlockSpec((1, B, FC2_PAD), lambda m: (m, 0, 0)),
        ),
        compiler_params=pltpu.CompilerParams(dimension_semantics=("parallel",)),
    )(x_lhs, packed["w1t"], packed["w2t"], packed["w3t"],
      packed["wf1"], packed["wf2p"], packed["biases"])

    # Sigmoid + output bounds + PyTorch's full scalar mean; any zero-weight
    # megacore-padding dummy models are excluded via n_models.
    z = per_model[:m_real, :, 0:2]
    scale = jnp.array([100.0, 1000.0], jnp.float32)        # out_ubound
    shift = jnp.array([0.0, VARIANCE_BOUND], jnp.float32)  # out_lbound
    return jnp.mean(jax.nn.sigmoid(z) * scale + shift)


# ------------------------------ params ------------------------------

def init_params(key, n_models=N_MODELS):
    """Synthetic per-model params, PyTorch-default-style U(+-1/sqrt(fan_in)).

    Conv kernels are stored HWIO, fc weights as (in, out); fc1 consumes the
    (h, w, c) flatten used by both kernel and reference.
    # TODO(synk): loading a real PyTorch checkpoint would additionally need
    # OIHW->HWIO transposes and a (c,h,w)->(h,w,c) permutation of fc1 rows.
    """
    def uinit(k, shape, fan_in, dtype):
        bound = 1.0 / float(np.sqrt(fan_in))
        return jax.random.uniform(k, shape, jnp.float32, -bound, bound).astype(dtype)

    ks = jax.random.split(key, 10)
    M = n_models
    bf16, f32 = jnp.bfloat16, jnp.float32
    return {
        "k1": uinit(ks[0], (M, 3, 3, 1, FILTERS), 9 * 1, bf16),
        "cb1": uinit(ks[1], (M, FILTERS), 9 * 1, f32),
        "k2": uinit(ks[2], (M, 3, 3, FILTERS, FILTERS), 9 * FILTERS, bf16),
        "cb2": uinit(ks[3], (M, FILTERS), 9 * FILTERS, f32),
        "k3": uinit(ks[4], (M, 3, 3, FILTERS, FILTERS), 9 * FILTERS, bf16),
        "cb3": uinit(ks[5], (M, FILTERS), 9 * FILTERS, f32),
        "wf1": uinit(ks[6], (M, FLAT_IN, N_FC), FLAT_IN, bf16),
        "bf1": uinit(ks[7], (M, N_FC), FLAT_IN, f32),
        "wf2": uinit(ks[8], (M, N_FC, 2), N_FC, bf16),
        "bf2": uinit(ks[9], (M, 2), N_FC, f32),
    }


def _conv_toeplitz(k, w_in, w_out):
    """(M,3,3,Cin,F) conv kernel -> (M, 3, w_in*Cin, w_out*F) per-H-tap
    block-Toeplitz weights so a (rows=(b,h), lanes=(w,c)) activation convolves
    via 3 accumulating matmuls (one per H tap)."""
    # TODO(synk): the W-axis Toeplitz structure still stores ~2.7x the raw
    # kernel bytes for conv2/conv3; a fully compact (288, 32) im2col weight
    # would need >=4 models' filters stacked along N to stay lane-dense.
    k = np.asarray(jax.device_get(jnp.asarray(k, jnp.float32)))
    M, KH, KW, Cin, F = k.shape
    t = np.zeros((M, KH, w_in, Cin, w_out, F), np.float32)
    for xo in range(w_out):
        for dx in range(KW):
            t[:, :, xo + dx, :, xo, :] = k[:, :, dx, :, :]
    return jnp.asarray(t.reshape(M, KH, w_in * Cin, w_out * F), jnp.bfloat16)


def pack_params(p, *, pad_models_to=None):
    """Host-side (one-time) weight-layout conversion into kernel operand layouts.

    pad_models_to: optionally pad the model axis with zero-weight dummies
    (e.g. 5 -> 6) so the ("parallel",) grid splits 3/3 across v7x's two
    TensorCores; dummies are excluded from the mean via ensemble_forward's
    n_models.  Leave None on v5e/v6e (bandwidth-bound; a dummy adds bytes).
    """
    M = p["k1"].shape[0]

    def brow(b, w_out):      # per-channel bias -> (w, c) lane layout
        return jnp.tile(jnp.asarray(b, jnp.float32), (1, w_out))

    biases = jnp.zeros((M, 8, N_FC), jnp.float32)
    biases = biases.at[:, 0, :C1].set(brow(p["cb1"], W1))
    biases = biases.at[:, 1, :C2].set(brow(p["cb2"], W2))
    biases = biases.at[:, 2, :C3].set(brow(p["cb3"], W3))
    biases = biases.at[:, 3, :].set(jnp.asarray(p["bf1"], jnp.float32))
    biases = biases.at[:, 4, :2].set(jnp.asarray(p["bf2"], jnp.float32))

    w1taps = _conv_toeplitz(p["k1"], W_PAD, W1)                  # (M, 3, 16, 256)
    packed = {
        "w1t": w1taps.reshape(M, 3 * W_PAD, C1),                 # (M, 48, 256)
        "w2t": _conv_toeplitz(p["k2"], W1, W2),                  # (M, 3, 256, 192)
        "w3t": _conv_toeplitz(p["k3"], W2, W3),                  # (M, 3, 192, 128)
        "wf1": jnp.asarray(p["wf1"], jnp.bfloat16),              # (M, 1792, 256)
        "wf2p": jnp.pad(jnp.asarray(p["wf2"], jnp.bfloat16),
                        ((0, 0), (0, 0), (0, FC2_PAD - 2))),     # (M, 256, 8)
        "biases": biases,                                        # (M, 8, 256)
    }
    if pad_models_to is not None and pad_models_to > M:
        extra = pad_models_to - M
        packed = {k: jnp.pad(v, ((0, extra),) + ((0, 0),) * (v.ndim - 1))
                  for k, v in packed.items()}
    return packed


# ------------------------------ reference ------------------------------

def ensemble_forward_ref(params, x_nchw):
    """Pure-JAX reference (standard conv formulation, same bf16 weight/activation
    precision) to validate the Toeplitz / fused kernel."""
    f32, bf16 = jnp.float32, jnp.bfloat16
    dn = ("NHWC", "HWIO", "NHWC")
    x = jnp.transpose(x_nchw, (0, 2, 3, 1)).astype(f32)          # (B, 20, 10, 1)
    B = x.shape[0]
    M = params["k1"].shape[0]
    scale = jnp.array([100.0, 1000.0], f32)
    shift = jnp.array([0.0, VARIANCE_BOUND], f32)
    outs = []
    for m in range(M):
        h = x
        for kw, kb in (("k1", "cb1"), ("k2", "cb2"), ("k3", "cb3")):
            h = lax.conv_general_dilated(
                h.astype(bf16), params[kw][m], (1, 1), "VALID",
                dimension_numbers=dn, preferred_element_type=f32)
            h = jnp.maximum(h + params[kb][m], 0.0)
        h = h.reshape(B, FLAT_IN)                                # (h, w, c) flatten
        h = jnp.maximum(
            jnp.dot(h.astype(bf16), params["wf1"][m], preferred_element_type=f32)
            + params["bf1"][m], 0.0)
        z = (jnp.dot(h.astype(bf16), params["wf2"][m], preferred_element_type=f32)
             + params["bf2"][m])
        outs.append(jax.nn.sigmoid(z) * scale + shift)
    return jnp.mean(jnp.stack(outs))


if __name__ == "__main__":
    key = jax.random.PRNGKey(0)
    kx, kp = jax.random.split(key)
    # PyTorch Net expects NCHW input (B, 1, 20, 10); spatial size fixed by Net().
    x = jax.random.normal(kx, (2, 1, H_IN, W_IN), jnp.float32)
    params = init_params(kp, N_MODELS)
    packed = pack_params(params)   # (v7x: pack_params(params, pad_models_to=6))

    out = jax.block_until_ready(jax.jit(ensemble_forward)(packed, x))
    ref = jax.block_until_ready(ensemble_forward_ref(params, x))

    assert jnp.isfinite(out), "non-finite output"
    assert jnp.allclose(out, ref, rtol=1e-2, atol=1e-2), (out, ref)
    print("KERNEL_OK")
</pallas_src>

<mosaic_0001>
module attributes {stable_mosaic.version = 11 : i64} {
  func.func @_ensemble_kernel(%arg0: i32, %arg1: memref<36x48xbf16, #tpu.memory_space<vmem>>, %arg2: memref<1x48x256xbf16, #tpu.memory_space<vmem>>, %arg3: memref<1x3x256x192xbf16, #tpu.memory_space<vmem>>, %arg4: memref<1x3x192x128xbf16, #tpu.memory_space<vmem>>, %arg5: memref<1x1792x256xbf16, #tpu.memory_space<vmem>>, %arg6: memref<1x256x8xbf16, #tpu.memory_space<vmem>>, %arg7: memref<1x8x256xf32, #tpu.memory_space<vmem>>, %arg8: memref<1x2x8xf32, #tpu.memory_space<vmem>>) attributes {dimension_semantics = [#tpu.dimension_semantics<parallel>], iteration_bounds = array<i64: 5>, scalar_prefetch = 0 : i64, scratch_operands = 0 : i64, tpu.core_type = #tpu.core_type<tc>, window_params = [{pipeline_mode = #tpu.pipeline_mode<synchronous>, transform_indices = @transform_0, window_bounds = array<i64: 36, 48>}, {transform_indices = @transform_1, window_bounds = array<i64: 1, 48, 256>}, {transform_indices = @transform_2, window_bounds = array<i64: 1, 3, 256, 192>}, {transform_indices = @transform_3, window_bounds = array<i64: 1, 3, 192, 128>}, {transform_indices = @transform_4, window_bounds = array<i64: 1, 1792, 256>}, {transform_indices = @transform_5, window_bounds = array<i64: 1, 256, 8>}, {transform_indices = @transform_6, window_bounds = array<i64: 1, 8, 256>}, {transform_indices = @transform_7, window_bounds = array<i64: 1, 2, 8>}]} {
    %c0 = arith.constant 0 : index
    %c0_0 = arith.constant 0 : index
    %c0_1 = arith.constant 0 : index
    %0 = vector.load %arg7[%c0, %c0_0, %c0_1] : memref<1x8x256xf32, #tpu.memory_space<vmem>>, vector<1x1x256xf32>
    %1 = vector.shape_cast %0 : vector<1x1x256xf32> to vector<1x256xf32>
    %c0_2 = arith.constant 0 : index
    %c1 = arith.constant 1 : index
    %c0_3 = arith.constant 0 : index
    %2 = vector.load %arg7[%c0_2, %c1, %c0_3] : memref<1x8x256xf32, #tpu.memory_space<vmem>>, vector<1x1x192xf32>
    %3 = vector.shape_cast %2 : vector<1x1x192xf32> to vector<1x192xf32>
    %c0_4 = arith.constant 0 : index
    %c2 = arith.constant 2 : index
    %c0_5 = arith.constant 0 : index
    %4 = vector.load %arg7[%c0_4, %c2, %c0_5] : memref<1x8x256xf32, #tpu.memory_space<vmem>>, vector<1x1x128xf32>
    %5 = vector.shape_cast %4 : vector<1x1x128xf32> to vector<1x128xf32>
    %c0_6 = arith.constant 0 : index
    %c3 = arith.constant 3 : index
    %c0_7 = arith.constant 0 : index
    %6 = vector.load %arg7[%c0_6, %c3, %c0_7] : memref<1x8x256xf32, #tpu.memory_space<vmem>>, vector<1x1x256xf32>
    %7 = vector.shape_cast %6 : vector<1x1x256xf32> to vector<1x256xf32>
    %c0_8 = arith.constant 0 : index
    %c4 = arith.constant 4 : index
    %c0_9 = arith.constant 0 : index
    %8 = vector.load %arg7[%c0_8, %c4, %c0_9] : memref<1x8x256xf32, #tpu.memory_space<vmem>>, vector<1x1x8xf32>
    %9 = vector.shape_cast %8 : vector<1x1x8xf32> to vector<1x8xf32>
    %c0_10 = arith.constant 0 : index
    %c0_11 = arith.constant 0 : index
    %10 = vector.load %arg1[%c0_10, %c0_11] : memref<36x48xbf16, #tpu.memory_space<vmem>>, vector<36x48xbf16>
    %c0_12 = arith.constant 0 : index
    %c0_13 = arith.constant 0 : index
    %c0_14 = arith.constant 0 : index
    %11 = vector.load %arg2[%c0_12, %c0_13, %c0_14] : memref<1x48x256xbf16, #tpu.memory_space<vmem>>, vector<1x48x256xbf16>
    %12 = vector.shape_cast %11 : vector<1x48x256xbf16> to vector<48x256xbf16>
    %cst = arith.constant dense<0.000000e+00> : vector<36x256xf32>
    %13 = tpu.matmul %10, %12, %cst {dimension_numbers = #tpu.dot_dimension_numbers<[1], [0], [0], [1], [0, 0, 1, 1], [], []>} : vector<36x48xbf16>, vector<48x256xbf16>, vector<36x256xf32> -> vector<36x256xf32>
    %14 = vector.broadcast %1 : vector<1x256xf32> to vector<36x256xf32>
    %15 = arith.addf %13, %14 : vector<36x256xf32>
    %cst_15 = arith.constant 0.000000e+00 : f32
    %16 = vector.broadcast %cst_15 : f32 to vector<36x256xf32>
    %17 = arith.maximumf %15, %16 : vector<36x256xf32>
    %18 = arith.truncf %17 : vector<36x256xf32> to vector<36x256xbf16>
    %19 = vector.extract_strided_slice %18 {offsets = [0, 0], sizes = [34, 256], strides = [1, 1]} : vector<36x256xbf16> to vector<34x256xbf16>
    %c0_16 = arith.constant 0 : index
    %c0_17 = arith.constant 0 : index
    %c0_18 = arith.constant 0 : index
    %c0_19 = arith.constant 0 : index
    %20 = vector.load %arg3[%c0_16, %c0_17, %c0_18, %c0_19] : memref<1x3x256x192xbf16, #tpu.memory_space<vmem>>, vector<1x1x256x192xbf16>
    %21 = vector.shape_cast %20 : vector<1x1x256x192xbf16> to vector<256x192xbf16>
    %cst_20 = arith.constant dense<0.000000e+00> : vector<34x192xf32>
    %22 = tpu.matmul %19, %21, %cst_20 {dimension_numbers = #tpu.dot_dimension_numbers<[1], [0], [0], [1], [0, 0, 1, 1], [], []>} : vector<34x256xbf16>, vector<256x192xbf16>, vector<34x192xf32> -> vector<34x192xf32>
    %23 = vector.extract_strided_slice %18 {offsets = [1, 0], sizes = [34, 256], strides = [1, 1]} : vector<36x256xbf16> to vector<34x256xbf16>
    %c0_21 = arith.constant 0 : index
    %c1_22 = arith.constant 1 : index
    %c0_23 = arith.constant 0 : index
    %c0_24 = arith.constant 0 : index
    %24 = vector.load %arg3[%c0_21, %c1_22, %c0_23, %c0_24] : memref<1x3x256x192xbf16, #tpu.memory_space<vmem>>, vector<1x1x256x192xbf16>
    %25 = vector.shape_cast %24 : vector<1x1x256x192xbf16> to vector<256x192xbf16>
    %cst_25 = arith.constant dense<0.000000e+00> : vector<34x192xf32>
    %26 = tpu.matmul %23, %25, %cst_25 {dimension_numbers = #tpu.dot_dimension_numbers<[1], [0], [0], [1], [0, 0, 1, 1], [], []>} : vector<34x256xbf16>, vector<256x192xbf16>, vector<34x192xf32> -> vector<34x192xf32>
    %27 = arith.addf %22, %26 : vector<34x192xf32>
    %28 = vector.extract_strided_slice %18 {offsets = [2, 0], sizes = [34, 256], strides = [1, 1]} : vector<36x256xbf16> to vector<34x256xbf16>
    %c0_26 = arith.constant 0 : index
    %c2_27 = arith.constant 2 : index
    %c0_28 = arith.constant 0 : index
    %c0_29 = arith.constant 0 : index
    %29 = vector.load %arg3[%c0_26, %c2_27, %c0_28, %c0_29] : memref<1x3x256x192xbf16, #tpu.memory_space<vmem>>, vector<1x1x256x192xbf16>
    %30 = vector.shape_cast %29 : vector<1x1x256x192xbf16> to vector<256x192xbf16>
    %cst_30 = arith.constant dense<0.000000e+00> : vector<34x192xf32>
    %31 = tpu.matmul %28, %30, %cst_30 {dimension_numbers = #tpu.dot_dimension_numbers<[1], [0], [0], [1], [0, 0, 1, 1], [], []>} : vector<34x256xbf16>, vector<256x192xbf16>, vector<34x192xf32> -> vector<34x192xf32>
    %32 = arith.addf %27, %31 : vector<34x192xf32>
    %33 = vector.broadcast %3 : vector<1x192xf32> to vector<34x192xf32>
    %34 = arith.addf %32, %33 : vector<34x192xf32>
    %cst_31 = arith.constant 0.000000e+00 : f32
    %35 = vector.broadcast %cst_31 : f32 to vector<34x192xf32>
    %36 = arith.maximumf %34, %35 : vector<34x192xf32>
    %37 = arith.truncf %36 : vector<34x192xf32> to vector<34x192xbf16>
    %38 = vector.extract_strided_slice %37 {offsets = [0, 0], sizes = [32, 192], strides = [1, 1]} : vector<34x192xbf16> to vector<32x192xbf16>
    %c0_32 = arith.constant 0 : index
    %c0_33 = arith.constant 0 : index
    %c0_34 = arith.constant 0 : index
    %c0_35 = arith.constant 0 : index
    %39 = vector.load %arg4[%c0_32, %c0_33, %c0_34, %c0_35] : memref<1x3x192x128xbf16, #tpu.memory_space<vmem>>, vector<1x1x192x128xbf16>
    %40 = vector.shape_cast %39 : vector<1x1x192x128xbf16> to vector<192x128xbf16>
    %cst_36 = arith.constant dense<0.000000e+00> : vector<32x128xf32>
    %41 = tpu.matmul %38, %40, %cst_36 {dimension_numbers = #tpu.dot_dimension_numbers<[1], [0], [0], [1], [0, 0, 1, 1], [], []>} : vector<32x192xbf16>, vector<192x128xbf16>, vector<32x128xf32> -> vector<32x128xf32>
    %42 = vector.extract_strided_slice %37 {offsets = [1, 0], sizes = [32, 192], strides = [1, 1]} : vector<34x192xbf16> to vector<32x192xbf16>
    %c0_37 = arith.constant 0 : index
    %c1_38 = arith.constant 1 : index
    %c0_39 = arith.constant 0 : index
    %c0_40 = arith.constant 0 : index
    %43 = vector.load %arg4[%c0_37, %c1_38, %c0_39, %c0_40] : memref<1x3x192x128xbf16, #tpu.memory_space<vmem>>, vector<1x1x192x128xbf16>
    %44 = vector.shape_cast %43 : vector<1x1x192x128xbf16> to vector<192x128xbf16>
    %cst_41 = arith.constant dense<0.000000e+00> : vector<32x128xf32>
    %45 = tpu.matmul %42, %44, %cst_41 {dimension_numbers = #tpu.dot_dimension_numbers<[1], [0], [0], [1], [0, 0, 1, 1], [], []>} : vector<32x192xbf16>, vector<192x128xbf16>, vector<32x128xf32> -> vector<32x128xf32>
    %46 = arith.addf %41, %45 : vector<32x128xf32>
    %47 = vector.extract_strided_slice %37 {offsets = [2, 0], sizes = [32, 192], strides = [1, 1]} : vector<34x192xbf16> to vector<32x192xbf16>
    %c0_42 = arith.constant 0 : index
    %c2_43 = arith.constant 2 : index
    %c0_44 = arith.constant 0 : index
    %c0_45 = arith.constant 0 : index
    %48 = vector.load %arg4[%c0_42, %c2_43, %c0_44, %c0_45] : memref<1x3x192x128xbf16, #tpu.memory_space<vmem>>, vector<1x1x192x128xbf16>
    %49 = vector.shape_cast %48 : vector<1x1x192x128xbf16> to vector<192x128xbf16>
    %cst_46 = arith.constant dense<0.000000e+00> : vector<32x128xf32>
    %50 = tpu.matmul %47, %49, %cst_46 {dimension_numbers = #tpu.dot_dimension_numbers<[1], [0], [0], [1], [0, 0, 1, 1], [], []>} : vector<32x192xbf16>, vector<192x128xbf16>, vector<32x128xf32> -> vector<32x128xf32>
    %51 = arith.addf %46, %50 : vector<32x128xf32>
    %52 = vector.broadcast %5 : vector<1x128xf32> to vector<32x128xf32>
    %53 = arith.addf %51, %52 : vector<32x128xf32>
    %cst_47 = arith.constant 0.000000e+00 : f32
    %54 = vector.broadcast %cst_47 : f32 to vector<32x128xf32>
    %55 = arith.maximumf %53, %54 : vector<32x128xf32>
    %56 = arith.truncf %55 : vector<32x128xf32> to vector<32x128xbf16>
    %57 = vector.extract_strided_slice %56 {offsets = [0, 0], sizes = [1, 128], strides = [1, 1]} : vector<32x128xbf16> to vector<1x128xbf16>
    %58 = vector.extract_strided_slice %56 {offsets = [18, 0], sizes = [1, 128], strides = [1, 1]} : vector<32x128xbf16> to vector<1x128xbf16>
    %59 = tpu.concatenate %57, %58 in 0 : vector<1x128xbf16>, vector<1x128xbf16> -> vector<2x128xbf16>
    %c0_48 = arith.constant 0 : index
    %c0_49 = arith.constant 0 : index
    %c0_50 = arith.constant 0 : index
    %60 = vector.load %arg5[%c0_48, %c0_49, %c0_50] : memref<1x1792x256xbf16, #tpu.memory_space<vmem>>, vector<1x128x256xbf16>
    %61 = vector.shape_cast %60 : vector<1x128x256xbf16> to vector<128x256xbf16>
    %cst_51 = arith.constant dense<0.000000e+00> : vector<2x256xf32>
    %62 = tpu.matmul %59, %61, %cst_51 {dimension_numbers = #tpu.dot_dimension_numbers<[1], [0], [0], [1], [0, 0, 1, 1], [], []>} : vector<2x128xbf16>, vector<128x256xbf16>, vector<2x256xf32> -> vector<2x256xf32>
    %63 = vector.extract_strided_slice %56 {offsets = [1, 0], sizes = [1, 128], strides = [1, 1]} : vector<32x128xbf16> to vector<1x128xbf16>
    %64 = vector.extract_strided_slice %56 {offsets = [19, 0], sizes = [1, 128], strides = [1, 1]} : vector<32x128xbf16> to vector<1x128xbf16>
    %65 = tpu.concatenate %63, %64 in 0 : vector<1x128xbf16>, vector<1x128xbf16> -> vector<2x128xbf16>
    %c0_52 = arith.constant 0 : index
    %c128 = arith.constant 128 : index
    %c0_53 = arith.constant 0 : index
    %66 = vector.load %arg5[%c0_52, %c128, %c0_53] : memref<1x1792x256xbf16, #tpu.memory_space<vmem>>, vector<1x128x256xbf16>
    %67 = vector.shape_cast %66 : vector<1x128x256xbf16> to vector<128x256xbf16>
    %cst_54 = arith.constant dense<0.000000e+00> : vector<2x256xf32>
    %68 = tpu.matmul %65, %67, %cst_54 {dimension_numbers = #tpu.dot_dimension_numbers<[1], [0], [0], [1], [0, 0, 1, 1], [], []>} : vector<2x128xbf16>, vector<128x256xbf16>, vector<2x256xf32> -> vector<2x256xf32>
    %69 = arith.addf %62, %68 : vector<2x256xf32>
    %70 = vector.extract_strided_slice %56 {offsets = [2, 0], sizes = [1, 128], strides = [1, 1]} : vector<32x128xbf16> to vector<1x128xbf16>
    %71 = vector.extract_strided_slice %56 {offsets = [20, 0], sizes = [1, 128], strides = [1, 1]} : vector<32x128xbf16> to vector<1x128xbf16>
    %72 = tpu.concatenate %70, %71 in 0 : vector<1x128xbf16>, vector<1x128xbf16> -> vector<2x128xbf16>
    %c0_55 = arith.constant 0 : index
    %c256 = arith.constant 256 : index
    %c0_56 = arith.constant 0 : index
    %73 = vector.load %arg5[%c0_55, %c256, %c0_56] : memref<1x1792x256xbf16, #tpu.memory_space<vmem>>, vector<1x128x256xbf16>
    %74 = vector.shape_cast %73 : vector<1x128x256xbf16> to vector<128x256xbf16>
    %cst_57 = arith.constant dense<0.000000e+00> : vector<2x256xf32>
    %75 = tpu.matmul %72, %74, %cst_57 {dimension_numbers = #tpu.dot_dimension_numbers<[1], [0], [0], [1], [0, 0, 1, 1], [], []>} : vector<2x128xbf16>, vector<128x256xbf16>, vector<2x256xf32> -> vector<2x256xf32>
    %76 = arith.addf %69, %75 : vector<2x256xf32>
    %77 = vector.extract_strided_slice %56 {offsets = [3, 0], sizes = [1, 128], strides = [1, 1]} : vector<32x128xbf16> to vector<1x128xbf16>
    %78 = vector.extract_strided_slice %56 {offsets = [21, 0], sizes = [1, 128], strides = [1, 1]} : vector<32x128xbf16> to vector<1x128xbf16>
    %79 = tpu.concatenate %77, %78 in 0 : vector<1x128xbf16>, vector<1x128xbf16> -> vector<2x128xbf16>
    %c0_58 = arith.constant 0 : index
    %c384 = arith.constant 384 : index
    %c0_59 = arith.constant 0 : index
    %80 = vector.load %arg5[%c0_58, %c384, %c0_59] : memref<1x1792x256xbf16, #tpu.memory_space<vmem>>, vector<1x128x256xbf16>
    %81 = vector.shape_cast %80 : vector<1x128x256xbf16> to vector<128x256xbf16>
    %cst_60 = arith.constant dense<0.000000e+00> : vector<2x256xf32>
    %82 = tpu.matmul %79, %81, %cst_60 {dimension_numbers = #tpu.dot_dimension_numbers<[1], [0], [0], [1], [0, 0, 1, 1], [], []>} : vector<2x128xbf16>, vector<128x256xbf16>, vector<2x256xf32> -> vector<2x256xf32>
    %83 = arith.addf %76, %82 : vector<2x256xf32>
    %84 = vector.extract_strided_slice %56 {offsets = [4, 0], sizes = [1, 128], strides = [1, 1]} : vector<32x128xbf16> to vector<1x128xbf16>
    %85 = vector.extract_strided_slice %56 {offsets = [22, 0], sizes = [1, 128], strides = [1, 1]} : vector<32x128xbf16> to vector<1x128xbf16>
    %86 = tpu.concatenate %84, %85 in 0 : vector<1x128xbf16>, vector<1x128xbf16> -> vector<2x128xbf16>
    %c0_61 = arith.constant 0 : index
    %c512 = arith.constant 512 : index
    %c0_62 = arith.constant 0 : index
    %87 = vector.load %arg5[%c0_61, %c512, %c0_62] : memref<1x1792x256xbf16, #tpu.memory_space<vmem>>, vector<1x128x256xbf16>
    %88 = vector.shape_cast %87 : vector<1x128x256xbf16> to vector<128x256xbf16>
    %cst_63 = arith.constant dense<0.000000e+00> : vector<2x256xf32>
    %89 = tpu.matmul %86, %88, %cst_63 {dimension_numbers = #tpu.dot_dimension_numbers<[1], [0], [0], [1], [0, 0, 1, 1], [], []>} : vector<2x128xbf16>, vector<128x256xbf16>, vector<2x256xf32> -> vector<2x256xf32>
    %90 = arith.addf %83, %89 : vector<2x256xf32>
    %91 = vector.extract_strided_slice %56 {offsets = [5, 0], sizes = [1, 128], strides = [1, 1]} : vector<32x128xbf16> to vector<1x128xbf16>
    %92 = vector.extract_strided_slice %56 {offsets = [23, 0], sizes = [1, 128], strides = [1, 1]} : vector<32x128xbf16> to vector<1x128xbf16>
    %93 = tpu.concatenate %91, %92 in 0 : vector<1x128xbf16>, vector<1x128xbf16> -> vector<2x128xbf16>
    %c0_64 = arith.constant 0 : index
    %c640 = arith.constant 640 : index
    %c0_65 = arith.constant 0 : index
    %94 = vector.load %arg5[%c0_64, %c640, %c0_65] : memref<1x1792x256xbf16, #tpu.memory_space<vmem>>, vector<1x128x256xbf16>
    %95 = vector.shape_cast %94 : vector<1x128x256xbf16> to vector<128x256xbf16>
    %cst_66 = arith.constant dense<0.000000e+00> : vector<2x256xf32>
    %96 = tpu.matmul %93, %95, %cst_66 {dimension_numbers = #tpu.dot_dimension_numbers<[1], [0], [0], [1], [0, 0, 1, 1], [], []>} : vector<2x128xbf16>, vector<128x256xbf16>, vector<2x256xf32> -> vector<2x256xf32>
    %97 = arith.addf %90, %96 : vector<2x256xf32>
    %98 = vector.extract_strided_slice %56 {offsets = [6, 0], sizes = [1, 128], strides = [1, 1]} : vector<32x128xbf16> to vector<1x128xbf16>
    %99 = vector.extract_strided_slice %56 {offsets = [24, 0], sizes = [1, 128], strides = [1, 1]} : vector<32x128xbf16> to vector<1x128xbf16>
    %100 = tpu.concatenate %98, %99 in 0 : vector<1x128xbf16>, vector<1x128xbf16> -> vector<2x128xbf16>
    %c0_67 = arith.constant 0 : index
    %c768 = arith.constant 768 : index
    %c0_68 = arith.constant 0 : index
    %101 = vector.load %arg5[%c0_67, %c768, %c0_68] : memref<1x1792x256xbf16, #tpu.memory_space<vmem>>, vector<1x128x256xbf16>
    %102 = vector.shape_cast %101 : vector<1x128x256xbf16> to vector<128x256xbf16>
    %cst_69 = arith.constant dense<0.000000e+00> : vector<2x256xf32>
    %103 = tpu.matmul %100, %102, %cst_69 {dimension_numbers = #tpu.dot_dimension_numbers<[1], [0], [0], [1], [0, 0, 1, 1], [], []>} : vector<2x128xbf16>, vector<128x256xbf16>, vector<2x256xf32> -> vector<2x256xf32>
    %104 = arith.addf %97, %103 : vector<2x256xf32>
    %105 = vector.extract_strided_slice %56 {offsets = [7, 0], sizes = [1, 128], strides = [1, 1]} : vector<32x128xbf16> to vector<1x128xbf16>
    %106 = vector.extract_strided_slice %56 {offsets = [25, 0], sizes = [1, 128], strides = [1, 1]} : vector<32x128xbf16> to vector<1x128xbf16>
    %107 = tpu.concatenate %105, %106 in 0 : vector<1x128xbf16>, vector<1x128xbf16> -> vector<2x128xbf16>
    %c0_70 = arith.constant 0 : index
    %c896 = arith.constant 896 : index
    %c0_71 = arith.constant 0 : index
    %108 = vector.load %arg5[%c0_70, %c896, %c0_71] : memref<1x1792x256xbf16, #tpu.memory_space<vmem>>, vector<1x128x256xbf16>
    %109 = vector.shape_cast %108 : vector<1x128x256xbf16> to vector<128x256xbf16>
    %cst_72 = arith.constant dense<0.000000e+00> : vector<2x256xf32>
    %110 = tpu.matmul %107, %109, %cst_72 {dimension_numbers = #tpu.dot_dimension_numbers<[1], [0], [0], [1], [0, 0, 1, 1], [], []>} : vector<2x128xbf16>, vector<128x256xbf16>, vector<2x256xf32> -> vector<2x256xf32>
    %111 = arith.addf %104, %110 : vector<2x256xf32>
    %112 = vector.extract_strided_slice %56 {offsets = [8, 0], sizes = [1, 128], strides = [1, 1]} : vector<32x128xbf16> to vector<1x128xbf16>
    %113 = vector.extract_strided_slice %56 {offsets = [26, 0], sizes = [1, 128], strides = [1, 1]} : vector<32x128xbf16> to vector<1x128xbf16>
    %114 = tpu.concatenate %112, %113 in 0 : vector<1x128xbf16>, vector<1x128xbf16> -> vector<2x128xbf16>
    %c0_73 = arith.constant 0 : index
    %c1024 = arith.constant 1024 : index
    %c0_74 = arith.constant 0 : index
    %115 = vector.load %arg5[%c0_73, %c1024, %c0_74] : memref<1x1792x256xbf16, #tpu.memory_space<vmem>>, vector<1x128x256xbf16>
    %116 = vector.shape_cast %115 : vector<1x128x256xbf16> to vector<128x256xbf16>
    %cst_75 = arith.constant dense<0.000000e+00> : vector<2x256xf32>
    %117 = tpu.matmul %114, %116, %cst_75 {dimension_numbers = #tpu.dot_dimension_numbers<[1], [0], [0], [1], [0, 0, 1, 1], [], []>} : vector<2x128xbf16>, vector<128x256xbf16>, vector<2x256xf32> -> vector<2x256xf32>
    %118 = arith.addf %111, %117 : vector<2x256xf32>
    %119 = vector.extract_strided_slice %56 {offsets = [9, 0], sizes = [1, 128], strides = [1, 1]} : vector<32x128xbf16> to vector<1x128xbf16>
    %120 = vector.extract_strided_slice %56 {offsets = [27, 0], sizes = [1, 128], strides = [1, 1]} : vector<32x128xbf16> to vector<1x128xbf16>
    %121 = tpu.concatenate %119, %120 in 0 : vector<1x128xbf16>, vector<1x128xbf16> -> vector<2x128xbf16>
    %c0_76 = arith.constant 0 : index
    %c1152 = arith.constant 1152 : index
    %c0_77 = arith.constant 0 : index
    %122 = vector.load %arg5[%c0_76, %c1152, %c0_77] : memref<1x1792x256xbf16, #tpu.memory_space<vmem>>, vector<1x128x256xbf16>
    %123 = vector.shape_cast %122 : vector<1x128x256xbf16> to vector<128x256xbf16>
    %cst_78 = arith.constant dense<0.000000e+00> : vector<2x256xf32>
    %124 = tpu.matmul %121, %123, %cst_78 {dimension_numbers = #tpu.dot_dimension_numbers<[1], [0], [0], [1], [0, 0, 1, 1], [], []>} : vector<2x128xbf16>, vector<128x256xbf16>, vector<2x256xf32> -> vector<2x256xf32>
    %125 = arith.addf %118, %124 : vector<2x256xf32>
    %126 = vector.extract_strided_slice %56 {offsets = [10, 0], sizes = [1, 128], strides = [1, 1]} : vector<32x128xbf16> to vector<1x128xbf16>
    %127 = vector.extract_strided_slice %56 {offsets = [28, 0], sizes = [1, 128], strides = [1, 1]} : vector<32x128xbf16> to vector<1x128xbf16>
    %128 = tpu.concatenate %126, %127 in 0 : vector<1x128xbf16>, vector<1x128xbf16> -> vector<2x128xbf16>
    %c0_79 = arith.constant 0 : index
    %c1280 = arith.constant 1280 : index
    %c0_80 = arith.constant 0 : index
    %129 = vector.load %arg5[%c0_79, %c1280, %c0_80] : memref<1x1792x256xbf16, #tpu.memory_space<vmem>>, vector<1x128x256xbf16>
    %130 = vector.shape_cast %129 : vector<1x128x256xbf16> to vector<128x256xbf16>
    %cst_81 = arith.constant dense<0.000000e+00> : vector<2x256xf32>
    %131 = tpu.matmul %128, %130, %cst_81 {dimension_numbers = #tpu.dot_dimension_numbers<[1], [0], [0], [1], [0, 0, 1, 1], [], []>} : vector<2x128xbf16>, vector<128x256xbf16>, vector<2x256xf32> -> vector<2x256xf32>
    %132 = arith.addf %125, %131 : vector<2x256xf32>
    %133 = vector.extract_strided_slice %56 {offsets = [11, 0], sizes = [1, 128], strides = [1, 1]} : vector<32x128xbf16> to vector<1x128xbf16>
    %134 = vector.extract_strided_slice %56 {offsets = [29, 0], sizes = [1, 128], strides = [1, 1]} : vector<32x128xbf16> to vector<1x128xbf16>
    %135 = tpu.concatenate %133, %134 in 0 : vector<1x128xbf16>, vector<1x128xbf16> -> vector<2x128xbf16>
    %c0_82 = arith.constant 0 : index
    %c1408 = arith.constant 1408 : index
    %c0_83 = arith.constant 0 : index
    %136 = vector.load %arg5[%c0_82, %c1408, %c0_83] : memref<1x1792x256xbf16, #tpu.memory_space<vmem>>, vector<1x128x256xbf16>
    %137 = vector.shape_cast %136 : vector<1x128x256xbf16> to vector<128x256xbf16>
    %cst_84 = arith.constant dense<0.000000e+00> : vector<2x256xf32>
    %138 = tpu.matmul %135, %137, %cst_84 {dimension_numbers = #tpu.dot_dimension_numbers<[1], [0], [0], [1], [0, 0, 1, 1], [], []>} : vector<2x128xbf16>, vector<128x256xbf16>, vector<2x256xf32> -> vector<2x256xf32>
    %139 = arith.addf %132, %138 : vector<2x256xf32>
    %140 = vector.extract_strided_slice %56 {offsets = [12, 0], sizes = [1, 128], strides = [1, 1]} : vector<32x128xbf16> to vector<1x128xbf16>
    %141 = vector.extract_strided_slice %56 {offsets = [30, 0], sizes = [1, 128], strides = [1, 1]} : vector<32x128xbf16> to vector<1x128xbf16>
    %142 = tpu.concatenate %140, %141 in 0 : vector<1x128xbf16>, vector<1x128xbf16> -> vector<2x128xbf16>
    %c0_85 = arith.constant 0 : index
    %c1536 = arith.constant 1536 : index
    %c0_86 = arith.constant 0 : index
    %143 = vector.load %arg5[%c0_85, %c1536, %c0_86] : memref<1x1792x256xbf16, #tpu.memory_space<vmem>>, vector<1x128x256xbf16>
    %144 = vector.shape_cast %143 : vector<1x128x256xbf16> to vector<128x256xbf16>
    %cst_87 = arith.constant dense<0.000000e+00> : vector<2x256xf32>
    %145 = tpu.matmul %142, %144, %cst_87 {dimension_numbers = #tpu.dot_dimension_numbers<[1], [0], [0], [1], [0, 0, 1, 1], [], []>} : vector<2x128xbf16>, vector<128x256xbf16>, vector<2x256xf32> -> vector<2x256xf32>
    %146 = arith.addf %139, %145 : vector<2x256xf32>
    %147 = vector.extract_strided_slice %56 {offsets = [13, 0], sizes = [1, 128], strides = [1, 1]} : vector<32x128xbf16> to vector<1x128xbf16>
    %148 = vector.extract_strided_slice %56 {offsets = [31, 0], sizes = [1, 128], strides = [1, 1]} : vector<32x128xbf16> to vector<1x128xbf16>
    %149 = tpu.concatenate %147, %148 in 0 : vector<1x128xbf16>, vector<1x128xbf16> -> vector<2x128xbf16>
    %c0_88 = arith.constant 0 : index
    %c1664 = arith.constant 1664 : index
    %c0_89 = arith.constant 0 : index
    %150 = vector.load %arg5[%c0_88, %c1664, %c0_89] : memref<1x1792x256xbf16, #tpu.memory_space<vmem>>, vector<1x128x256xbf16>
    %151 = vector.shape_cast %150 : vector<1x128x256xbf16> to vector<128x256xbf16>
    %cst_90 = arith.constant dense<0.000000e+00> : vector<2x256xf32>
    %152 = tpu.matmul %149, %151, %cst_90 {dimension_numbers = #tpu.dot_dimension_numbers<[1], [0], [0], [1], [0, 0, 1, 1], [], []>} : vector<2x128xbf16>, vector<128x256xbf16>, vector<2x256xf32> -> vector<2x256xf32>
    %153 = arith.addf %146, %152 : vector<2x256xf32>
    %154 = vector.broadcast %7 : vector<1x256xf32> to vector<2x256xf32>
    %155 = arith.addf %153, %154 : vector<2x256xf32>
    %cst_91 = arith.constant 0.000000e+00 : f32
    %156 = vector.broadcast %cst_91 : f32 to vector<2x256xf32>
    %157 = arith.maximumf %155, %156 : vector<2x256xf32>
    %158 = arith.truncf %157 : vector<2x256xf32> to vector<2x256xbf16>
    %c0_92 = arith.constant 0 : index
    %c0_93 = arith.constant 0 : index
    %c0_94 = arith.constant 0 : index
    %159 = vector.load %arg6[%c0_92, %c0_93, %c0_94] : memref<1x256x8xbf16, #tpu.memory_space<vmem>>, vector<1x256x8xbf16>
    %160 = vector.shape_cast %159 : vector<1x256x8xbf16> to vector<256x8xbf16>
    %cst_95 = arith.constant dense<0.000000e+00> : vector<2x8xf32>
    %161 = tpu.matmul %158, %160, %cst_95 {dimension_numbers = #tpu.dot_dimension_numbers<[1], [0], [0], [1], [0, 0, 1, 1], [], []>} : vector<2x256xbf16>, vector<256x8xbf16>, vector<2x8xf32> -> vector<2x8xf32>
    %162 = vector.broadcast %9 : vector<1x8xf32> to vector<2x8xf32>
    %163 = arith.addf %161, %162 : vector<2x8xf32>
    %c0_96 = arith.constant 0 : index
    %c0_97 = arith.constant 0 : index
    %c0_98 = arith.constant 0 : index
    %164 = vector.load %arg8[%c0_96, %c0_97, %c0_98] : memref<1x2x8xf32, #tpu.memory_space<vmem>>, vector<1x2x8xf32>
    %165 = vector.shape_cast %164 : vector<1x2x8xf32> to vector<2x8xf32>
    %166 = vector.shape_cast %163 : vector<2x8xf32> to vector<1x2x8xf32>
    tpu.vector_store %arg8[%c0_96, %c0_97, %c0_98], %166 {strides = array<i32>} : memref<1x2x8xf32, #tpu.memory_space<vmem>>, vector<1x2x8xf32>,
    return
  }
  func.func @transform_0(%arg0: i32) -> (i32, i32) {
    %c0_i32 = arith.constant 0 : i32
    %c0_i32_0 = arith.constant 0 : i32
    %c0_i32_1 = arith.constant 0 : i32
    return %c0_i32, %c0_i32_0 : i32, i32
  }
  func.func @transform_1(%arg0: i32) -> (i32, i32, i32) {
    %c0_i32 = arith.constant 0 : i32
    %c0_i32_0 = arith.constant 0 : i32
    %c0_i32_1 = arith.constant 0 : i32
    return %arg0, %c0_i32, %c0_i32_0 : i32, i32, i32
  }
  func.func @transform_2(%arg0: i32) -> (i32, i32, i32, i32) {
    %c0_i32 = arith.constant 0 : i32
    %c0_i32_0 = arith.constant 0 : i32
    %c0_i32_1 = arith.constant 0 : i32
    %c0_i32_2 = arith.constant 0 : i32
    return %arg0, %c0_i32, %c0_i32_0, %c0_i32_1 : i32, i32, i32, i32
  }
  func.func @transform_3(%arg0: i32) -> (i32, i32, i32, i32) {
    %c0_i32 = arith.constant 0 : i32
    %c0_i32_0 = arith.constant 0 : i32
    %c0_i32_1 = arith.constant 0 : i32
    %c0_i32_2 = arith.constant 0 : i32
    return %arg0, %c0_i32, %c0_i32_0, %c0_i32_1 : i32, i32, i32, i32
  }
  func.func @transform_4(%arg0: i32) -> (i32, i32, i32) {
    %c0_i32 = arith.constant 0 : i32
    %c0_i32_0 = arith.constant 0 : i32
    %c0_i32_1 = arith.constant 0 : i32
    return %arg0, %c0_i32, %c0_i32_0 : i32, i32, i32
  }
  func.func @transform_5(%arg0: i32) -> (i32, i32, i32) {
    %c0_i32 = arith.constant 0 : i32
    %c0_i32_0 = arith.constant 0 : i32
    %c0_i32_1 = arith.constant 0 : i32
    return %arg0, %c0_i32, %c0_i32_0 : i32, i32, i32
  }
  func.func @transform_6(%arg0: i32) -> (i32, i32, i32) {
    %c0_i32 = arith.constant 0 : i32
    %c0_i32_0 = arith.constant 0 : i32
    %c0_i32_1 = arith.constant 0 : i32
    return %arg0, %c0_i32, %c0_i32_0 : i32, i32, i32
  }
  func.func @transform_7(%arg0: i32) -> (i32, i32, i32) {
    %c0_i32 = arith.constant 0 : i32
    %c0_i32_0 = arith.constant 0 : i32
    %c0_i32_1 = arith.constant 0 : i32
    return %arg0, %c0_i32, %c0_i32_0 : i32, i32, i32
  }
}

</mosaic_0001>

<llo_original>
// kernel: ensemble_forward.1
$region0: #{ensemble_forward.1}
  #allocation0 [shape = 'u32[]', space=smem, size = 0x4, offset = 0x4, fixed_abs, tag = 'smem constant byte address 0x4 - core index']
  #allocation1 [shape = 'u32[144,128]{1,0:T(1,128)}', space=vmem, size = 0x12000, scoped, tag = 'internal scratch']
  %s0 = inlined_call_operand.vmem [shape: bf16[36,48], index: 0, kind: input, shape index: {}]
  %s1 = inlined_call_operand.vmem [shape: bf16[5,48,256], index: 1, kind: input, shape index: {}]
  %s2 = inlined_call_operand.vmem [shape: bf16[5,3,256,192], index: 2, kind: input, shape index: {}]
  %s3 = inlined_call_operand.vmem [shape: bf16[5,3,192,128], index: 3, kind: input, shape index: {}]
  %s4 = inlined_call_operand.hbm [shape: bf16[5,1792,256], index: 4, kind: input, shape index: {}]
  %s5 = inlined_call_operand.vmem [shape: bf16[5,256,8], index: 5, kind: input, shape index: {}]
  %s6 = inlined_call_operand.vmem [shape: f32[5,8,256], index: 6, kind: input, shape index: {}]
  %s7 = inlined_call_operand.vmem [shape: f32[5,2,8], index: 7, kind: output, shape index: {}]
  %s8 = sld [smem:[#allocation0]]
  $region65: #{ensemble_forward.1} parent=0
    _
  %s10 = ssub.s32 1, %s8
  %s11 = scalar_select 0, %s10, %s8
  $region1: #{ensemble_forward.1} parent=0
    #allocation2 [shape = 'u8[1835008]{0}', space=vmem, size = 0x1c0000, scoped, tag = 'input window, operand 4']
    #allocation3 [shape = 's32[2]{0}', space=sflag, size = 0x8, scoped, tag = 'scoped memory for ensemble_forward.1']
    %12 = vsyncpa [#allocation3], 0
    %s13 = scalar_lea.sflag [#allocation3], 1
    %14 = vsyncpa %s13, 0
    loop: start=0, step=1, limit=7
    $region2: #{ensemble_forward.1} parent=1 // loop_pre_header
      _
    $region3: #{ensemble_forward.1} parent=1 // loop_header
      %s16 = sphi 0, %s20
      %p17 = scmp.ge.s32.totalorder %s16, 7
      %s24 = sphi 0, %s24
      %s26 = sphi 0, %s24
      %s27 = sphi 0, %s26
      %s41 = sphi 0, %s27
      %s47 = sphi 0, %s49
      %s50 = sphi 0, %s47
      %s51 = sphi 0, %s50
      %s67 = sphi 0, %s51
      %s73 = sphi 0, %s75
      %s76 = sphi 0, %s73
      %s77 = sphi 0, %s76
      %s93 = sphi 0, %s77
      %s99 = sphi 0, %s101
      %s102 = sphi 0, %s99
      %s103 = sphi 0, %s102
      %s119 = sphi 0, %s103
      %s125 = sphi 0, %s127
      %s128 = sphi 0, %s125
      %s129 = sphi 0, %s128
      %s145 = sphi 0, %s129
      %s151 = sphi 0, %s153
      %s154 = sphi 0, %s151
      %s155 = sphi 0, %s154
      %s171 = sphi 0, %s155
      %s177 = sphi 0, %s179
      %s180 = sphi 0, %s177
      %s181 = sphi 0, %s180
      %s197 = sphi 0, %s181
      %s203 = sphi 0, %s205
      %s206 = sphi 0, %s203
      %s207 = sphi 0, %s206
      %s223 = sphi 0, %s207
    $region4: #{ensemble_forward.1} parent=1 // loop_header_branch
      %19 = sbr.rel (%p17) target = $region8
    $region5: #{ensemble_forward.1} parent=1 // loop_body
      %s21 = ssub.s32 %s16, 1
      %s22 = ssub.s32 %s16, 2
      %s23 = sadd.s32 %s16, 1
      %s25 = sadd.s32 %s24, 1
      %p28 = scmp.eq.s32.totalorder %s16, 4
      %p29 = scmp.ne.s32.totalorder %s24, %s26
      %p30 = scmp.eq.s32.totalorder %s16, 0
      %p31 = por %p29, %p30
      %p32 = scmp.ne.s32.totalorder %s24, %s26
      %p33 = scmp.eq.s32.totalorder %s21, 4
      %p34 = por %p32, %p33
      %p35 = scmp.ne.s32.totalorder %s26, %s27
      %p36 = scmp.eq.s32.totalorder %s21, 0
      %p37 = por %p35, %p36
      %p38 = scmp.ne.s32.totalorder %s26, %s27
      %p39 = scmp.eq.s32.totalorder %s22, 4
      %p40 = por %p38, %p39
      %p42 = scmp.ne.s32.totalorder %s27, %s41
      %p43 = scmp.eq.s32.totalorder %s22, 0
      %p44 = por %p42, %p43
      %s45 = ssub.s32 %s16, %s23
      %p46 = scmp.eq.s32.totalorder %s45, 0
      %s48 = sadd.s32 %s47, 1
      %s49 = scalar_select %p46, %s47, %s48
      %p52 = pneg %p46
      %p53 = scmp.eq.s32.totalorder %s16, 4
      %p54 = por %p52, %p53
      %p55 = scmp.ne.s32.totalorder %s47, %s50
      %p56 = scmp.eq.s32.totalorder %s16, 0
      %p57 = por %p55, %p56
      %p58 = scmp.ne.s32.totalorder %s47, %s50
      %p59 = scmp.eq.s32.totalorder %s21, 4
      %p60 = por %p58, %p59
      %p61 = scmp.ne.s32.totalorder %s50, %s51
      %p62 = scmp.eq.s32.totalorder %s21, 0
      %p63 = por %p61, %p62
      %p64 = scmp.ne.s32.totalorder %s50, %s51
      %p65 = scmp.eq.s32.totalorder %s22, 4
      %p66 = por %p64, %p65
      %p68 = scmp.ne.s32.totalorder %s51, %s67
      %p69 = scmp.eq.s32.totalorder %s22, 0
      %p70 = por %p68, %p69
      %s71 = ssub.s32 %s16, %s23
      %p72 = scmp.eq.s32.totalorder %s71, 0
      %s74 = sadd.s32 %s73, 1
      %s75 = scalar_select %p72, %s73, %s74
      %p78 = pneg %p72
      %p79 = scmp.eq.s32.totalorder %s16, 4
      %p80 = por %p78, %p79
      %p81 = scmp.ne.s32.totalorder %s73, %s76
      %p82 = scmp.eq.s32.totalorder %s16, 0
      %p83 = por %p81, %p82
      %p84 = scmp.ne.s32.totalorder %s73, %s76
      %p85 = scmp.eq.s32.totalorder %s21, 4
      %p86 = por %p84, %p85
      %p87 = scmp.ne.s32.totalorder %s76, %s77
      %p88 = scmp.eq.s32.totalorder %s21, 0
      %p89 = por %p87, %p88
      %p90 = scmp.ne.s32.totalorder %s76, %s77
      %p91 = scmp.eq.s32.totalorder %s22, 4
      %p92 = por %p90, %p91
      %p94 = scmp.ne.s32.totalorder %s77, %s93
      %p95 = scmp.eq.s32.totalorder %s22, 0
      %p96 = por %p94, %p95
      %s97 = ssub.s32 %s16, %s23
      %p98 = scmp.eq.s32.totalorder %s97, 0
      %s100 = sadd.s32 %s99, 1
      %s101 = scalar_select %p98, %s99, %s100
      %p104 = pneg %p98
      %p105 = scmp.eq.s32.totalorder %s16, 4
      %p106 = por %p104, %p105
      %p107 = scmp.ne.s32.totalorder %s99, %s102
      %p108 = scmp.eq.s32.totalorder %s16, 0
      %p109 = por %p107, %p108
      %p110 = scmp.ne.s32.totalorder %s99, %s102
      %p111 = scmp.eq.s32.totalorder %s21, 4
      %p112 = por %p110, %p111
      %p113 = scmp.ne.s32.totalorder %s102, %s103
      %p114 = scmp.eq.s32.totalorder %s21, 0
      %p115 = por %p113, %p114
      %p116 = scmp.ne.s32.totalorder %s102, %s103
      %p117 = scmp.eq.s32.totalorder %s22, 4
      %p118 = por %p116, %p117
      %p120 = scmp.ne.s32.totalorder %s103, %s119
      %p121 = scmp.eq.s32.totalorder %s22, 0
      %p122 = por %p120, %p121
      %s123 = ssub.s32 %s16, %s23
      %p124 = scmp.eq.s32.totalorder %s123, 0
      %s126 = sadd.s32 %s125, 1
      %s127 = scalar_select %p124, %s125, %s126
      %p130 = pneg %p124
      %p131 = scmp.eq.s32.totalorder %s16, 4
      %p132 = por %p130, %p131
      %p133 = scmp.ne.s32.totalorder %s125, %s128
      %p134 = scmp.eq.s32.totalorder %s16, 0
      %p135 = por %p133, %p134
      %p136 = scmp.ne.s32.totalorder %s125, %s128
      %p137 = scmp.eq.s32.totalorder %s21, 4
      %p138 = por %p136, %p137
      %p139 = scmp.ne.s32.totalorder %s128, %s129
      %p140 = scmp.eq.s32.totalorder %s21, 0
      %p141 = por %p139, %p140
      %p142 = scmp.ne.s32.totalorder %s128, %s129
      %p143 = scmp.eq.s32.totalorder %s22, 4
      %p144 = por %p142, %p143
      %p146 = scmp.ne.s32.totalorder %s129, %s145
      %p147 = scmp.eq.s32.totalorder %s22, 0
      %p148 = por %p146, %p147
      %s149 = ssub.s32 %s16, %s23
      %p150 = scmp.eq.s32.totalorder %s149, 0
      %s152 = sadd.s32 %s151, 1
      %s153 = scalar_select %p150, %s151, %s152
      %p156 = pneg %p150
      %p157 = scmp.eq.s32.totalorder %s16, 4
      %p158 = por %p156, %p157
      %p159 = scmp.ne.s32.totalorder %s151, %s154
      %p160 = scmp.eq.s32.totalorder %s16, 0
      %p161 = por %p159, %p160
      %p162 = scmp.ne.s32.totalorder %s151, %s154
      %p163 = scmp.eq.s32.totalorder %s21, 4
      %p164 = por %p162, %p163
      %p165 = scmp.ne.s32.totalorder %s154, %s155
      %p166 = scmp.eq.s32.totalorder %s21, 0
      %p167 = por %p165, %p166
      %p168 = scmp.ne.s32.totalorder %s154, %s155
      %p169 = scmp.eq.s32.totalorder %s22, 4
      %p170 = por %p168, %p169
      %p172 = scmp.ne.s32.totalorder %s155, %s171
      %p173 = scmp.eq.s32.totalorder %s22, 0
      %p174 = por %p172, %p173
      %s175 = ssub.s32 %s16, %s23
      %p176 = scmp.eq.s32.totalorder %s175, 0
      %s178 = sadd.s32 %s177, 1
      %s179 = scalar_select %p176, %s177, %s178
      %p182 = pneg %p176
      %p183 = scmp.eq.s32.totalorder %s16, 4
      %p184 = por %p182, %p183
      %p185 = scmp.ne.s32.totalorder %s177, %s180
      %p186 = scmp.eq.s32.totalorder %s16, 0
      %p187 = por %p185, %p186
      %p188 = scmp.ne.s32.totalorder %s177, %s180
      %p189 = scmp.eq.s32.totalorder %s21, 4
      %p190 = por %p188, %p189
      %p191 = scmp.ne.s32.totalorder %s180, %s181
      %p192 = scmp.eq.s32.totalorder %s21, 0
      %p193 = por %p191, %p192
      %p194 = scmp.ne.s32.totalorder %s180, %s181
      %p195 = scmp.eq.s32.totalorder %s22, 4
      %p196 = por %p194, %p195
      %p198 = scmp.ne.s32.totalorder %s181, %s197
      %p199 = scmp.eq.s32.totalorder %s22, 0
      %p200 = por %p198, %p199
      %s201 = ssub.s32 %s16, %s23
      %p202 = scmp.eq.s32.totalorder %s201, 0
      %s204 = sadd.s32 %s203, 1
      %s205 = scalar_select %p202, %s203, %s204
      %p208 = pneg %p202
      %p209 = scmp.eq.s32.totalorder %s16, 4
      %p210 = por %p208, %p209
      %p211 = scmp.ne.s32.totalorder %s203, %s206
      %p212 = scmp.eq.s32.totalorder %s16, 0
      %p213 = por %p211, %p212
      %p214 = scmp.ne.s32.totalorder %s203, %s206
      %p215 = scmp.eq.s32.totalorder %s21, 4
      %p216 = por %p214, %p215
      %p217 = scmp.ne.s32.totalorder %s206, %s207
      %p218 = scmp.eq.s32.totalorder %s21, 0
      %p219 = por %p217, %p218
      %p220 = scmp.ne.s32.totalorder %s206, %s207
      %p221 = scmp.eq.s32.totalorder %s22, 4
      %p222 = por %p220, %p221
      %p224 = scmp.ne.s32.totalorder %s207, %s223
      %p225 = scmp.eq.s32.totalorder %s22, 0
      %p226 = por %p224, %p225
      %p227 = scmp.le.s32.totalorder 1, %s16
      %p228 = scmp.lt.s32.totalorder %s16, 6
      %p229 = pnand %p227, %p228
      %p230 = pneg %p229
      // Predicated region
      $region9: #{ensemble_forward.1} parent=5 // pred_check
        _
      $region10: #{ensemble_forward.1} parent=5 // pred_check_branch
        %232 = sbr.rel (%p229) target = $region12
      $region11: #{ensemble_forward.1} parent=5 // pred_region
        %s233 = ssub.s32 %s16, 1
        // Predicated region
        $region13: #{ensemble_forward.1} parent=11 // pred_check
          %p234 = pneg %p37
        $region14: #{ensemble_forward.1} parent=11 // pred_check_branch
          %236 = sbr.rel (%p234) target = $region16
        $region15: #{ensemble_forward.1} parent=11 // pred_region
          _
        $region16: #{ensemble_forward.1} parent=11 // pred_fallthru
          _
      $region12: #{ensemble_forward.1} parent=5 // pred_fallthru
        _
      %p237 = scmp.lt.s32.totalorder %s16, 5
      // Predicated region
      $region17: #{ensemble_forward.1} parent=5 // pred_check
        %p238 = pneg %p237
      $region18: #{ensemble_forward.1} parent=5 // pred_check_branch
        %240 = sbr.rel (%p238) target = $region20
      $region19: #{ensemble_forward.1} parent=5 // pred_region
        // Predicated region
        $region21: #{ensemble_forward.1} parent=19 // pred_check
          %p241 = pneg %p57
        $region22: #{ensemble_forward.1} parent=19 // pred_check_branch
          %243 = sbr.rel (%p241) target = $region24
        $region23: #{ensemble_forward.1} parent=19 // pred_region
          %p244 = scmp.lt.s32.totalorder %s16, 4
          %s245 = scalar_select %p244, %s16, 4
          %s246 = smul.addr %s245, 12
          %s247 = smul.addr %s246, 4
          %s248 = scalar_lea.vmem %s1, %s247
        $region24: #{ensemble_forward.1} parent=19 // pred_fallthru
          _
        // Predicated region
        $region25: #{ensemble_forward.1} parent=19 // pred_check
          %p249 = pneg %p83
        $region26: #{ensemble_forward.1} parent=19 // pred_check_branch
          %251 = sbr.rel (%p249) target = $region28
        $region27: #{ensemble_forward.1} parent=19 // pred_region
          %p252 = scmp.lt.s32.totalorder %s16, 4
          %s253 = scalar_select %p252, %s16, 4
          %s254 = smul.addr %s253, 192
          %s255 = smul.addr %s254, 4
          %s256 = scalar_lea.vmem %s2, %s255
        $region28: #{ensemble_forward.1} parent=19 // pred_fallthru
          _
        // Predicated region
        $region29: #{ensemble_forward.1} parent=19 // pred_check
          %p257 = pneg %p109
        $region30: #{ensemble_forward.1} parent=19 // pred_check_branch
          %259 = sbr.rel (%p257) target = $region32
        $region31: #{ensemble_forward.1} parent=19 // pred_region
          %p260 = scmp.lt.s32.totalorder %s16, 4
          %s261 = scalar_select %p260, %s16, 4
          %s262 = smul.addr %s261, 72
          %s263 = smul.addr %s262, 4
          %s264 = scalar_lea.vmem %s3, %s263
        $region32: #{ensemble_forward.1} parent=19 // pred_fallthru
          _
        // Predicated region
        $region33: #{ensemble_forward.1} parent=19 // pred_check
          %p265 = pneg %p135
        $region34: #{ensemble_forward.1} parent=19 // pred_check_branch
          %267 = sbr.rel (%p265) target = $region36
        $region35: #{ensemble_forward.1} parent=19 // pred_region
          %s268 = sand.u32 %s125, 1
          %s269 = scalar_lea.sflag [#allocation3], %s268
          %s270 = sand.u32 %s125, 1
          %s271 = smul.addr %s270, 1792
          %s272 = scalar_lea.vmem [#allocation2], %s271
          %s274 = ssub.s32 28672, 28672
          %275 = vsyncadd %s269, %s274
          %s276 = smul.addr %s16, 448
          %s277 = smul.addr %s276, 64
          %s278 = scalar_lea.hbm %s4, %s277
          %s279 = sshll.u32 %s272, 4
          %s280 = int_to_ptr.vmem [resolvable:$true] %s279
          %285 = dma.hbm_to_vmem [thread:$0]  %s278, 28672, %s280, %s269, 128, 128, 8
        $region36: #{ensemble_forward.1} parent=19 // pred_fallthru
          _
        // Predicated region
        $region37: #{ensemble_forward.1} parent=19 // pred_check
          %p286 = pneg %p161
        $region38: #{ensemble_forward.1} parent=19 // pred_check_branch
          %288 = sbr.rel (%p286) target = $region40
        $region39: #{ensemble_forward.1} parent=19 // pred_region
          %p289 = scmp.lt.s32.totalorder %s16, 4
          %s290 = scalar_select %p289, %s16, 4
          %s291 = smul.addr %s290, 32
          %s292 = smul.addr %s291, 4
          %s293 = scalar_lea.vmem %s5, %s292
        $region40: #{ensemble_forward.1} parent=19 // pred_fallthru
          _
        // Predicated region
        $region41: #{ensemble_forward.1} parent=19 // pred_check
          %p294 = pneg %p187
        $region42: #{ensemble_forward.1} parent=19 // pred_check_branch
          %296 = sbr.rel (%p294) target = $region44
        $region43: #{ensemble_forward.1} parent=19 // pred_region
          %p297 = scmp.lt.s32.totalorder %s16, 4
          %s298 = scalar_select %p297, %s16, 4
          %s299 = smul.addr %s298, 2
          %s300 = smul.addr %s299, 8
          %s301 = scalar_lea.vmem %s6, %s300
        $region44: #{ensemble_forward.1} parent=19 // pred_fallthru
          _
      $region20: #{ensemble_forward.1} parent=5 // pred_fallthru
        _
      %p302 = scmp.le.s32.totalorder 1, %s16
      %p303 = scmp.lt.s32.totalorder %s16, 6
      %p304 = pnand %p302, %p303
      %p305 = pneg %p304
      // Predicated region
      $region45: #{ensemble_forward.1} parent=5 // pred_check
        _
      $region46: #{ensemble_forward.1} parent=5 // pred_check_branch
        %307 = sbr.rel (%p304) target = $region48
      $region47: #{ensemble_forward.1} parent=5 // pred_region
        %s308 = ssub.s32 %s16, 1
        %s309 = sand.u32 %s128, 1
        %s310 = scalar_lea.sflag [#allocation3], %s309
        %s311 = sand.u32 %s128, 1
        %s312 = smul.addr %s311, 1792
        %s313 = scalar_lea.vmem [#allocation2], %s312
        // Predicated region
        $region49: #{ensemble_forward.1} parent=47 // pred_check
          %p314 = pneg %p141
        $region50: #{ensemble_forward.1} parent=47 // pred_check_branch
          %316 = sbr.rel (%p314) target = $region52
        $region51: #{ensemble_forward.1} parent=47 // pred_region
          %317 = dma.done %s310, 28672
        $region52: #{ensemble_forward.1} parent=47 // pred_fallthru
          _
        %p318 = pneg %p37
        %p319 = pneg %p34
        %p320 = scmp.lt.s32.totalorder %s21, 4
        %s321 = scalar_select %p320, %s21, 4
        %s322 = smul.addr %s321, 12
        %s323 = smul.addr %s322, 4
        %s324 = scalar_lea.vmem %s1, %s323
        %p325 = pneg %p63
        %p326 = pneg %p60
        %p327 = scmp.lt.s32.totalorder %s21, 4
        %s328 = scalar_select %p327, %s21, 4
        %s329 = smul.addr %s328, 192
        %s330 = smul.addr %s329, 4
        %s331 = scalar_lea.vmem %s2, %s330
        %p332 = pneg %p89
        %p333 = pneg %p86
        %p334 = scmp.lt.s32.totalorder %s21, 4
        %s335 = scalar_select %p334, %s21, 4
        %s336 = smul.addr %s335, 72
        %s337 = smul.addr %s336, 4
        %s338 = scalar_lea.vmem %s3, %s337
        %p339 = pneg %p115
        %p340 = pneg %p112
        %s341 = sand.u32 %s128, 1
        %s342 = scalar_lea.sflag [#allocation3], %s341
        %s343 = sand.u32 %s128, 1
        %s344 = smul.addr %s343, 1792
        %s345 = scalar_lea.vmem [#allocation2], %s344
        %p346 = pneg %p141
        %p347 = pneg %p138
        %p348 = scmp.lt.s32.totalorder %s21, 4
        %s349 = scalar_select %p348, %s21, 4
        %s350 = smul.addr %s349, 32
        %s351 = smul.addr %s350, 4
        %s352 = scalar_lea.vmem %s5, %s351
        %p353 = pneg %p167
        %p354 = pneg %p164
        %p355 = scmp.lt.s32.totalorder %s21, 4
        %s356 = scalar_select %p355, %s21, 4
        %s357 = smul.addr %s356, 2
        %s358 = smul.addr %s357, 8
        %s359 = scalar_lea.vmem %s6, %s358
        %p360 = pneg %p193
        %p361 = pneg %p190
        %p362 = pneg %p219
        %p363 = pneg %p216
        %p364 = scmp.lt.s32.totalorder %s21, 4
        %s365 = scalar_select %p364, %s21, 4
        %s366 = smul.addr %s365, 2
        %s367 = scalar_lea.vmem %s7, %s366
        %p368 = scmp.lt.s32.totalorder %s21, 4
        %s369 = scalar_select %p368, %s21, 4
        %s370 = smul.addr %s369, 12
        %s371 = smul.addr %s370, 4
        %s372 = scalar_lea.vmem %s1, %s371
        %p373 = scmp.lt.s32.totalorder %s21, 4
        %s374 = scalar_select %p373, %s21, 4
        %s375 = smul.addr %s374, 192
        %s376 = smul.addr %s375, 4
        %s377 = scalar_lea.vmem %s2, %s376
        %p378 = scmp.lt.s32.totalorder %s21, 4
        %s379 = scalar_select %p378, %s21, 4
        %s380 = smul.addr %s379, 72
        %s381 = smul.addr %s380, 4
        %s382 = scalar_lea.vmem %s3, %s381
        %p383 = scmp.lt.s32.totalorder %s21, 4
        %s384 = scalar_select %p383, %s21, 4
        %s385 = smul.addr %s384, 32
        %s386 = smul.addr %s385, 4
        %s387 = scalar_lea.vmem %s5, %s386
        %p388 = scmp.lt.s32.totalorder %s21, 4
        %s389 = scalar_select %p388, %s21, 4
        %s390 = smul.addr %s389, 2
        %s391 = smul.addr %s390, 8
        %s392 = scalar_lea.vmem %s6, %s391
        %p393 = scmp.lt.s32.totalorder %s21, 4
        %s394 = scalar_select %p393, %s21, 4
        %s395 = smul.addr %s394, 2
        %s396 = scalar_lea.vmem %s7, %s395
        %v398 = vld [vmem:[%s392] ss:$8 sm:$0x3]
        %s399 = scalar_lea.vmem %s392, 1
        %v400 = vld [vmem:[%s399] ss:$8 sm:$0x3]
        %v401 = vld [vmem:[%s392 + $0x2] ss:$0 sm:$0xff]
        %s402 = scalar_lea.vmem %s392, 3
        %v403 = vld [vmem:[%s402] ss:$8 sm:$0x3]
        %v404 = vld [vmem:[%s392 + $0x4] ss:$0 sm:$0xff]
        %v405 = vld [vmem:[%s0] sm:$0xf]
        %v406 = vld [vmem:[%s0 + $0x4] sm:$0xf]
        %v407 = vld [vmem:[%s0 + $0x8] sm:$0xf]
        %v408 = vld [vmem:[%s0 + $0xc] sm:$0xf]
        %v409 = vld [vmem:[%s0 + $0x10] sm:$0x3]
        %v410 = vld [vmem:[%s372] sm:$0xff]
        %v411 = vld [vmem:[%s372 + $0x8] sm:$0xff]
        %v412 = vld [vmem:[%s372 + $0x10] sm:$0xff]
        %v413 = vld [vmem:[%s372 + $0x18] sm:$0xff]
        %v414 = vld [vmem:[%s372 + $0x20] sm:$0xff]
        %v415 = vld [vmem:[%s372 + $0x28] sm:$0xff]
        %v417 = vlaneseq
        %v418 = vshrl.u32 %v417, 7
        %v419 = vsub.s32 0, %v418
        %v420 = vrot.slane %v398, %v419
        %v421 = vlaneseq
        %v422 = vshrl.u32 %v421, 7
        %v423 = vsub.s32 1, %v422
        %v424 = vrot.slane %v398, %v423
        %v432 = vunpack.c.l.b16 %v405
        %v433 = vunpack.c.l.b16 %v406
        %v434 = vunpack.c.l.b16 %v407
        %v435 = vunpack.c.l.b16 %v408
        %v436 = vunpack.c.l.b16 %v409
        %v437 = vpack.c.b16 %v433, %v432
        %v438 = vpack.c.b16 %v435, %v434
        %v439 = vpack.c.b16 %v436, %v436
        %v446 = vunpack.c.l.b16 %v410
        %v447 = vunpack.c.h.b16 %v410
        %v448 = vunpack.c.l.b16 %v411
        %v449 = vunpack.c.h.b16 %v411
        %v450 = vunpack.c.l.b16 %v412
        %v451 = vunpack.c.h.b16 %v412
        %v452 = vunpack.c.l.b16 %v413
        %v453 = vunpack.c.h.b16 %v413
        %v454 = vunpack.c.l.b16 %v414
        %v455 = vunpack.c.h.b16 %v414
        %v456 = vunpack.c.l.b16 %v415
        %v457 = vunpack.c.h.b16 %v415
        %v458 = vpack.c.b16 %v448, %v446
        %v459 = vpack.c.b16 %v449, %v447
        %v460 = vpack.c.b16 %v452, %v450
        %v461 = vpack.c.b16 %v453, %v451
        %v462 = vpack.c.b16 %v456, %v454
        %v463 = vpack.c.b16 %v457, %v455
        %vm470 = vcmask 392192
        %v472 = vsel %vm470, %v437, 0
        %v475 = vsel %vm470, %v438, 0
        %v478 = vsel %vm470, %v439, 0
        %480 = vmatprep.subr.bf16.mxu0 %v459
        %481 = vmatpush1.bf16.msra.mxu0 %v458
        %482 = vmatprep.subr.bf16.mxu0 %v461
        %483 = vmatpush1.bf16.msra.mxu0 %v460
        %484 = vmatprep.subr.bf16.mxu0 %v463
        %485 = vmatpush1.bf16.msra.mxu0 %v462
        %486 = vmatprep.subr.bf16.mxu0 0
        %487 = vmatpush1.bf16.msra.mxu0 0
        %488 = vmatprep.subr.bf16.mxu0 0
        %489 = vmatpush1.bf16.msra.mxu0 0
        %490 = vmatprep.subr.bf16.mxu0 0
        %491 = vmatpush1.bf16.msra.mxu0 0
        %492 = vmatprep.subr.bf16.mxu0 0
        %493 = vmatpush1.bf16.msra.mxu0 0
        %494 = vmatprep.subr.bf16.mxu0 0
        %495 = vmatpush1.bf16.msra.mxu0 0
        %496 = vmatprep.subr.bf16.mxu0 0
        %497 = vmatpush1.bf16.msra.mxu0 0
        %498 = vmatprep.subr.bf16.mxu0 0
        %499 = vmatpush1.bf16.msra.mxu0 0
        %500 = vmatprep.subr.bf16.mxu0 0
        %501 = vmatpush1.bf16.msra.mxu0 0
        %502 = vmatprep.subr.bf16.mxu0 0
        %503 = vmatpush1.bf16.msra.mxu0 0
        %504 = vmatprep.subr.bf16.mxu0 0
        %505 = vmatpush1.bf16.msra.mxu0 0
        %506 = vmatprep.subr.bf16.mxu0 0
        %507 = vmatpush1.bf16.msra.mxu0 0
        %508 = vmatprep.subr.bf16.mxu0 0
        %509 = vmatpush1.bf16.msra.mxu0 0
        %510 = vmatprep.subr.bf16.mxu0 0
        %511 = vmatpush1.bf16.msra.mxu0 0
        %512 = vmatprep.mubr.bf16.mxu0 0
        %513 = vmatmul.mubr.bf16.gmra.mrb[0].mxu0 %v472
        %v514 = vpop.f32.mrb[0].mxu0
        %v515 = vadd.f32 %v420, %v514
        %v516 = vpop.f32.mrb[0].mxu0
        %v517 = vadd.f32 %v424, %v516
        %v518 = vpop.f32.mrb[0].mxu0
        %v519 = vadd.f32 %v420, %v518
        %v520 = vpop.f32.mrb[0].mxu0
        %v521 = vadd.f32 %v424, %v520
        %522 = vmatprep.mubr.bf16.mxu0 0
        %523 = vmatmul.mubr.bf16.gmra.mrb[0].mxu0 %v475
        %v524 = vpop.f32.mrb[0].mxu0
        %v525 = vadd.f32 %v420, %v524
        %v526 = vpop.f32.mrb[0].mxu0
        %v527 = vadd.f32 %v424, %v526
        %v528 = vpop.f32.mrb[0].mxu0
        %v529 = vadd.f32 %v420, %v528
        %v530 = vpop.f32.mrb[0].mxu0
        %v531 = vadd.f32 %v424, %v530
        %532 = vmatprep.mubr.bf16.mxu0 0
        %533 = vmatmul.mubr.bf16.gmra.mrb[0].mxu0 %v478
        %v534 = vpop.f32.mrb[0].mxu0
        %v535 = vadd.f32 %v420, %v534
        %v536 = vpop.f32.mrb[0].mxu0
        %v537 = vadd.f32 %v424, %v536
        %v538 = vpop.f32.mrb[0].mxu0
        %v539 = vpop.f32.mrb[0].mxu0
        %540 = vdwg.mxu0
        %v541 = vmax.f32 %v515, 0.0
        %v542 = vmax.f32 %v517, 0.0
        %v543 = vmax.f32 %v519, 0.0
        %v544 = vmax.f32 %v521, 0.0
        %v545 = vmax.f32 %v525, 0.0
        %v546 = vmax.f32 %v527, 0.0
        %v547 = vmax.f32 %v529, 0.0
        %v548 = vmax.f32 %v531, 0.0
        %v549 = vmax.f32 %v535, 0.0
        %v550 = vmax.f32 %v537, 0.0
        %v551 = vpack.c.bf16 %v543, %v541
        %v552 = vpack.c.bf16 %v544, %v542
        %v553 = vpack.c.bf16 %v547, %v545
        %v554 = vpack.c.bf16 %v548, %v546
        %v555 = vpack.c.bf16 %v549, %v549
        %v556 = vpack.c.bf16 %v550, %v550
        %v557 = vld [vmem:[%s377] sm:$0xff]
        %v558 = vld [vmem:[%s377 + $0x8] sm:$0xff]
        %v559 = vld [vmem:[%s377 + $0x10] sm:$0xff]
        %v560 = vld [vmem:[%s377 + $0x18] sm:$0xff]
        %v561 = vld [vmem:[%s377 + $0x20] sm:$0xff]
        %v562 = vld [vmem:[%s377 + $0x28] sm:$0xff]
        %v563 = vld [vmem:[%s377 + $0x30] sm:$0xff]
        %v564 = vld [vmem:[%s377 + $0x38] sm:$0xff]
        %v565 = vld [vmem:[%s377 + $0x40] sm:$0xff]
        %v566 = vld [vmem:[%s377 + $0x48] sm:$0xff]
        %v567 = vld [vmem:[%s377 + $0x50] sm:$0xff]
        %v568 = vld [vmem:[%s377 + $0x58] sm:$0xff]
        %v569 = vld [vmem:[%s377 + $0x60] sm:$0xff]
        %v570 = vld [vmem:[%s377 + $0x68] sm:$0xff]
        %v571 = vld [vmem:[%s377 + $0x70] sm:$0xff]
        %v572 = vld [vmem:[%s377 + $0x78] sm:$0xff]
        %v573 = vld [vmem:[%s377 + $0x80] sm:$0xff]
        %v574 = vld [vmem:[%s377 + $0x88] sm:$0xff]
        %v575 = vld [vmem:[%s377 + $0x90] sm:$0xff]
        %v576 = vld [vmem:[%s377 + $0x98] sm:$0xff]
        %v577 = vld [vmem:[%s377 + $0xa0] sm:$0xff]
        %v578 = vld [vmem:[%s377 + $0xa8] sm:$0xff]
        %v579 = vld [vmem:[%s377 + $0xb0] sm:$0xff]
        %v580 = vld [vmem:[%s377 + $0xb8] sm:$0xff]
        %v581 = vld [vmem:[%s377 + $0xc0] sm:$0xff]
        %v582 = vld [vmem:[%s377 + $0xc8] sm:$0xff]
        %v583 = vld [vmem:[%s377 + $0xd0] sm:$0xff]
        %v584 = vld [vmem:[%s377 + $0xd8] sm:$0xff]
        %v585 = vld [vmem:[%s377 + $0xe0] sm:$0xff]
        %v586 = vld [vmem:[%s377 + $0xe8] sm:$0xff]
        %v587 = vld [vmem:[%s377 + $0xf0] sm:$0xff]
        %v588 = vld [vmem:[%s377 + $0xf8] sm:$0xff]
        %s589 = scalar_lea.vmem %s377, 256
        %v590 = vld [vmem:[%s589] sm:$0xff]
        %v591 = vld [vmem:[%s589 + $0x8] sm:$0xff]
        %v592 = vld [vmem:[%s589 + $0x10] sm:$0xff]
        %v593 = vld [vmem:[%s589 + $0x18] sm:$0xff]
        %v594 = vld [vmem:[%s589 + $0x20] sm:$0xff]
        %v595 = vld [vmem:[%s589 + $0x28] sm:$0xff]
        %v596 = vld [vmem:[%s589 + $0x30] sm:$0xff]
        %v597 = vld [vmem:[%s589 + $0x38] sm:$0xff]
        %v598 = vld [vmem:[%s589 + $0x40] sm:$0xff]
        %v599 = vld [vmem:[%s589 + $0x48] sm:$0xff]
        %v600 = vld [vmem:[%s589 + $0x50] sm:$0xff]
        %v601 = vld [vmem:[%s589 + $0x58] sm:$0xff]
        %v602 = vld [vmem:[%s589 + $0x60] sm:$0xff]
        %v603 = vld [vmem:[%s589 + $0x68] sm:$0xff]
        %v604 = vld [vmem:[%s589 + $0x70] sm:$0xff]
        %v605 = vld [vmem:[%s589 + $0x78] sm:$0xff]
        %v606 = vld [vmem:[%s589 + $0x80] sm:$0xff]
        %v607 = vld [vmem:[%s589 + $0x88] sm:$0xff]
        %v608 = vld [vmem:[%s589 + $0x90] sm:$0xff]
        %v609 = vld [vmem:[%s589 + $0x98] sm:$0xff]
        %v610 = vld [vmem:[%s589 + $0xa0] sm:$0xff]
        %v611 = vld [vmem:[%s589 + $0xa8] sm:$0xff]
        %v612 = vld [vmem:[%s589 + $0xb0] sm:$0xff]
        %v613 = vld [vmem:[%s589 + $0xb8] sm:$0xff]
        %v614 = vld [vmem:[%s589 + $0xc0] sm:$0xff]
        %v615 = vld [vmem:[%s589 + $0xc8] sm:$0xff]
        %v616 = vld [vmem:[%s589 + $0xd0] sm:$0xff]
        %v617 = vld [vmem:[%s589 + $0xd8] sm:$0xff]
        %v618 = vld [vmem:[%s589 + $0xe0] sm:$0xff]
        %v619 = vld [vmem:[%s589 + $0xe8] sm:$0xff]
        %v620 = vld [vmem:[%s589 + $0xf0] sm:$0xff]
        %v621 = vld [vmem:[%s589 + $0xf8] sm:$0xff]
        %vm622 = vsmask.f32 7424
        %v624 = vshrl.u32 %v551, 16
        %v626 = vshll.u32 %v551, 16
        %v628 = vrot.slane %v626, 1
        %v629 = vor.u32 %v624, %v628
        %v631 = vshll.u32 %v553, 16
        %v633 = vrot.slane %v631, 1
        %v634 = vsel %vm622, %v629, %v633
        %v636 = vshrl.u32 %v552, 16
        %v638 = vshll.u32 %v552, 16
        %v640 = vrot.slane %v638, 1
        %v641 = vor.u32 %v636, %v640
        %v643 = vshll.u32 %v554, 16
        %v645 = vrot.slane %v643, 1
        %v646 = vsel %vm622, %v641, %v645
        %v647 = vshrl.u32 %v553, 16
        %v649 = vor.u32 %v647, %v633
        %v651 = vshll.u32 %v555, 16
        %v653 = vrot.slane %v651, 1
        %v654 = vsel %vm622, %v649, %v653
        %v655 = vshrl.u32 %v554, 16
        %v657 = vor.u32 %v655, %v645
        %v659 = vshll.u32 %v556, 16
        %v661 = vrot.slane %v659, 1
        %v662 = vsel %vm622, %v657, %v661
        %v663 = vshrl.u32 %v555, 16
        %v665 = vor.u32 %v663, %v653
        %v666 = vshrl.u32 %v556, 16
        %v668 = vor.u32 %v666, %v661
        %v707 = vunpack.c.l.b16 %v590
        %v708 = vunpack.c.h.b16 %v590
        %v709 = vunpack.c.l.b16 %v591
        %v710 = vunpack.c.h.b16 %v591
        %v711 = vunpack.c.l.b16 %v592
        %v712 = vunpack.c.h.b16 %v592
        %v713 = vunpack.c.l.b16 %v593
        %v714 = vunpack.c.h.b16 %v593
        %v715 = vunpack.c.l.b16 %v594
        %v716 = vunpack.c.h.b16 %v594
        %v717 = vunpack.c.l.b16 %v595
        %v718 = vunpack.c.h.b16 %v595
        %v719 = vunpack.c.l.b16 %v596
        %v720 = vunpack.c.h.b16 %v596
        %v721 = vunpack.c.l.b16 %v597
        %v722 = vunpack.c.h.b16 %v597
        %v723 = vunpack.c.l.b16 %v598
        %v724 = vunpack.c.h.b16 %v598
        %v725 = vunpack.c.l.b16 %v599
        %v726 = vunpack.c.h.b16 %v599
        %v727 = vunpack.c.l.b16 %v600
        %v728 = vunpack.c.h.b16 %v600
        %v729 = vunpack.c.l.b16 %v601
        %v730 = vunpack.c.h.b16 %v601
        %v731 = vunpack.c.l.b16 %v602
        %v732 = vunpack.c.h.b16 %v602
        %v733 = vunpack.c.l.b16 %v603
        %v734 = vunpack.c.h.b16 %v603
        %v735 = vunpack.c.l.b16 %v604
        %v736 = vunpack.c.h.b16 %v604
        %v737 = vunpack.c.l.b16 %v605
        %v738 = vunpack.c.h.b16 %v605
        %v739 = vunpack.c.l.b16 %v606
        %v740 = vunpack.c.h.b16 %v606
        %v741 = vunpack.c.l.b16 %v607
        %v742 = vunpack.c.h.b16 %v607
        %v743 = vunpack.c.l.b16 %v608
        %v744 = vunpack.c.h.b16 %v608
        %v745 = vunpack.c.l.b16 %v609
        %v746 = vunpack.c.h.b16 %v609
        %v747 = vunpack.c.l.b16 %v610
        %v748 = vunpack.c.h.b16 %v610
        %v749 = vunpack.c.l.b16 %v611
        %v750 = vunpack.c.h.b16 %v611
        %v751 = vunpack.c.l.b16 %v612
        %v752 = vunpack.c.h.b16 %v612
        %v753 = vunpack.c.l.b16 %v613
        %v754 = vunpack.c.h.b16 %v613
        %v755 = vunpack.c.l.b16 %v614
        %v756 = vunpack.c.h.b16 %v614
        %v757 = vunpack.c.l.b16 %v615
        %v758 = vunpack.c.h.b16 %v615
        %v759 = vunpack.c.l.b16 %v616
        %v760 = vunpack.c.h.b16 %v616
        %v761 = vunpack.c.l.b16 %v617
        %v762 = vunpack.c.h.b16 %v617
        %v763 = vunpack.c.l.b16 %v618
        %v764 = vunpack.c.h.b16 %v618
        %v765 = vunpack.c.l.b16 %v619
        %v766 = vunpack.c.h.b16 %v619
        %v767 = vunpack.c.l.b16 %v620
        %v768 = vunpack.c.h.b16 %v620
        %v769 = vunpack.c.l.b16 %v621
        %v770 = vunpack.c.h.b16 %v621
        %v771 = vpack.c.b16 %v709, %v707
        %v772 = vpack.c.b16 %v710, %v708
        %v773 = vpack.c.b16 %v713, %v711
        %v774 = vpack.c.b16 %v714, %v712
        %v775 = vpack.c.b16 %v717, %v715
        %v776 = vpack.c.b16 %v718, %v716
        %v777 = vpack.c.b16 %v721, %v719
        %v778 = vpack.c.b16 %v722, %v720
        %v779 = vpack.c.b16 %v725, %v723
        %v780 = vpack.c.b16 %v726, %v724
        %v781 = vpack.c.b16 %v729, %v727
        %v782 = vpack.c.b16 %v730, %v728
        %v783 = vpack.c.b16 %v733, %v731
        %v784 = vpack.c.b16 %v734, %v732
        %v785 = vpack.c.b16 %v737, %v735
        %v786 = vpack.c.b16 %v738, %v736
        %v787 = vpack.c.b16 %v741, %v739
        %v788 = vpack.c.b16 %v742, %v740
        %v789 = vpack.c.b16 %v745, %v743
        %v790 = vpack.c.b16 %v746, %v744
        %v791 = vpack.c.b16 %v749, %v747
        %v792 = vpack.c.b16 %v750, %v748
        %v793 = vpack.c.b16 %v753, %v751
        %v794 = vpack.c.b16 %v754, %v752
        %v795 = vpack.c.b16 %v757, %v755
        %v796 = vpack.c.b16 %v758, %v756
        %v797 = vpack.c.b16 %v761, %v759
        %v798 = vpack.c.b16 %v762, %v760
        %v799 = vpack.c.b16 %v765, %v763
        %v800 = vpack.c.b16 %v766, %v764
        %v801 = vpack.c.b16 %v769, %v767
        %v802 = vpack.c.b16 %v770, %v768
        %835 = vmatprep.subr.bf16.mxu0 %v772
        %836 = vmatpush1.bf16.msra.mxu0 %v771
        %837 = vmatprep.subr.bf16.mxu0 %v774
        %838 = vmatpush1.bf16.msra.mxu0 %v773
        %839 = vmatprep.subr.bf16.mxu0 %v776
        %840 = vmatpush1.bf16.msra.mxu0 %v775
        %841 = vmatprep.subr.bf16.mxu0 %v778
        %842 = vmatpush1.bf16.msra.mxu0 %v777
        %843 = vmatprep.subr.bf16.mxu0 %v780
        %844 = vmatpush1.bf16.msra.mxu0 %v779
        %845 = vmatprep.subr.bf16.mxu0 %v782
        %846 = vmatpush1.bf16.msra.mxu0 %v781
        %847 = vmatprep.subr.bf16.mxu0 %v784
        %848 = vmatpush1.bf16.msra.mxu0 %v783
        %849 = vmatprep.subr.bf16.mxu0 %v786
        %850 = vmatpush1.bf16.msra.mxu0 %v785
        %851 = vmatprep.subr.bf16.mxu0 %v788
        %852 = vmatpush1.bf16.msra.mxu0 %v787
        %853 = vmatprep.subr.bf16.mxu0 %v790
        %854 = vmatpush1.bf16.msra.mxu0 %v789
        %855 = vmatprep.subr.bf16.mxu0 %v792
        %856 = vmatpush1.bf16.msra.mxu0 %v791
        %857 = vmatprep.subr.bf16.mxu0 %v794
        %858 = vmatpush1.bf16.msra.mxu0 %v793
        %859 = vmatprep.subr.bf16.mxu0 %v796
        %860 = vmatpush1.bf16.msra.mxu0 %v795
        %861 = vmatprep.subr.bf16.mxu0 %v798
        %862 = vmatpush1.bf16.msra.mxu0 %v797
        %863 = vmatprep.subr.bf16.mxu0 %v800
        %864 = vmatpush1.bf16.msra.mxu0 %v799
        %865 = vmatprep.subr.bf16.mxu0 %v802
        %866 = vmatpush1.bf16.msra.mxu0 %v801
        %867 = vmatprep.mubr.bf16.mxu0 %v646
        %868 = vmatmul.mubr.bf16.gmra.mrb[0].mxu0 %v634
        %v869 = vpop.f32.mrb[0].mxu0
        %v870 = vadd.f32 0.0, %v869
        %v871 = vpop.f32.mrb[0].mxu0
        %v872 = vadd.f32 0.0, %v871
        %v873 = vpop.f32.mrb[0].mxu0
        %v874 = vadd.f32 0.0, %v873
        %v875 = vpop.f32.mrb[0].mxu0
        %v876 = vadd.f32 0.0, %v875
        %877 = vmatprep.mubr.bf16.mxu0 %v662
        %878 = vmatmul.mubr.bf16.gmra.mrb[0].mxu0 %v654
        %v879 = vpop.f32.mrb[0].mxu0
        %v880 = vadd.f32 0.0, %v879
        %v881 = vpop.f32.mrb[0].mxu0
        %v882 = vadd.f32 0.0, %v881
        %v883 = vpop.f32.mrb[0].mxu0
        %v884 = vadd.f32 0.0, %v883
        %v885 = vpop.f32.mrb[0].mxu0
        %v886 = vadd.f32 0.0, %v885
        %887 = vmatprep.mubr.bf16.mxu0 %v668
        %888 = vmatmul.mubr.bf16.gmra.mrb[0].mxu0 %v665
        %v889 = vpop.f32.mrb[0].mxu0
        %v890 = vadd.f32 0.0, %v889
        %v891 = vpop.f32.mrb[0].mxu0
        %v892 = vadd.f32 0.0, %v891
        %v893 = vpop.f32.mrb[0].mxu0
        %v894 = vpop.f32.mrb[0].mxu0
        %895 = vdwg.mxu0
        %v928 = vunpack.c.l.b16 %v557
        %v929 = vunpack.c.h.b16 %v557
        %v930 = vunpack.c.l.b16 %v558
        %v931 = vunpack.c.h.b16 %v558
        %v932 = vunpack.c.l.b16 %v559
        %v933 = vunpack.c.h.b16 %v559
        %v934 = vunpack.c.l.b16 %v560
        %v935 = vunpack.c.h.b16 %v560
        %v936 = vunpack.c.l.b16 %v561
        %v937 = vunpack.c.h.b16 %v561
        %v938 = vunpack.c.l.b16 %v562
        %v939 = vunpack.c.h.b16 %v562
        %v940 = vunpack.c.l.b16 %v563
        %v941 = vunpack.c.h.b16 %v563
        %v942 = vunpack.c.l.b16 %v564
        %v943 = vunpack.c.h.b16 %v564
        %v944 = vunpack.c.l.b16 %v565
        %v945 = vunpack.c.h.b16 %v565
        %v946 = vunpack.c.l.b16 %v566
        %v947 = vunpack.c.h.b16 %v566
        %v948 = vunpack.c.l.b16 %v567
        %v949 = vunpack.c.h.b16 %v567
        %v950 = vunpack.c.l.b16 %v568
        %v951 = vunpack.c.h.b16 %v568
        %v952 = vunpack.c.l.b16 %v569
        %v953 = vunpack.c.h.b16 %v569
        %v954 = vunpack.c.l.b16 %v570
        %v955 = vunpack.c.h.b16 %v570
        %v956 = vunpack.c.l.b16 %v571
        %v957 = vunpack.c.h.b16 %v571
        %v958 = vunpack.c.l.b16 %v572
        %v959 = vunpack.c.h.b16 %v572
        %v960 = vunpack.c.l.b16 %v573
        %v961 = vunpack.c.h.b16 %v573
        %v962 = vunpack.c.l.b16 %v574
        %v963 = vunpack.c.h.b16 %v574
        %v964 = vunpack.c.l.b16 %v575
        %v965 = vunpack.c.h.b16 %v575
        %v966 = vunpack.c.l.b16 %v576
        %v967 = vunpack.c.h.b16 %v576
        %v968 = vunpack.c.l.b16 %v577
        %v969 = vunpack.c.h.b16 %v577
        %v970 = vunpack.c.l.b16 %v578
        %v971 = vunpack.c.h.b16 %v578
        %v972 = vunpack.c.l.b16 %v579
        %v973 = vunpack.c.h.b16 %v579
        %v974 = vunpack.c.l.b16 %v580
        %v975 = vunpack.c.h.b16 %v580
        %v976 = vunpack.c.l.b16 %v581
        %v977 = vunpack.c.h.b16 %v581
        %v978 = vunpack.c.l.b16 %v582
        %v979 = vunpack.c.h.b16 %v582
        %v980 = vunpack.c.l.b16 %v583
        %v981 = vunpack.c.h.b16 %v583
        %v982 = vunpack.c.l.b16 %v584
        %v983 = vunpack.c.h.b16 %v584
        %v984 = vunpack.c.l.b16 %v585
        %v985 = vunpack.c.h.b16 %v585
        %v986 = vunpack.c.l.b16 %v586
        %v987 = vunpack.c.h.b16 %v586
        %v988 = vunpack.c.l.b16 %v587
        %v989 = vunpack.c.h.b16 %v587
        %v990 = vunpack.c.l.b16 %v588
        %v991 = vunpack.c.h.b16 %v588
        %v992 = vpack.c.b16 %v930, %v928
        %v993 = vpack.c.b16 %v931, %v929
        %v994 = vpack.c.b16 %v934, %v932
        %v995 = vpack.c.b16 %v935, %v933
        %v996 = vpack.c.b16 %v938, %v936
        %v997 = vpack.c.b16 %v939, %v937
        %v998 = vpack.c.b16 %v942, %v940
        %v999 = vpack.c.b16 %v943, %v941
        %v1000 = vpack.c.b16 %v946, %v944
        %v1001 = vpack.c.b16 %v947, %v945
        %v1002 = vpack.c.b16 %v950, %v948
        %v1003 = vpack.c.b16 %v951, %v949
        %v1004 = vpack.c.b16 %v954, %v952
        %v1005 = vpack.c.b16 %v955, %v953
        %v1006 = vpack.c.b16 %v958, %v956
        %v1007 = vpack.c.b16 %v959, %v957
        %v1008 = vpack.c.b16 %v962, %v960
        %v1009 = vpack.c.b16 %v963, %v961
        %v1010 = vpack.c.b16 %v966, %v964
        %v1011 = vpack.c.b16 %v967, %v965
        %v1012 = vpack.c.b16 %v970, %v968
        %v1013 = vpack.c.b16 %v971, %v969
        %v1014 = vpack.c.b16 %v974, %v972
        %v1015 = vpack.c.b16 %v975, %v973
        %v1016 = vpack.c.b16 %v978, %v976
        %v1017 = vpack.c.b16 %v979, %v977
        %v1018 = vpack.c.b16 %v982, %v980
        %v1019 = vpack.c.b16 %v983, %v981
        %v1020 = vpack.c.b16 %v986, %v984
        %v1021 = vpack.c.b16 %v987, %v985
        %v1022 = vpack.c.b16 %v990, %v988
        %v1023 = vpack.c.b16 %v991, %v989
        %1056 = vmatprep.subr.bf16.mxu0 %v993
        %1057 = vmatpush1.bf16.msra.mxu0 %v992
        %1058 = vmatprep.subr.bf16.mxu0 %v995
        %1059 = vmatpush1.bf16.msra.mxu0 %v994
        %1060 = vmatprep.subr.bf16.mxu0 %v997
        %1061 = vmatpush1.bf16.msra.mxu0 %v996
        %1062 = vmatprep.subr.bf16.mxu0 %v999
        %1063 = vmatpush1.bf16.msra.mxu0 %v998
        %1064 = vmatprep.subr.bf16.mxu0 %v1001
        %1065 = vmatpush1.bf16.msra.mxu0 %v1000
        %1066 = vmatprep.subr.bf16.mxu0 %v1003
        %1067 = vmatpush1.bf16.msra.mxu0 %v1002
        %1068 = vmatprep.subr.bf16.mxu0 %v1005
        %1069 = vmatpush1.bf16.msra.mxu0 %v1004
        %1070 = vmatprep.subr.bf16.mxu0 %v1007
        %1071 = vmatpush1.bf16.msra.mxu0 %v1006
        %1072 = vmatprep.subr.bf16.mxu0 %v1009
        %1073 = vmatpush1.bf16.msra.mxu0 %v1008
        %1074 = vmatprep.subr.bf16.mxu0 %v1011
        %1075 = vmatpush1.bf16.msra.mxu0 %v1010
        %1076 = vmatprep.subr.bf16.mxu0 %v1013
        %1077 = vmatpush1.bf16.msra.mxu0 %v1012
        %1078 = vmatprep.subr.bf16.mxu0 %v1015
        %1079 = vmatpush1.bf16.msra.mxu0 %v1014
        %1080 = vmatprep.subr.bf16.mxu0 %v1017
        %1081 = vmatpush1.bf16.msra.mxu0 %v1016
        %1082 = vmatprep.subr.bf16.mxu0 %v1019
        %1083 = vmatpush1.bf16.msra.mxu0 %v1018
        %1084 = vmatprep.subr.bf16.mxu0 %v1021
        %1085 = vmatpush1.bf16.msra.mxu0 %v1020
        %1086 = vmatprep.subr.bf16.mxu0 %v1023
        %1087 = vmatpush1.bf16.msra.mxu0 %v1022
        %1088 = vmatprep.mubr.bf16.mxu0 %v552
        %1089 = vmatmul.mubr.bf16.gmra.mrb[0].mxu0 %v551
        %v1090 = vpop.f32.mrb[0].mxu0
        %v1091 = vadd.f32 %v870, %v1090
        %v1092 = vpop.f32.mrb[0].mxu0
        %v1093 = vadd.f32 %v872, %v1092
        %v1094 = vpop.f32.mrb[0].mxu0
        %v1095 = vadd.f32 %v874, %v1094
        %v1096 = vpop.f32.mrb[0].mxu0
        %v1097 = vadd.f32 %v876, %v1096
        %1098 = vmatprep.mubr.bf16.mxu0 %v554
        %1099 = vmatmul.mubr.bf16.gmra.mrb[0].mxu0 %v553
        %v1100 = vpop.f32.mrb[0].mxu0
        %v1101 = vadd.f32 %v880, %v1100
        %v1102 = vpop.f32.mrb[0].mxu0
        %v1103 = vadd.f32 %v882, %v1102
        %v1104 = vpop.f32.mrb[0].mxu0
        %v1105 = vadd.f32 %v884, %v1104
        %v1106 = vpop.f32.mrb[0].mxu0
        %v1107 = vadd.f32 %v886, %v1106
        %1108 = vmatprep.mubr.bf16.mxu0 %v556
        %1109 = vmatmul.mubr.bf16.gmra.mrb[0].mxu0 %v555
        %v1110 = vpop.f32.mrb[0].mxu0
        %v1111 = vadd.f32 %v890, %v1110
        %v1112 = vpop.f32.mrb[0].mxu0
        %v1113 = vadd.f32 %v892, %v1112
        %v1114 = vpop.f32.mrb[0].mxu0
        %v1115 = vpop.f32.mrb[0].mxu0
        %1116 = vdwg.mxu0
        %s1117 = scalar_lea.vmem %s377, 512
        %v1118 = vld [vmem:[%s1117] sm:$0xff]
        %v1119 = vld [vmem:[%s1117 + $0x8] sm:$0xff]
        %v1120 = vld [vmem:[%s1117 + $0x10] sm:$0xff]
        %v1121 = vld [vmem:[%s1117 + $0x18] sm:$0xff]
        %v1122 = vld [vmem:[%s1117 + $0x20] sm:$0xff]
        %v1123 = vld [vmem:[%s1117 + $0x28] sm:$0xff]
        %v1124 = vld [vmem:[%s1117 + $0x30] sm:$0xff]
        %v1125 = vld [vmem:[%s1117 + $0x38] sm:$0xff]
        %v1126 = vld [vmem:[%s1117 + $0x40] sm:$0xff]
        %v1127 = vld [vmem:[%s1117 + $0x48] sm:$0xff]
        %v1128 = vld [vmem:[%s1117 + $0x50] sm:$0xff]
        %v1129 = vld [vmem:[%s1117 + $0x58] sm:$0xff]
        %v1130 = vld [vmem:[%s1117 + $0x60] sm:$0xff]
        %v1131 = vld [vmem:[%s1117 + $0x68] sm:$0xff]
        %v1132 = vld [vmem:[%s1117 + $0x70] sm:$0xff]
        %v1133 = vld [vmem:[%s1117 + $0x78] sm:$0xff]
        %v1134 = vld [vmem:[%s1117 + $0x80] sm:$0xff]
        %v1135 = vld [vmem:[%s1117 + $0x88] sm:$0xff]
        %v1136 = vld [vmem:[%s1117 + $0x90] sm:$0xff]
        %v1137 = vld [vmem:[%s1117 + $0x98] sm:$0xff]
        %v1138 = vld [vmem:[%s1117 + $0xa0] sm:$0xff]
        %v1139 = vld [vmem:[%s1117 + $0xa8] sm:$0xff]
        %v1140 = vld [vmem:[%s1117 + $0xb0] sm:$0xff]
        %v1141 = vld [vmem:[%s1117 + $0xb8] sm:$0xff]
        %v1142 = vld [vmem:[%s1117 + $0xc0] sm:$0xff]
        %v1143 = vld [vmem:[%s1117 + $0xc8] sm:$0xff]
        %v1144 = vld [vmem:[%s1117 + $0xd0] sm:$0xff]
        %v1145 = vld [vmem:[%s1117 + $0xd8] sm:$0xff]
        %v1146 = vld [vmem:[%s1117 + $0xe0] sm:$0xff]
        %v1147 = vld [vmem:[%s1117 + $0xe8] sm:$0xff]
        %v1148 = vld [vmem:[%s1117 + $0xf0] sm:$0xff]
        %v1149 = vld [vmem:[%s1117 + $0xf8] sm:$0xff]
        %vm1156 = vcmask 1046528
        %v1157 = vrot.slane %v551, 1
        %v1158 = vrot.slane %v553, 1
        %v1159 = vsel %vm1156, %v1157, %v1158
        %v1160 = vrot.slane %v552, 1
        %v1161 = vrot.slane %v554, 1
        %v1162 = vsel %vm1156, %v1160, %v1161
        %v1163 = vrot.slane %v555, 1
        %v1164 = vsel %vm1156, %v1158, %v1163
        %v1165 = vrot.slane %v556, 1
        %v1166 = vsel %vm1156, %v1161, %v1165
        %v1205 = vunpack.c.l.b16 %v1118
        %v1206 = vunpack.c.h.b16 %v1118
        %v1207 = vunpack.c.l.b16 %v1119
        %v1208 = vunpack.c.h.b16 %v1119
        %v1209 = vunpack.c.l.b16 %v1120
        %v1210 = vunpack.c.h.b16 %v1120
        %v1211 = vunpack.c.l.b16 %v1121
        %v1212 = vunpack.c.h.b16 %v1121
        %v1213 = vunpack.c.l.b16 %v1122
        %v1214 = vunpack.c.h.b16 %v1122
        %v1215 = vunpack.c.l.b16 %v1123
        %v1216 = vunpack.c.h.b16 %v1123
        %v1217 = vunpack.c.l.b16 %v1124
        %v1218 = vunpack.c.h.b16 %v1124
        %v1219 = vunpack.c.l.b16 %v1125
        %v1220 = vunpack.c.h.b16 %v1125
        %v1221 = vunpack.c.l.b16 %v1126
        %v1222 = vunpack.c.h.b16 %v1126
        %v1223 = vunpack.c.l.b16 %v1127
        %v1224 = vunpack.c.h.b16 %v1127
        %v1225 = vunpack.c.l.b16 %v1128
        %v1226 = vunpack.c.h.b16 %v1128
        %v1227 = vunpack.c.l.b16 %v1129
        %v1228 = vunpack.c.h.b16 %v1129
        %v1229 = vunpack.c.l.b16 %v1130
        %v1230 = vunpack.c.h.b16 %v1130
        %v1231 = vunpack.c.l.b16 %v1131
        %v1232 = vunpack.c.h.b16 %v1131
        %v1233 = vunpack.c.l.b16 %v1132
        %v1234 = vunpack.c.h.b16 %v1132
        %v1235 = vunpack.c.l.b16 %v1133
        %v1236 = vunpack.c.h.b16 %v1133
        %v1237 = vunpack.c.l.b16 %v1134
        %v1238 = vunpack.c.h.b16 %v1134
        %v1239 = vunpack.c.l.b16 %v1135
        %v1240 = vunpack.c.h.b16 %v1135
        %v1241 = vunpack.c.l.b16 %v1136
        %v1242 = vunpack.c.h.b16 %v1136
        %v1243 = vunpack.c.l.b16 %v1137
        %v1244 = vunpack.c.h.b16 %v1137
        %v1245 = vunpack.c.l.b16 %v1138
        %v1246 = vunpack.c.h.b16 %v1138
        %v1247 = vunpack.c.l.b16 %v1139
        %v1248 = vunpack.c.h.b16 %v1139
        %v1249 = vunpack.c.l.b16 %v1140
        %v1250 = vunpack.c.h.b16 %v1140
        %v1251 = vunpack.c.l.b16 %v1141
        %v1252 = vunpack.c.h.b16 %v1141
        %v1253 = vunpack.c.l.b16 %v1142
        %v1254 = vunpack.c.h.b16 %v1142
        %v1255 = vunpack.c.l.b16 %v1143
        %v1256 = vunpack.c.h.b16 %v1143
        %v1257 = vunpack.c.l.b16 %v1144
        %v1258 = vunpack.c.h.b16 %v1144
        %v1259 = vunpack.c.l.b16 %v1145
        %v1260 = vunpack.c.h.b16 %v1145
        %v1261 = vunpack.c.l.b16 %v1146
        %v1262 = vunpack.c.h.b16 %v1146
        %v1263 = vunpack.c.l.b16 %v1147
        %v1264 = vunpack.c.h.b16 %v1147
        %v1265 = vunpack.c.l.b16 %v1148
        %v1266 = vunpack.c.h.b16 %v1148
        %v1267 = vunpack.c.l.b16 %v1149
        %v1268 = vunpack.c.h.b16 %v1149
        %v1269 = vpack.c.b16 %v1207, %v1205
        %v1270 = vpack.c.b16 %v1208, %v1206
        %v1271 = vpack.c.b16 %v1211, %v1209
        %v1272 = vpack.c.b16 %v1212, %v1210
        %v1273 = vpack.c.b16 %v1215, %v1213
        %v1274 = vpack.c.b16 %v1216, %v1214
        %v1275 = vpack.c.b16 %v1219, %v1217
        %v1276 = vpack.c.b16 %v1220, %v1218
        %v1277 = vpack.c.b16 %v1223, %v1221
        %v1278 = vpack.c.b16 %v1224, %v1222
        %v1279 = vpack.c.b16 %v1227, %v1225
        %v1280 = vpack.c.b16 %v1228, %v1226
        %v1281 = vpack.c.b16 %v1231, %v1229
        %v1282 = vpack.c.b16 %v1232, %v1230
        %v1283 = vpack.c.b16 %v1235, %v1233
        %v1284 = vpack.c.b16 %v1236, %v1234
        %v1285 = vpack.c.b16 %v1239, %v1237
        %v1286 = vpack.c.b16 %v1240, %v1238
        %v1287 = vpack.c.b16 %v1243, %v1241
        %v1288 = vpack.c.b16 %v1244, %v1242
        %v1289 = vpack.c.b16 %v1247, %v1245
        %v1290 = vpack.c.b16 %v1248, %v1246
        %v1291 = vpack.c.b16 %v1251, %v1249
        %v1292 = vpack.c.b16 %v1252, %v1250
        %v1293 = vpack.c.b16 %v1255, %v1253
        %v1294 = vpack.c.b16 %v1256, %v1254
        %v1295 = vpack.c.b16 %v1259, %v1257
        %v1296 = vpack.c.b16 %v1260, %v1258
        %v1297 = vpack.c.b16 %v1263, %v1261
        %v1298 = vpack.c.b16 %v1264, %v1262
        %v1299 = vpack.c.b16 %v1267, %v1265
        %v1300 = vpack.c.b16 %v1268, %v1266
        %1333 = vmatprep.subr.bf16.mxu0 %v1270
        %1334 = vmatpush1.bf16.msra.mxu0 %v1269
        %1335 = vmatprep.subr.bf16.mxu0 %v1272
        %1336 = vmatpush1.bf16.msra.mxu0 %v1271
        %1337 = vmatprep.subr.bf16.mxu0 %v1274
        %1338 = vmatpush1.bf16.msra.mxu0 %v1273
        %1339 = vmatprep.subr.bf16.mxu0 %v1276
        %1340 = vmatpush1.bf16.msra.mxu0 %v1275
        %1341 = vmatprep.subr.bf16.mxu0 %v1278
        %1342 = vmatpush1.bf16.msra.mxu0 %v1277
        %1343 = vmatprep.subr.bf16.mxu0 %v1280
        %1344 = vmatpush1.bf16.msra.mxu0 %v1279
        %1345 = vmatprep.subr.bf16.mxu0 %v1282
        %1346 = vmatpush1.bf16.msra.mxu0 %v1281
        %1347 = vmatprep.subr.bf16.mxu0 %v1284
        %1348 = vmatpush1.bf16.msra.mxu0 %v1283
        %1349 = vmatprep.subr.bf16.mxu0 %v1286
        %1350 = vmatpush1.bf16.msra.mxu0 %v1285
        %1351 = vmatprep.subr.bf16.mxu0 %v1288
        %1352 = vmatpush1.bf16.msra.mxu0 %v1287
        %1353 = vmatprep.subr.bf16.mxu0 %v1290
        %1354 = vmatpush1.bf16.msra.mxu0 %v1289
        %1355 = vmatprep.subr.bf16.mxu0 %v1292
        %1356 = vmatpush1.bf16.msra.mxu0 %v1291
        %1357 = vmatprep.subr.bf16.mxu0 %v1294
        %1358 = vmatpush1.bf16.msra.mxu0 %v1293
        %1359 = vmatprep.subr.bf16.mxu0 %v1296
        %1360 = vmatpush1.bf16.msra.mxu0 %v1295
        %1361 = vmatprep.subr.bf16.mxu0 %v1298
        %1362 = vmatpush1.bf16.msra.mxu0 %v1297
        %1363 = vmatprep.subr.bf16.mxu0 %v1300
        %1364 = vmatpush1.bf16.msra.mxu0 %v1299
        %1365 = vmatprep.mubr.bf16.mxu0 %v1162
        %1366 = vmatmul.mubr.bf16.gmra.mrb[0].mxu0 %v1159
        %v1367 = vpop.f32.mrb[0].mxu0
        %v1368 = vadd.f32 0.0, %v1367
        %v1369 = vpop.f32.mrb[0].mxu0
        %v1370 = vadd.f32 0.0, %v1369
        %v1371 = vpop.f32.mrb[0].mxu0
        %v1372 = vadd.f32 0.0, %v1371
        %v1373 = vpop.f32.mrb[0].mxu0
        %v1374 = vadd.f32 0.0, %v1373
        %1375 = vmatprep.mubr.bf16.mxu0 %v1166
        %1376 = vmatmul.mubr.bf16.gmra.mrb[0].mxu0 %v1164
        %v1377 = vpop.f32.mrb[0].mxu0
        %v1378 = vadd.f32 0.0, %v1377
        %v1379 = vpop.f32.mrb[0].mxu0
        %v1380 = vadd.f32 0.0, %v1379
        %v1381 = vpop.f32.mrb[0].mxu0
        %v1382 = vadd.f32 0.0, %v1381
        %v1383 = vpop.f32.mrb[0].mxu0
        %v1384 = vadd.f32 0.0, %v1383
        %1385 = vmatprep.mubr.bf16.mxu0 %v1165
        %1386 = vmatmul.mubr.bf16.gmra.mrb[0].mxu0 %v1163
        %v1387 = vpop.f32.mrb[0].mxu0
        %v1388 = vadd.f32 0.0, %v1387
        %v1389 = vpop.f32.mrb[0].mxu0
        %v1390 = vadd.f32 0.0, %v1389
        %v1391 = vpop.f32.mrb[0].mxu0
        %v1392 = vpop.f32.mrb[0].mxu0
        %1393 = vdwg.mxu0
        %v1394 = vadd.f32 %v1091, %v1368
        %v1395 = vadd.f32 %v1093, %v1370
        %v1396 = vadd.f32 %v1095, %v1372
        %v1397 = vadd.f32 %v1097, %v1374
        %v1398 = vadd.f32 %v1101, %v1378
        %v1399 = vadd.f32 %v1103, %v1380
        %v1400 = vadd.f32 %v1105, %v1382
        %v1401 = vadd.f32 %v1107, %v1384
        %v1402 = vadd.f32 %v1111, %v1388
        %v1403 = vadd.f32 %v1113, %v1390
        %v1405 = vlaneseq
        %v1406 = vshrl.u32 %v1405, 7
        %v1407 = vsub.s32 0, %v1406
        %v1408 = vrot.slane %v400, %v1407
        %v1409 = vlaneseq
        %v1410 = vshrl.u32 %v1409, 7
        %v1411 = vsub.s32 1, %v1410
        %v1412 = vrot.slane %v400, %v1411
        %v1415 = vadd.f32 %v1394, %v1408
        %v1416 = vadd.f32 %v1395, %v1412
        %v1417 = vadd.f32 %v1396, %v1408
        %v1418 = vadd.f32 %v1397, %v1412
        %v1419 = vadd.f32 %v1398, %v1408
        %v1420 = vadd.f32 %v1399, %v1412
        %v1421 = vadd.f32 %v1400, %v1408
        %v1422 = vadd.f32 %v1401, %v1412
        %v1423 = vadd.f32 %v1402, %v1408
        %v1424 = vadd.f32 %v1403, %v1412
        %v1425 = vmax.f32 %v1415, 0.0
        %v1426 = vmax.f32 %v1416, 0.0
        %v1427 = vmax.f32 %v1417, 0.0
        %v1428 = vmax.f32 %v1418, 0.0
        %v1429 = vmax.f32 %v1419, 0.0
        %v1430 = vmax.f32 %v1420, 0.0
        %v1431 = vmax.f32 %v1421, 0.0
        %v1432 = vmax.f32 %v1422, 0.0
        %v1433 = vmax.f32 %v1423, 0.0
        %v1434 = vmax.f32 %v1424, 0.0
        %v1435 = vpack.c.bf16 %v1427, %v1425
        %v1436 = vpack.c.bf16 %v1428, %v1426
        %v1437 = vpack.c.bf16 %v1431, %v1429
        %v1438 = vpack.c.bf16 %v1432, %v1430
        %v1439 = vpack.c.bf16 %v1433, %v1433
        %v1440 = vpack.c.bf16 %v1434, %v1434
        %v1441 = vld [vmem:[%s382] sm:$0xf]
        %v1442 = vld [vmem:[%s382 + $0x4] sm:$0xf]
        %v1443 = vld [vmem:[%s382 + $0x8] sm:$0xf]
        %v1444 = vld [vmem:[%s382 + $0xc] sm:$0xf]
        %v1445 = vld [vmem:[%s382 + $0x10] sm:$0xf]
        %v1446 = vld [vmem:[%s382 + $0x14] sm:$0xf]
        %v1447 = vld [vmem:[%s382 + $0x18] sm:$0xf]
        %v1448 = vld [vmem:[%s382 + $0x1c] sm:$0xf]
        %v1449 = vld [vmem:[%s382 + $0x20] sm:$0xf]
        %v1450 = vld [vmem:[%s382 + $0x24] sm:$0xf]
        %v1451 = vld [vmem:[%s382 + $0x28] sm:$0xf]
        %v1452 = vld [vmem:[%s382 + $0x2c] sm:$0xf]
        %v1453 = vld [vmem:[%s382 + $0x30] sm:$0xf]
        %v1454 = vld [vmem:[%s382 + $0x34] sm:$0xf]
        %v1455 = vld [vmem:[%s382 + $0x38] sm:$0xf]
        %v1456 = vld [vmem:[%s382 + $0x3c] sm:$0xf]
        %v1457 = vld [vmem:[%s382 + $0x40] sm:$0xf]
        %v1458 = vld [vmem:[%s382 + $0x44] sm:$0xf]
        %v1459 = vld [vmem:[%s382 + $0x48] sm:$0xf]
        %v1460 = vld [vmem:[%s382 + $0x4c] sm:$0xf]
        %v1461 = vld [vmem:[%s382 + $0x50] sm:$0xf]
        %v1462 = vld [vmem:[%s382 + $0x54] sm:$0xf]
        %v1463 = vld [vmem:[%s382 + $0x58] sm:$0xf]
        %v1464 = vld [vmem:[%s382 + $0x5c] sm:$0xf]
        %s1465 = scalar_lea.vmem %s382, 96
        %v1466 = vld [vmem:[%s1465] sm:$0xf]
        %v1467 = vld [vmem:[%s1465 + $0x4] sm:$0xf]
        %v1468 = vld [vmem:[%s1465 + $0x8] sm:$0xf]
        %v1469 = vld [vmem:[%s1465 + $0xc] sm:$0xf]
        %v1470 = vld [vmem:[%s1465 + $0x10] sm:$0xf]
        %v1471 = vld [vmem:[%s1465 + $0x14] sm:$0xf]
        %v1472 = vld [vmem:[%s1465 + $0x18] sm:$0xf]
        %v1473 = vld [vmem:[%s1465 + $0x1c] sm:$0xf]
        %v1474 = vld [vmem:[%s1465 + $0x20] sm:$0xf]
        %v1475 = vld [vmem:[%s1465 + $0x24] sm:$0xf]
        %v1476 = vld [vmem:[%s1465 + $0x28] sm:$0xf]
        %v1477 = vld [vmem:[%s1465 + $0x2c] sm:$0xf]
        %v1478 = vld [vmem:[%s1465 + $0x30] sm:$0xf]
        %v1479 = vld [vmem:[%s1465 + $0x34] sm:$0xf]
        %v1480 = vld [vmem:[%s1465 + $0x38] sm:$0xf]
        %v1481 = vld [vmem:[%s1465 + $0x3c] sm:$0xf]
        %v1482 = vld [vmem:[%s1465 + $0x40] sm:$0xf]
        %v1483 = vld [vmem:[%s1465 + $0x44] sm:$0xf]
        %v1484 = vld [vmem:[%s1465 + $0x48] sm:$0xf]
        %v1485 = vld [vmem:[%s1465 + $0x4c] sm:$0xf]
        %v1486 = vld [vmem:[%s1465 + $0x50] sm:$0xf]
        %v1487 = vld [vmem:[%s1465 + $0x54] sm:$0xf]
        %v1488 = vld [vmem:[%s1465 + $0x58] sm:$0xf]
        %v1489 = vld [vmem:[%s1465 + $0x5c] sm:$0xf]
        %v1491 = vshrl.u32 %v1435, 16
        %v1493 = vshll.u32 %v1435, 16
        %v1495 = vrot.slane %v1493, 1
        %v1496 = vor.u32 %v1491, %v1495
        %v1498 = vshll.u32 %v1437, 16
        %v1500 = vrot.slane %v1498, 1
        %v1501 = vsel %vm622, %v1496, %v1500
        %v1503 = vshrl.u32 %v1436, 16
        %v1505 = vshll.u32 %v1436, 16
        %v1507 = vrot.slane %v1505, 1
        %v1508 = vor.u32 %v1503, %v1507
        %v1510 = vshll.u32 %v1438, 16
        %v1512 = vrot.slane %v1510, 1
        %v1513 = vsel %vm622, %v1508, %v1512
        %v1514 = vshrl.u32 %v1437, 16
        %v1516 = vor.u32 %v1514, %v1500
        %v1518 = vshll.u32 %v1439, 16
        %v1520 = vrot.slane %v1518, 1
        %v1521 = vsel %vm622, %v1516, %v1520
        %v1522 = vshrl.u32 %v1438, 16
        %v1524 = vor.u32 %v1522, %v1512
        %v1526 = vshll.u32 %v1440, 16
        %v1528 = vrot.slane %v1526, 1
        %v1529 = vsel %vm622, %v1524, %v1528
        %v1556 = vunpack.c.l.b16 %v1466
        %v1557 = vunpack.c.l.b16 %v1467
        %v1558 = vunpack.c.l.b16 %v1468
        %v1559 = vunpack.c.l.b16 %v1469
        %v1560 = vunpack.c.l.b16 %v1470
        %v1561 = vunpack.c.l.b16 %v1471
        %v1562 = vunpack.c.l.b16 %v1472
        %v1563 = vunpack.c.l.b16 %v1473
        %v1564 = vunpack.c.l.b16 %v1474
        %v1565 = vunpack.c.l.b16 %v1475
        %v1566 = vunpack.c.l.b16 %v1476
        %v1567 = vunpack.c.l.b16 %v1477
        %v1568 = vunpack.c.l.b16 %v1478
        %v1569 = vunpack.c.l.b16 %v1479
        %v1570 = vunpack.c.l.b16 %v1480
        %v1571 = vunpack.c.l.b16 %v1481
        %v1572 = vunpack.c.l.b16 %v1482
        %v1573 = vunpack.c.l.b16 %v1483
        %v1574 = vunpack.c.l.b16 %v1484
        %v1575 = vunpack.c.l.b16 %v1485
        %v1576 = vunpack.c.l.b16 %v1486
        %v1577 = vunpack.c.l.b16 %v1487
        %v1578 = vunpack.c.l.b16 %v1488
        %v1579 = vunpack.c.l.b16 %v1489
        %v1580 = vpack.c.b16 %v1557, %v1556
        %v1581 = vpack.c.b16 %v1559, %v1558
        %v1582 = vpack.c.b16 %v1561, %v1560
        %v1583 = vpack.c.b16 %v1563, %v1562
        %v1584 = vpack.c.b16 %v1565, %v1564
        %v1585 = vpack.c.b16 %v1567, %v1566
        %v1586 = vpack.c.b16 %v1569, %v1568
        %v1587 = vpack.c.b16 %v1571, %v1570
        %v1588 = vpack.c.b16 %v1573, %v1572
        %v1589 = vpack.c.b16 %v1575, %v1574
        %v1590 = vpack.c.b16 %v1577, %v1576
        %v1591 = vpack.c.b16 %v1579, %v1578
        %vm1604 = vcmask 523264
        %v1606 = vsel %vm1604, %v1513, 0
        %v1609 = vsel %vm1604, %v1529, 0
        %1611 = vmatprep.subr.bf16.mxu0 0
        %1612 = vmatpush1.bf16.msra.mxu0 %v1580
        %1613 = vmatprep.subr.bf16.mxu0 0
        %1614 = vmatpush1.bf16.msra.mxu0 %v1581
        %1615 = vmatprep.subr.bf16.mxu0 0
        %1616 = vmatpush1.bf16.msra.mxu0 %v1582
        %1617 = vmatprep.subr.bf16.mxu0 0
        %1618 = vmatpush1.bf16.msra.mxu0 %v1583
        %1619 = vmatprep.subr.bf16.mxu0 0
        %1620 = vmatpush1.bf16.msra.mxu0 %v1584
        %1621 = vmatprep.subr.bf16.mxu0 0
        %1622 = vmatpush1.bf16.msra.mxu0 %v1585
        %1623 = vmatprep.subr.bf16.mxu0 0
        %1624 = vmatpush1.bf16.msra.mxu0 %v1586
        %1625 = vmatprep.subr.bf16.mxu0 0
        %1626 = vmatpush1.bf16.msra.mxu0 %v1587
        %1627 = vmatprep.subr.bf16.mxu0 0
        %1628 = vmatpush1.bf16.msra.mxu0 %v1588
        %1629 = vmatprep.subr.bf16.mxu0 0
        %1630 = vmatpush1.bf16.msra.mxu0 %v1589
        %1631 = vmatprep.subr.bf16.mxu0 0
        %1632 = vmatpush1.bf16.msra.mxu0 %v1590
        %1633 = vmatprep.subr.bf16.mxu0 0
        %1634 = vmatpush1.bf16.msra.mxu0 %v1591
        %1635 = vmatprep.subr.bf16.mxu0 0
        %1636 = vmatpush1.bf16.msra.mxu0 0
        %1637 = vmatprep.subr.bf16.mxu0 0
        %1638 = vmatpush1.bf16.msra.mxu0 0
        %1639 = vmatprep.subr.bf16.mxu0 0
        %1640 = vmatpush1.bf16.msra.mxu0 0
        %1641 = vmatprep.subr.bf16.mxu0 0
        %1642 = vmatpush1.bf16.msra.mxu0 0
        %1643 = vmatprep.mubr.bf16.mxu0 %v1606
        %1644 = vmatmul.mubr.bf16.gmra.mrb[0].mxu0 %v1501
        %v1645 = vpop.f32.mrb[0].mxu0
        %v1646 = vadd.f32 0.0, %v1645
        %v1647 = vpop.f32.mrb[0].mxu0
        %v1648 = vpop.f32.mrb[0].mxu0
        %v1649 = vadd.f32 0.0, %v1648
        %v1650 = vpop.f32.mrb[0].mxu0
        %1651 = vmatprep.mubr.bf16.mxu0 %v1609
        %1652 = vmatmul.mubr.bf16.gmra.mrb[0].mxu0 %v1521
        %v1653 = vpop.f32.mrb[0].mxu0
        %v1654 = vadd.f32 0.0, %v1653
        %v1655 = vpop.f32.mrb[0].mxu0
        %v1656 = vpop.f32.mrb[0].mxu0
        %v1657 = vadd.f32 0.0, %v1656
        %v1658 = vpop.f32.mrb[0].mxu0
        %1659 = vdwg.mxu0
        %v1684 = vunpack.c.l.b16 %v1441
        %v1685 = vunpack.c.l.b16 %v1442
        %v1686 = vunpack.c.l.b16 %v1443
        %v1687 = vunpack.c.l.b16 %v1444
        %v1688 = vunpack.c.l.b16 %v1445
        %v1689 = vunpack.c.l.b16 %v1446
        %v1690 = vunpack.c.l.b16 %v1447
        %v1691 = vunpack.c.l.b16 %v1448
        %v1692 = vunpack.c.l.b16 %v1449
        %v1693 = vunpack.c.l.b16 %v1450
        %v1694 = vunpack.c.l.b16 %v1451
        %v1695 = vunpack.c.l.b16 %v1452
        %v1696 = vunpack.c.l.b16 %v1453
        %v1697 = vunpack.c.l.b16 %v1454
        %v1698 = vunpack.c.l.b16 %v1455
        %v1699 = vunpack.c.l.b16 %v1456
        %v1700 = vunpack.c.l.b16 %v1457
        %v1701 = vunpack.c.l.b16 %v1458
        %v1702 = vunpack.c.l.b16 %v1459
        %v1703 = vunpack.c.l.b16 %v1460
        %v1704 = vunpack.c.l.b16 %v1461
        %v1705 = vunpack.c.l.b16 %v1462
        %v1706 = vunpack.c.l.b16 %v1463
        %v1707 = vunpack.c.l.b16 %v1464
        %v1708 = vpack.c.b16 %v1685, %v1684
        %v1709 = vpack.c.b16 %v1687, %v1686
        %v1710 = vpack.c.b16 %v1689, %v1688
        %v1711 = vpack.c.b16 %v1691, %v1690
        %v1712 = vpack.c.b16 %v1693, %v1692
        %v1713 = vpack.c.b16 %v1695, %v1694
        %v1714 = vpack.c.b16 %v1697, %v1696
        %v1715 = vpack.c.b16 %v1699, %v1698
        %v1716 = vpack.c.b16 %v1701, %v1700
        %v1717 = vpack.c.b16 %v1703, %v1702
        %v1718 = vpack.c.b16 %v1705, %v1704
        %v1719 = vpack.c.b16 %v1707, %v1706
        %v1732 = vsel %vm1604, %v1436, 0
        %v1734 = vsel %vm1604, %v1438, 0
        %1736 = vmatprep.subr.bf16.mxu0 0
        %1737 = vmatpush1.bf16.msra.mxu0 %v1708
        %1738 = vmatprep.subr.bf16.mxu0 0
        %1739 = vmatpush1.bf16.msra.mxu0 %v1709
        %1740 = vmatprep.subr.bf16.mxu0 0
        %1741 = vmatpush1.bf16.msra.mxu0 %v1710
        %1742 = vmatprep.subr.bf16.mxu0 0
        %1743 = vmatpush1.bf16.msra.mxu0 %v1711
        %1744 = vmatprep.subr.bf16.mxu0 0
        %1745 = vmatpush1.bf16.msra.mxu0 %v1712
        %1746 = vmatprep.subr.bf16.mxu0 0
        %1747 = vmatpush1.bf16.msra.mxu0 %v1713
        %1748 = vmatprep.subr.bf16.mxu0 0
        %1749 = vmatpush1.bf16.msra.mxu0 %v1714
        %1750 = vmatprep.subr.bf16.mxu0 0
        %1751 = vmatpush1.bf16.msra.mxu0 %v1715
        %1752 = vmatprep.subr.bf16.mxu0 0
        %1753 = vmatpush1.bf16.msra.mxu0 %v1716
        %1754 = vmatprep.subr.bf16.mxu0 0
        %1755 = vmatpush1.bf16.msra.mxu0 %v1717
        %1756 = vmatprep.subr.bf16.mxu0 0
        %1757 = vmatpush1.bf16.msra.mxu0 %v1718
        %1758 = vmatprep.subr.bf16.mxu0 0
        %1759 = vmatpush1.bf16.msra.mxu0 %v1719
        %1760 = vmatprep.subr.bf16.mxu0 0
        %1761 = vmatpush1.bf16.msra.mxu0 0
        %1762 = vmatprep.subr.bf16.mxu0 0
        %1763 = vmatpush1.bf16.msra.mxu0 0
        %1764 = vmatprep.subr.bf16.mxu0 0
        %1765 = vmatpush1.bf16.msra.mxu0 0
        %1766 = vmatprep.subr.bf16.mxu0 0
        %1767 = vmatpush1.bf16.msra.mxu0 0
        %1768 = vmatprep.mubr.bf16.mxu0 %v1732
        %1769 = vmatmul.mubr.bf16.gmra.mrb[0].mxu0 %v1435
        %v1770 = vpop.f32.mrb[0].mxu0
        %v1771 = vadd.f32 %v1646, %v1770
        %v1772 = vpop.f32.mrb[0].mxu0
        %v1773 = vpop.f32.mrb[0].mxu0
        %v1774 = vadd.f32 %v1649, %v1773
        %v1775 = vpop.f32.mrb[0].mxu0
        %1776 = vmatprep.mubr.bf16.mxu0 %v1734
        %1777 = vmatmul.mubr.bf16.gmra.mrb[0].mxu0 %v1437
        %v1778 = vpop.f32.mrb[0].mxu0
        %v1779 = vadd.f32 %v1654, %v1778
        %v1780 = vpop.f32.mrb[0].mxu0
        %v1781 = vpop.f32.mrb[0].mxu0
        %v1782 = vadd.f32 %v1657, %v1781
        %v1783 = vpop.f32.mrb[0].mxu0
        %1784 = vdwg.mxu0
        %s1785 = scalar_lea.vmem %s382, 192
        %v1786 = vld [vmem:[%s1785] sm:$0xf]
        %v1787 = vld [vmem:[%s1785 + $0x4] sm:$0xf]
        %v1788 = vld [vmem:[%s1785 + $0x8] sm:$0xf]
        %v1789 = vld [vmem:[%s1785 + $0xc] sm:$0xf]
        %v1790 = vld [vmem:[%s1785 + $0x10] sm:$0xf]
        %v1791 = vld [vmem:[%s1785 + $0x14] sm:$0xf]
        %v1792 = vld [vmem:[%s1785 + $0x18] sm:$0xf]
        %v1793 = vld [vmem:[%s1785 + $0x1c] sm:$0xf]
        %v1794 = vld [vmem:[%s1785 + $0x20] sm:$0xf]
        %v1795 = vld [vmem:[%s1785 + $0x24] sm:$0xf]
        %v1796 = vld [vmem:[%s1785 + $0x28] sm:$0xf]
        %v1797 = vld [vmem:[%s1785 + $0x2c] sm:$0xf]
        %v1798 = vld [vmem:[%s1785 + $0x30] sm:$0xf]
        %v1799 = vld [vmem:[%s1785 + $0x34] sm:$0xf]
        %v1800 = vld [vmem:[%s1785 + $0x38] sm:$0xf]
        %v1801 = vld [vmem:[%s1785 + $0x3c] sm:$0xf]
        %v1802 = vld [vmem:[%s1785 + $0x40] sm:$0xf]
        %v1803 = vld [vmem:[%s1785 + $0x44] sm:$0xf]
        %v1804 = vld [vmem:[%s1785 + $0x48] sm:$0xf]
        %v1805 = vld [vmem:[%s1785 + $0x4c] sm:$0xf]
        %v1806 = vld [vmem:[%s1785 + $0x50] sm:$0xf]
        %v1807 = vld [vmem:[%s1785 + $0x54] sm:$0xf]
        %v1808 = vld [vmem:[%s1785 + $0x58] sm:$0xf]
        %v1809 = vld [vmem:[%s1785 + $0x5c] sm:$0xf]
        %v1816 = vrot.slane %v1435, 1
        %v1817 = vrot.slane %v1437, 1
        %v1818 = vsel %vm1156, %v1816, %v1817
        %v1819 = vrot.slane %v1436, 1
        %v1820 = vrot.slane %v1438, 1
        %v1821 = vsel %vm1156, %v1819, %v1820
        %v1822 = vrot.slane %v1439, 1
        %v1823 = vsel %vm1156, %v1817, %v1822
        %v1824 = vrot.slane %v1440, 1
        %v1825 = vsel %vm1156, %v1820, %v1824
        %v1852 = vunpack.c.l.b16 %v1786
        %v1853 = vunpack.c.l.b16 %v1787
        %v1854 = vunpack.c.l.b16 %v1788
        %v1855 = vunpack.c.l.b16 %v1789
        %v1856 = vunpack.c.l.b16 %v1790
        %v1857 = vunpack.c.l.b16 %v1791
        %v1858 = vunpack.c.l.b16 %v1792
        %v1859 = vunpack.c.l.b16 %v1793
        %v1860 = vunpack.c.l.b16 %v1794
        %v1861 = vunpack.c.l.b16 %v1795
        %v1862 = vunpack.c.l.b16 %v1796
        %v1863 = vunpack.c.l.b16 %v1797
        %v1864 = vunpack.c.l.b16 %v1798
        %v1865 = vunpack.c.l.b16 %v1799
        %v1866 = vunpack.c.l.b16 %v1800
        %v1867 = vunpack.c.l.b16 %v1801
        %v1868 = vunpack.c.l.b16 %v1802
        %v1869 = vunpack.c.l.b16 %v1803
        %v1870 = vunpack.c.l.b16 %v1804
        %v1871 = vunpack.c.l.b16 %v1805
        %v1872 = vunpack.c.l.b16 %v1806
        %v1873 = vunpack.c.l.b16 %v1807
        %v1874 = vunpack.c.l.b16 %v1808
        %v1875 = vunpack.c.l.b16 %v1809
        %v1876 = vpack.c.b16 %v1853, %v1852
        %v1877 = vpack.c.b16 %v1855, %v1854
        %v1878 = vpack.c.b16 %v1857, %v1856
        %v1879 = vpack.c.b16 %v1859, %v1858
        %v1880 = vpack.c.b16 %v1861, %v1860
        %v1881 = vpack.c.b16 %v1863, %v1862
        %v1882 = vpack.c.b16 %v1865, %v1864
        %v1883 = vpack.c.b16 %v1867, %v1866
        %v1884 = vpack.c.b16 %v1869, %v1868
        %v1885 = vpack.c.b16 %v1871, %v1870
        %v1886 = vpack.c.b16 %v1873, %v1872
        %v1887 = vpack.c.b16 %v1875, %v1874
        %v1901 = vsel %vm1604, %v1821, 0
        %v1904 = vsel %vm1604, %v1825, 0
        %1906 = vmatprep.subr.bf16.mxu0 0
        %1907 = vmatpush1.bf16.msra.mxu0 %v1876
        %1908 = vmatprep.subr.bf16.mxu0 0
        %1909 = vmatpush1.bf16.msra.mxu0 %v1877
        %1910 = vmatprep.subr.bf16.mxu0 0
        %1911 = vmatpush1.bf16.msra.mxu0 %v1878
        %1912 = vmatprep.subr.bf16.mxu0 0
        %1913 = vmatpush1.bf16.msra.mxu0 %v1879
        %1914 = vmatprep.subr.bf16.mxu0 0
        %1915 = vmatpush1.bf16.msra.mxu0 %v1880
        %1916 = vmatprep.subr.bf16.mxu0 0
        %1917 = vmatpush1.bf16.msra.mxu0 %v1881
        %1918 = vmatprep.subr.bf16.mxu0 0
        %1919 = vmatpush1.bf16.msra.mxu0 %v1882
        %1920 = vmatprep.subr.bf16.mxu0 0
        %1921 = vmatpush1.bf16.msra.mxu0 %v1883
        %1922 = vmatprep.subr.bf16.mxu0 0
        %1923 = vmatpush1.bf16.msra.mxu0 %v1884
        %1924 = vmatprep.subr.bf16.mxu0 0
        %1925 = vmatpush1.bf16.msra.mxu0 %v1885
        %1926 = vmatprep.subr.bf16.mxu0 0
        %1927 = vmatpush1.bf16.msra.mxu0 %v1886
        %1928 = vmatprep.subr.bf16.mxu0 0
        %1929 = vmatpush1.bf16.msra.mxu0 %v1887
        %1930 = vmatprep.subr.bf16.mxu0 0
        %1931 = vmatpush1.bf16.msra.mxu0 0
        %1932 = vmatprep.subr.bf16.mxu0 0
        %1933 = vmatpush1.bf16.msra.mxu0 0
        %1934 = vmatprep.subr.bf16.mxu0 0
        %1935 = vmatpush1.bf16.msra.mxu0 0
        %1936 = vmatprep.subr.bf16.mxu0 0
        %1937 = vmatpush1.bf16.msra.mxu0 0
        %1938 = vmatprep.mubr.bf16.mxu0 %v1901
        %1939 = vmatmul.mubr.bf16.gmra.mrb[0].mxu0 %v1818
        %v1940 = vpop.f32.mrb[0].mxu0
        %v1941 = vadd.f32 0.0, %v1940
        %v1942 = vpop.f32.mrb[0].mxu0
        %v1943 = vpop.f32.mrb[0].mxu0
        %v1944 = vadd.f32 0.0, %v1943
        %v1945 = vpop.f32.mrb[0].mxu0
        %1946 = vmatprep.mubr.bf16.mxu0 %v1904
        %1947 = vmatmul.mubr.bf16.gmra.mrb[0].mxu0 %v1823
        %v1948 = vpop.f32.mrb[0].mxu0
        %v1949 = vadd.f32 0.0, %v1948
        %v1950 = vpop.f32.mrb[0].mxu0
        %v1951 = vpop.f32.mrb[0].mxu0
        %v1952 = vadd.f32 0.0, %v1951
        %v1953 = vpop.f32.mrb[0].mxu0
        %1954 = vdwg.mxu0
        %v1955 = vadd.f32 %v1771, %v1941
        %v1956 = vadd.f32 %v1774, %v1944
        %v1957 = vadd.f32 %v1779, %v1949
        %v1958 = vadd.f32 %v1782, %v1952
        %v1959 = vadd.f32 %v1955, %v401
        %v1960 = vadd.f32 %v1956, %v401
        %v1961 = vadd.f32 %v1957, %v401
        %v1962 = vadd.f32 %v1958, %v401
        %v1963 = vmax.f32 %v1959, 0.0
        %v1964 = vmax.f32 %v1960, 0.0
        %v1965 = vmax.f32 %v1961, 0.0
        %v1966 = vmax.f32 %v1962, 0.0
        %v1967 = vpack.c.bf16 %v1964, %v1963
        %v1968 = vpack.c.bf16 %v1966, %v1965
        %v1970 = vshll.u32 %v1968, 16
        %v1972 = vrot.slane %v1970, 1
        %vm1974 = vcmask 1040384
        %vm1975 = vsmask.f32 256
        %vm1976 = vmand %vm1974, %vm1975
        %v1977 = vsel %vm1976, %v1967, %v1972
        %v1978 = vld [vmem:[%s313] sm:$0xff]
        %v1979 = vld [vmem:[%s313 + $0x8] sm:$0xff]
        %v1980 = vld [vmem:[%s313 + $0x10] sm:$0xff]
        %v1981 = vld [vmem:[%s313 + $0x18] sm:$0xff]
        %v1982 = vld [vmem:[%s313 + $0x20] sm:$0xff]
        %v1983 = vld [vmem:[%s313 + $0x28] sm:$0xff]
        %v1984 = vld [vmem:[%s313 + $0x30] sm:$0xff]
        %v1985 = vld [vmem:[%s313 + $0x38] sm:$0xff]
        %v1986 = vld [vmem:[%s313 + $0x40] sm:$0xff]
        %v1987 = vld [vmem:[%s313 + $0x48] sm:$0xff]
        %v1988 = vld [vmem:[%s313 + $0x50] sm:$0xff]
        %v1989 = vld [vmem:[%s313 + $0x58] sm:$0xff]
        %v1990 = vld [vmem:[%s313 + $0x60] sm:$0xff]
        %v1991 = vld [vmem:[%s313 + $0x68] sm:$0xff]
        %v1992 = vld [vmem:[%s313 + $0x70] sm:$0xff]
        %v1993 = vld [vmem:[%s313 + $0x78] sm:$0xff]
        %v1995 = vshrl.u32 %v1967, 16
        %v1999 = vrot.slane %v1968, 1
        %v2001 = vsel %vm1976, %v1995, %v1999
        %v2002 = vld [vmem:[%s313 + $0x80] sm:$0xff]
        %v2003 = vld [vmem:[%s313 + $0x88] sm:$0xff]
        %v2004 = vld [vmem:[%s313 + $0x90] sm:$0xff]
        %v2005 = vld [vmem:[%s313 + $0x98] sm:$0xff]
        %v2006 = vld [vmem:[%s313 + $0xa0] sm:$0xff]
        %v2007 = vld [vmem:[%s313 + $0xa8] sm:$0xff]
        %v2008 = vld [vmem:[%s313 + $0xb0] sm:$0xff]
        %v2009 = vld [vmem:[%s313 + $0xb8] sm:$0xff]
        %v2010 = vld [vmem:[%s313 + $0xc0] sm:$0xff]
        %v2011 = vld [vmem:[%s313 + $0xc8] sm:$0xff]
        %v2012 = vld [vmem:[%s313 + $0xd0] sm:$0xff]
        %v2013 = vld [vmem:[%s313 + $0xd8] sm:$0xff]
        %v2014 = vld [vmem:[%s313 + $0xe0] sm:$0xff]
        %v2015 = vld [vmem:[%s313 + $0xe8] sm:$0xff]
        %v2016 = vld [vmem:[%s313 + $0xf0] sm:$0xff]
        %v2017 = vld [vmem:[%s313 + $0xf8] sm:$0xff]
        %v2034 = vunpack.c.l.b16 %v2002
        %v2035 = vunpack.c.h.b16 %v2002
        %v2036 = vunpack.c.l.b16 %v2003
        %v2037 = vunpack.c.h.b16 %v2003
        %v2038 = vunpack.c.l.b16 %v2004
        %v2039 = vunpack.c.h.b16 %v2004
        %v2040 = vunpack.c.l.b16 %v2005
        %v2041 = vunpack.c.h.b16 %v2005
        %v2042 = vunpack.c.l.b16 %v2006
        %v2043 = vunpack.c.h.b16 %v2006
        %v2044 = vunpack.c.l.b16 %v2007
        %v2045 = vunpack.c.h.b16 %v2007
        %v2046 = vunpack.c.l.b16 %v2008
        %v2047 = vunpack.c.h.b16 %v2008
        %v2048 = vunpack.c.l.b16 %v2009
        %v2049 = vunpack.c.h.b16 %v2009
        %v2050 = vunpack.c.l.b16 %v2010
        %v2051 = vunpack.c.h.b16 %v2010
        %v2052 = vunpack.c.l.b16 %v2011
        %v2053 = vunpack.c.h.b16 %v2011
        %v2054 = vunpack.c.l.b16 %v2012
        %v2055 = vunpack.c.h.b16 %v2012
        %v2056 = vunpack.c.l.b16 %v2013
        %v2057 = vunpack.c.h.b16 %v2013
        %v2058 = vunpack.c.l.b16 %v2014
        %v2059 = vunpack.c.h.b16 %v2014
        %v2060 = vunpack.c.l.b16 %v2015
        %v2061 = vunpack.c.h.b16 %v2015
        %v2062 = vunpack.c.l.b16 %v2016
        %v2063 = vunpack.c.h.b16 %v2016
        %v2064 = vunpack.c.l.b16 %v2017
        %v2065 = vunpack.c.h.b16 %v2017
        %v2066 = vpack.c.b16 %v2036, %v2034
        %v2067 = vpack.c.b16 %v2037, %v2035
        %v2068 = vpack.c.b16 %v2040, %v2038
        %v2069 = vpack.c.b16 %v2041, %v2039
        %v2070 = vpack.c.b16 %v2044, %v2042
        %v2071 = vpack.c.b16 %v2045, %v2043
        %v2072 = vpack.c.b16 %v2048, %v2046
        %v2073 = vpack.c.b16 %v2049, %v2047
        %v2074 = vpack.c.b16 %v2052, %v2050
        %v2075 = vpack.c.b16 %v2053, %v2051
        %v2076 = vpack.c.b16 %v2056, %v2054
        %v2077 = vpack.c.b16 %v2057, %v2055
        %v2078 = vpack.c.b16 %v2060, %v2058
        %v2079 = vpack.c.b16 %v2061, %v2059
        %v2080 = vpack.c.b16 %v2064, %v2062
        %v2081 = vpack.c.b16 %v2065, %v2063
        %2098 = vmatprep.subr.bf16.mxu0 %v2067
        %2099 = vmatpush1.bf16.msra.mxu0 %v2066
        %2100 = vmatprep.subr.bf16.mxu0 %v2069
        %2101 = vmatpush1.bf16.msra.mxu0 %v2068
        %2102 = vmatprep.subr.bf16.mxu0 %v2071
        %2103 = vmatpush1.bf16.msra.mxu0 %v2070
        %2104 = vmatprep.subr.bf16.mxu0 %v2073
        %2105 = vmatpush1.bf16.msra.mxu0 %v2072
        %2106 = vmatprep.subr.bf16.mxu0 %v2075
        %2107 = vmatpush1.bf16.msra.mxu0 %v2074
        %2108 = vmatprep.subr.bf16.mxu0 %v2077
        %2109 = vmatpush1.bf16.msra.mxu0 %v2076
        %2110 = vmatprep.subr.bf16.mxu0 %v2079
        %2111 = vmatpush1.bf16.msra.mxu0 %v2078
        %2112 = vmatprep.subr.bf16.mxu0 %v2081
        %2113 = vmatpush1.bf16.msra.mxu0 %v2080
        %2114 = vmatprep.subr.bf16.mxu0 0
        %2115 = vmatpush1.bf16.msra.mxu0 0
        %2116 = vmatprep.subr.bf16.mxu0 0
        %2117 = vmatpush1.bf16.msra.mxu0 0
        %2118 = vmatprep.subr.bf16.mxu0 0
        %2119 = vmatpush1.bf16.msra.mxu0 0
        %2120 = vmatprep.subr.bf16.mxu0 0
        %2121 = vmatpush1.bf16.msra.mxu0 0
        %2122 = vmatprep.subr.bf16.mxu0 0
        %2123 = vmatpush1.bf16.msra.mxu0 0
        %2124 = vmatprep.subr.bf16.mxu0 0
        %2125 = vmatpush1.bf16.msra.mxu0 0
        %2126 = vmatprep.subr.bf16.mxu0 0
        %2127 = vmatpush1.bf16.msra.mxu0 0
        %2128 = vmatprep.subr.bf16.mxu0 0
        %2129 = vmatpush1.bf16.msra.mxu0 0
        %2130 = vmatprep.mubr.bf16.mxu0 0
        %2131 = vmatmul.mubr.bf16.gmra.mrb[0].mxu0 %v2001
        %v2132 = vpop.f32.mrb[0].mxu0
        %v2133 = vadd.f32 0.0, %v2132
        %v2134 = vpop.f32.mrb[0].mxu0
        %v2135 = vadd.f32 0.0, %v2134
        %v2136 = vpop.f32.mrb[0].mxu0
        %v2137 = vpop.f32.mrb[0].mxu0
        %2138 = vdwg.mxu0
        %v2155 = vunpack.c.l.b16 %v1978
        %v2156 = vunpack.c.h.b16 %v1978
        %v2157 = vunpack.c.l.b16 %v1979
        %v2158 = vunpack.c.h.b16 %v1979
        %v2159 = vunpack.c.l.b16 %v1980
        %v2160 = vunpack.c.h.b16 %v1980
        %v2161 = vunpack.c.l.b16 %v1981
        %v2162 = vunpack.c.h.b16 %v1981
        %v2163 = vunpack.c.l.b16 %v1982
        %v2164 = vunpack.c.h.b16 %v1982
        %v2165 = vunpack.c.l.b16 %v1983
        %v2166 = vunpack.c.h.b16 %v1983
        %v2167 = vunpack.c.l.b16 %v1984
        %v2168 = vunpack.c.h.b16 %v1984
        %v2169 = vunpack.c.l.b16 %v1985
        %v2170 = vunpack.c.h.b16 %v1985
        %v2171 = vunpack.c.l.b16 %v1986
        %v2172 = vunpack.c.h.b16 %v1986
        %v2173 = vunpack.c.l.b16 %v1987
        %v2174 = vunpack.c.h.b16 %v1987
        %v2175 = vunpack.c.l.b16 %v1988
        %v2176 = vunpack.c.h.b16 %v1988
        %v2177 = vunpack.c.l.b16 %v1989
        %v2178 = vunpack.c.h.b16 %v1989
        %v2179 = vunpack.c.l.b16 %v1990
        %v2180 = vunpack.c.h.b16 %v1990
        %v2181 = vunpack.c.l.b16 %v1991
        %v2182 = vunpack.c.h.b16 %v1991
        %v2183 = vunpack.c.l.b16 %v1992
        %v2184 = vunpack.c.h.b16 %v1992
        %v2185 = vunpack.c.l.b16 %v1993
        %v2186 = vunpack.c.h.b16 %v1993
        %v2187 = vpack.c.b16 %v2157, %v2155
        %v2188 = vpack.c.b16 %v2158, %v2156
        %v2189 = vpack.c.b16 %v2161, %v2159
        %v2190 = vpack.c.b16 %v2162, %v2160
        %v2191 = vpack.c.b16 %v2165, %v2163
        %v2192 = vpack.c.b16 %v2166, %v2164
        %v2193 = vpack.c.b16 %v2169, %v2167
        %v2194 = vpack.c.b16 %v2170, %v2168
        %v2195 = vpack.c.b16 %v2173, %v2171
        %v2196 = vpack.c.b16 %v2174, %v2172
        %v2197 = vpack.c.b16 %v2177, %v2175
        %v2198 = vpack.c.b16 %v2178, %v2176
        %v2199 = vpack.c.b16 %v2181, %v2179
        %v2200 = vpack.c.b16 %v2182, %v2180
        %v2201 = vpack.c.b16 %v2185, %v2183
        %v2202 = vpack.c.b16 %v2186, %v2184
        %2219 = vmatprep.subr.bf16.mxu0 %v2188
        %2220 = vmatpush1.bf16.msra.mxu0 %v2187
        %2221 = vmatprep.subr.bf16.mxu0 %v2190
        %2222 = vmatpush1.bf16.msra.mxu0 %v2189
        %2223 = vmatprep.subr.bf16.mxu0 %v2192
        %2224 = vmatpush1.bf16.msra.mxu0 %v2191
        %2225 = vmatprep.subr.bf16.mxu0 %v2194
        %2226 = vmatpush1.bf16.msra.mxu0 %v2193
        %2227 = vmatprep.subr.bf16.mxu0 %v2196
        %2228 = vmatpush1.bf16.msra.mxu0 %v2195
        %2229 = vmatprep.subr.bf16.mxu0 %v2198
        %2230 = vmatpush1.bf16.msra.mxu0 %v2197
        %2231 = vmatprep.subr.bf16.mxu0 %v2200
        %2232 = vmatpush1.bf16.msra.mxu0 %v2199
        %2233 = vmatprep.subr.bf16.mxu0 %v2202
        %2234 = vmatpush1.bf16.msra.mxu0 %v2201
        %2235 = vmatprep.subr.bf16.mxu0 0
        %2236 = vmatpush1.bf16.msra.mxu0 0
        %2237 = vmatprep.subr.bf16.mxu0 0
        %2238 = vmatpush1.bf16.msra.mxu0 0
        %2239 = vmatprep.subr.bf16.mxu0 0
        %2240 = vmatpush1.bf16.msra.mxu0 0
        %2241 = vmatprep.subr.bf16.mxu0 0
        %2242 = vmatpush1.bf16.msra.mxu0 0
        %2243 = vmatprep.subr.bf16.mxu0 0
        %2244 = vmatpush1.bf16.msra.mxu0 0
        %2245 = vmatprep.subr.bf16.mxu0 0
        %2246 = vmatpush1.bf16.msra.mxu0 0
        %2247 = vmatprep.subr.bf16.mxu0 0
        %2248 = vmatpush1.bf16.msra.mxu0 0
        %2249 = vmatprep.subr.bf16.mxu0 0
        %2250 = vmatpush1.bf16.msra.mxu0 0
        %2251 = vmatprep.mubr.bf16.mxu0 0
        %2252 = vmatmul.mubr.bf16.gmra.mrb[0].mxu0 %v1977
        %v2253 = vpop.f32.mrb[0].mxu0
        %v2254 = vadd.f32 %v2133, %v2253
        %v2255 = vpop.f32.mrb[0].mxu0
        %v2256 = vadd.f32 %v2135, %v2255
        %v2257 = vpop.f32.mrb[0].mxu0
        %v2258 = vpop.f32.mrb[0].mxu0
        %2259 = vdwg.mxu0
        %v2261 = vrot.slane %v1967, 1
        %v2263 = vrot.slane %v1970, 2
        %v2265 = vsel %vm1976, %v2261, %v2263
        %v2266 = vld [vmem:[%s313 + $0x100] sm:$0xff]
        %v2267 = vld [vmem:[%s313 + $0x108] sm:$0xff]
        %v2268 = vld [vmem:[%s313 + $0x110] sm:$0xff]
        %v2269 = vld [vmem:[%s313 + $0x118] sm:$0xff]
        %v2270 = vld [vmem:[%s313 + $0x120] sm:$0xff]
        %v2271 = vld [vmem:[%s313 + $0x128] sm:$0xff]
        %v2272 = vld [vmem:[%s313 + $0x130] sm:$0xff]
        %v2273 = vld [vmem:[%s313 + $0x138] sm:$0xff]
        %v2274 = vld [vmem:[%s313 + $0x140] sm:$0xff]
        %v2275 = vld [vmem:[%s313 + $0x148] sm:$0xff]
        %v2276 = vld [vmem:[%s313 + $0x150] sm:$0xff]
        %v2277 = vld [vmem:[%s313 + $0x158] sm:$0xff]
        %v2278 = vld [vmem:[%s313 + $0x160] sm:$0xff]
        %v2279 = vld [vmem:[%s313 + $0x168] sm:$0xff]
        %v2280 = vld [vmem:[%s313 + $0x170] sm:$0xff]
        %v2281 = vld [vmem:[%s313 + $0x178] sm:$0xff]
        %v2298 = vunpack.c.l.b16 %v2266
        %v2299 = vunpack.c.h.b16 %v2266
        %v2300 = vunpack.c.l.b16 %v2267
        %v2301 = vunpack.c.h.b16 %v2267
        %v2302 = vunpack.c.l.b16 %v2268
        %v2303 = vunpack.c.h.b16 %v2268
        %v2304 = vunpack.c.l.b16 %v2269
        %v2305 = vunpack.c.h.b16 %v2269
        %v2306 = vunpack.c.l.b16 %v2270
        %v2307 = vunpack.c.h.b16 %v2270
        %v2308 = vunpack.c.l.b16 %v2271
        %v2309 = vunpack.c.h.b16 %v2271
        %v2310 = vunpack.c.l.b16 %v2272
        %v2311 = vunpack.c.h.b16 %v2272
        %v2312 = vunpack.c.l.b16 %v2273
        %v2313 = vunpack.c.h.b16 %v2273
        %v2314 = vunpack.c.l.b16 %v2274
        %v2315 = vunpack.c.h.b16 %v2274
        %v2316 = vunpack.c.l.b16 %v2275
        %v2317 = vunpack.c.h.b16 %v2275
        %v2318 = vunpack.c.l.b16 %v2276
        %v2319 = vunpack.c.h.b16 %v2276
        %v2320 = vunpack.c.l.b16 %v2277
        %v2321 = vunpack.c.h.b16 %v2277
        %v2322 = vunpack.c.l.b16 %v2278
        %v2323 = vunpack.c.h.b16 %v2278
        %v2324 = vunpack.c.l.b16 %v2279
        %v2325 = vunpack.c.h.b16 %v2279
        %v2326 = vunpack.c.l.b16 %v2280
        %v2327 = vunpack.c.h.b16 %v2280
        %v2328 = vunpack.c.l.b16 %v2281
        %v2329 = vunpack.c.h.b16 %v2281
        %v2330 = vpack.c.b16 %v2300, %v2298
        %v2331 = vpack.c.b16 %v2301, %v2299
        %v2332 = vpack.c.b16 %v2304, %v2302
        %v2333 = vpack.c.b16 %v2305, %v2303
        %v2334 = vpack.c.b16 %v2308, %v2306
        %v2335 = vpack.c.b16 %v2309, %v2307
        %v2336 = vpack.c.b16 %v2312, %v2310
        %v2337 = vpack.c.b16 %v2313, %v2311
        %v2338 = vpack.c.b16 %v2316, %v2314
        %v2339 = vpack.c.b16 %v2317, %v2315
        %v2340 = vpack.c.b16 %v2320, %v2318
        %v2341 = vpack.c.b16 %v2321, %v2319
        %v2342 = vpack.c.b16 %v2324, %v2322
        %v2343 = vpack.c.b16 %v2325, %v2323
        %v2344 = vpack.c.b16 %v2328, %v2326
        %v2345 = vpack.c.b16 %v2329, %v2327
        %2362 = vmatprep.subr.bf16.mxu0 %v2331
        %2363 = vmatpush1.bf16.msra.mxu0 %v2330
        %2364 = vmatprep.subr.bf16.mxu0 %v2333
        %2365 = vmatpush1.bf16.msra.mxu0 %v2332
        %2366 = vmatprep.subr.bf16.mxu0 %v2335
        %2367 = vmatpush1.bf16.msra.mxu0 %v2334
        %2368 = vmatprep.subr.bf16.mxu0 %v2337
        %2369 = vmatpush1.bf16.msra.mxu0 %v2336
        %2370 = vmatprep.subr.bf16.mxu0 %v2339
        %2371 = vmatpush1.bf16.msra.mxu0 %v2338
        %2372 = vmatprep.subr.bf16.mxu0 %v2341
        %2373 = vmatpush1.bf16.msra.mxu0 %v2340
        %2374 = vmatprep.subr.bf16.mxu0 %v2343
        %2375 = vmatpush1.bf16.msra.mxu0 %v2342
        %2376 = vmatprep.subr.bf16.mxu0 %v2345
        %2377 = vmatpush1.bf16.msra.mxu0 %v2344
        %2378 = vmatprep.subr.bf16.mxu0 0
        %2379 = vmatpush1.bf16.msra.mxu0 0
        %2380 = vmatprep.subr.bf16.mxu0 0
        %2381 = vmatpush1.bf16.msra.mxu0 0
        %2382 = vmatprep.subr.bf16.mxu0 0
        %2383 = vmatpush1.bf16.msra.mxu0 0
        %2384 = vmatprep.subr.bf16.mxu0 0
        %2385 = vmatpush1.bf16.msra.mxu0 0
        %2386 = vmatprep.subr.bf16.mxu0 0
        %2387 = vmatpush1.bf16.msra.mxu0 0
        %2388 = vmatprep.subr.bf16.mxu0 0
        %2389 = vmatpush1.bf16.msra.mxu0 0
        %2390 = vmatprep.subr.bf16.mxu0 0
        %2391 = vmatpush1.bf16.msra.mxu0 0
        %2392 = vmatprep.subr.bf16.mxu0 0
        %2393 = vmatpush1.bf16.msra.mxu0 0
        %2394 = vmatprep.mubr.bf16.mxu0 0
        %2395 = vmatmul.mubr.bf16.gmra.mrb[0].mxu0 %v2265
        %v2396 = vpop.f32.mrb[0].mxu0
        %v2397 = vadd.f32 0.0, %v2396
        %v2398 = vpop.f32.mrb[0].mxu0
        %v2399 = vadd.f32 0.0, %v2398
        %v2400 = vpop.f32.mrb[0].mxu0
        %v2401 = vpop.f32.mrb[0].mxu0
        %2402 = vdwg.mxu0
        %v2403 = vadd.f32 %v2254, %v2397
        %v2404 = vadd.f32 %v2256, %v2399
        %v2405 = vrot.slane %v1995, 1
        %v2407 = vrot.slane %v1968, 2
        %v2409 = vsel %vm1976, %v2405, %v2407
        %v2410 = vld [vmem:[%s313 + $0x180] sm:$0xff]
        %v2411 = vld [vmem:[%s313 + $0x188] sm:$0xff]
        %v2412 = vld [vmem:[%s313 + $0x190] sm:$0xff]
        %v2413 = vld [vmem:[%s313 + $0x198] sm:$0xff]
        %v2414 = vld [vmem:[%s313 + $0x1a0] sm:$0xff]
        %v2415 = vld [vmem:[%s313 + $0x1a8] sm:$0xff]
        %v2416 = vld [vmem:[%s313 + $0x1b0] sm:$0xff]
        %v2417 = vld [vmem:[%s313 + $0x1b8] sm:$0xff]
        %v2418 = vld [vmem:[%s313 + $0x1c0] sm:$0xff]
        %v2419 = vld [vmem:[%s313 + $0x1c8] sm:$0xff]
        %v2420 = vld [vmem:[%s313 + $0x1d0] sm:$0xff]
        %v2421 = vld [vmem:[%s313 + $0x1d8] sm:$0xff]
        %v2422 = vld [vmem:[%s313 + $0x1e0] sm:$0xff]
        %v2423 = vld [vmem:[%s313 + $0x1e8] sm:$0xff]
        %v2424 = vld [vmem:[%s313 + $0x1f0] sm:$0xff]
        %v2425 = vld [vmem:[%s313 + $0x1f8] sm:$0xff]
        %v2442 = vunpack.c.l.b16 %v2410
        %v2443 = vunpack.c.h.b16 %v2410
        %v2444 = vunpack.c.l.b16 %v2411
        %v2445 = vunpack.c.h.b16 %v2411
        %v2446 = vunpack.c.l.b16 %v2412
        %v2447 = vunpack.c.h.b16 %v2412
        %v2448 = vunpack.c.l.b16 %v2413
        %v2449 = vunpack.c.h.b16 %v2413
        %v2450 = vunpack.c.l.b16 %v2414
        %v2451 = vunpack.c.h.b16 %v2414
        %v2452 = vunpack.c.l.b16 %v2415
        %v2453 = vunpack.c.h.b16 %v2415
        %v2454 = vunpack.c.l.b16 %v2416
        %v2455 = vunpack.c.h.b16 %v2416
        %v2456 = vunpack.c.l.b16 %v2417
        %v2457 = vunpack.c.h.b16 %v2417
        %v2458 = vunpack.c.l.b16 %v2418
        %v2459 = vunpack.c.h.b16 %v2418
        %v2460 = vunpack.c.l.b16 %v2419
        %v2461 = vunpack.c.h.b16 %v2419
        %v2462 = vunpack.c.l.b16 %v2420
        %v2463 = vunpack.c.h.b16 %v2420
        %v2464 = vunpack.c.l.b16 %v2421
        %v2465 = vunpack.c.h.b16 %v2421
        %v2466 = vunpack.c.l.b16 %v2422
        %v2467 = vunpack.c.h.b16 %v2422
        %v2468 = vunpack.c.l.b16 %v2423
        %v2469 = vunpack.c.h.b16 %v2423
        %v2470 = vunpack.c.l.b16 %v2424
        %v2471 = vunpack.c.h.b16 %v2424
        %v2472 = vunpack.c.l.b16 %v2425
        %v2473 = vunpack.c.h.b16 %v2425
        %v2474 = vpack.c.b16 %v2444, %v2442
        %v2475 = vpack.c.b16 %v2445, %v2443
        %v2476 = vpack.c.b16 %v2448, %v2446
        %v2477 = vpack.c.b16 %v2449, %v2447
        %v2478 = vpack.c.b16 %v2452, %v2450
        %v2479 = vpack.c.b16 %v2453, %v2451
        %v2480 = vpack.c.b16 %v2456, %v2454
        %v2481 = vpack.c.b16 %v2457, %v2455
        %v2482 = vpack.c.b16 %v2460, %v2458
        %v2483 = vpack.c.b16 %v2461, %v2459
        %v2484 = vpack.c.b16 %v2464, %v2462
        %v2485 = vpack.c.b16 %v2465, %v2463
        %v2486 = vpack.c.b16 %v2468, %v2466
        %v2487 = vpack.c.b16 %v2469, %v2467
        %v2488 = vpack.c.b16 %v2472, %v2470
        %v2489 = vpack.c.b16 %v2473, %v2471
        %2506 = vmatprep.subr.bf16.mxu0 %v2475
        %2507 = vmatpush1.bf16.msra.mxu0 %v2474
        %2508 = vmatprep.subr.bf16.mxu0 %v2477
        %2509 = vmatpush1.bf16.msra.mxu0 %v2476
        %2510 = vmatprep.subr.bf16.mxu0 %v2479
        %2511 = vmatpush1.bf16.msra.mxu0 %v2478
        %2512 = vmatprep.subr.bf16.mxu0 %v2481
        %2513 = vmatpush1.bf16.msra.mxu0 %v2480
        %2514 = vmatprep.subr.bf16.mxu0 %v2483
        %2515 = vmatpush1.bf16.msra.mxu0 %v2482
        %2516 = vmatprep.subr.bf16.mxu0 %v2485
        %2517 = vmatpush1.bf16.msra.mxu0 %v2484
        %2518 = vmatprep.subr.bf16.mxu0 %v2487
        %2519 = vmatpush1.bf16.msra.mxu0 %v2486
        %2520 = vmatprep.subr.bf16.mxu0 %v2489
        %2521 = vmatpush1.bf16.msra.mxu0 %v2488
        %2522 = vmatprep.subr.bf16.mxu0 0
        %2523 = vmatpush1.bf16.msra.mxu0 0
        %2524 = vmatprep.subr.bf16.mxu0 0
        %2525 = vmatpush1.bf16.msra.mxu0 0
        %2526 = vmatprep.subr.bf16.mxu0 0
        %2527 = vmatpush1.bf16.msra.mxu0 0
        %2528 = vmatprep.subr.bf16.mxu0 0
        %2529 = vmatpush1.bf16.msra.mxu0 0
        %2530 = vmatprep.subr.bf16.mxu0 0
        %2531 = vmatpush1.bf16.msra.mxu0 0
        %2532 = vmatprep.subr.bf16.mxu0 0
        %2533 = vmatpush1.bf16.msra.mxu0 0
        %2534 = vmatprep.subr.bf16.mxu0 0
        %2535 = vmatpush1.bf16.msra.mxu0 0
        %2536 = vmatprep.subr.bf16.mxu0 0
        %2537 = vmatpush1.bf16.msra.mxu0 0
        %2538 = vmatprep.mubr.bf16.mxu0 0
        %2539 = vmatmul.mubr.bf16.gmra.mrb[0].mxu0 %v2409
        %v2540 = vpop.f32.mrb[0].mxu0
        %v2541 = vadd.f32 0.0, %v2540
        %v2542 = vpop.f32.mrb[0].mxu0
        %v2543 = vadd.f32 0.0, %v2542
        %v2544 = vpop.f32.mrb[0].mxu0
        %v2545 = vpop.f32.mrb[0].mxu0
        %2546 = vdwg.mxu0
        %v2547 = vadd.f32 %v2403, %v2541
        %v2548 = vadd.f32 %v2404, %v2543
        %v2549 = vrot.slane %v1967, 2
        %v2551 = vrot.slane %v1970, 3
        %v2553 = vsel %vm1976, %v2549, %v2551
        %v2554 = vld [vmem:[%s313 + $0x200] sm:$0xff]
        %v2555 = vld [vmem:[%s313 + $0x208] sm:$0xff]
        %v2556 = vld [vmem:[%s313 + $0x210] sm:$0xff]
        %v2557 = vld [vmem:[%s313 + $0x218] sm:$0xff]
        %v2558 = vld [vmem:[%s313 + $0x220] sm:$0xff]
        %v2559 = vld [vmem:[%s313 + $0x228] sm:$0xff]
        %v2560 = vld [vmem:[%s313 + $0x230] sm:$0xff]
        %v2561 = vld [vmem:[%s313 + $0x238] sm:$0xff]
        %v2562 = vld [vmem:[%s313 + $0x240] sm:$0xff]
        %v2563 = vld [vmem:[%s313 + $0x248] sm:$0xff]
        %v2564 = vld [vmem:[%s313 + $0x250] sm:$0xff]
        %v2565 = vld [vmem:[%s313 + $0x258] sm:$0xff]
        %v2566 = vld [vmem:[%s313 + $0x260] sm:$0xff]
        %v2567 = vld [vmem:[%s313 + $0x268] sm:$0xff]
        %v2568 = vld [vmem:[%s313 + $0x270] sm:$0xff]
        %v2569 = vld [vmem:[%s313 + $0x278] sm:$0xff]
        %v2586 = vunpack.c.l.b16 %v2554
        %v2587 = vunpack.c.h.b16 %v2554
        %v2588 = vunpack.c.l.b16 %v2555
        %v2589 = vunpack.c.h.b16 %v2555
        %v2590 = vunpack.c.l.b16 %v2556
        %v2591 = vunpack.c.h.b16 %v2556
        %v2592 = vunpack.c.l.b16 %v2557
        %v2593 = vunpack.c.h.b16 %v2557
        %v2594 = vunpack.c.l.b16 %v2558
        %v2595 = vunpack.c.h.b16 %v2558
        %v2596 = vunpack.c.l.b16 %v2559
        %v2597 = vunpack.c.h.b16 %v2559
        %v2598 = vunpack.c.l.b16 %v2560
        %v2599 = vunpack.c.h.b16 %v2560
        %v2600 = vunpack.c.l.b16 %v2561
        %v2601 = vunpack.c.h.b16 %v2561
        %v2602 = vunpack.c.l.b16 %v2562
        %v2603 = vunpack.c.h.b16 %v2562
        %v2604 = vunpack.c.l.b16 %v2563
        %v2605 = vunpack.c.h.b16 %v2563
        %v2606 = vunpack.c.l.b16 %v2564
        %v2607 = vunpack.c.h.b16 %v2564
        %v2608 = vunpack.c.l.b16 %v2565
        %v2609 = vunpack.c.h.b16 %v2565
        %v2610 = vunpack.c.l.b16 %v2566
        %v2611 = vunpack.c.h.b16 %v2566
        %v2612 = vunpack.c.l.b16 %v2567
        %v2613 = vunpack.c.h.b16 %v2567
        %v2614 = vunpack.c.l.b16 %v2568
        %v2615 = vunpack.c.h.b16 %v2568
        %v2616 = vunpack.c.l.b16 %v2569
        %v2617 = vunpack.c.h.b16 %v2569
        %v2618 = vpack.c.b16 %v2588, %v2586
        %v2619 = vpack.c.b16 %v2589, %v2587
        %v2620 = vpack.c.b16 %v2592, %v2590
        %v2621 = vpack.c.b16 %v2593, %v2591
        %v2622 = vpack.c.b16 %v2596, %v2594
        %v2623 = vpack.c.b16 %v2597, %v2595
        %v2624 = vpack.c.b16 %v2600, %v2598
        %v2625 = vpack.c.b16 %v2601, %v2599
        %v2626 = vpack.c.b16 %v2604, %v2602
        %v2627 = vpack.c.b16 %v2605, %v2603
        %v2628 = vpack.c.b16 %v2608, %v2606
        %v2629 = vpack.c.b16 %v2609, %v2607
        %v2630 = vpack.c.b16 %v2612, %v2610
        %v2631 = vpack.c.b16 %v2613, %v2611
        %v2632 = vpack.c.b16 %v2616, %v2614
        %v2633 = vpack.c.b16 %v2617, %v2615
        %2650 = vmatprep.subr.bf16.mxu0 %v2619
        %2651 = vmatpush1.bf16.msra.mxu0 %v2618
        %2652 = vmatprep.subr.bf16.mxu0 %v2621
        %2653 = vmatpush1.bf16.msra.mxu0 %v2620
        %2654 = vmatprep.subr.bf16.mxu0 %v2623
        %2655 = vmatpush1.bf16.msra.mxu0 %v2622
        %2656 = vmatprep.subr.bf16.mxu0 %v2625
        %2657 = vmatpush1.bf16.msra.mxu0 %v2624
        %2658 = vmatprep.subr.bf16.mxu0 %v2627
        %2659 = vmatpush1.bf16.msra.mxu0 %v2626
        %2660 = vmatprep.subr.bf16.mxu0 %v2629
        %2661 = vmatpush1.bf16.msra.mxu0 %v2628
        %2662 = vmatprep.subr.bf16.mxu0 %v2631
        %2663 = vmatpush1.bf16.msra.mxu0 %v2630
        %2664 = vmatprep.subr.bf16.mxu0 %v2633
        %2665 = vmatpush1.bf16.msra.mxu0 %v2632
        %2666 = vmatprep.subr.bf16.mxu0 0
        %2667 = vmatpush1.bf16.msra.mxu0 0
        %2668 = vmatprep.subr.bf16.mxu0 0
        %2669 = vmatpush1.bf16.msra.mxu0 0
        %2670 = vmatprep.subr.bf16.mxu0 0
        %2671 = vmatpush1.bf16.msra.mxu0 0
        %2672 = vmatprep.subr.bf16.mxu0 0
        %2673 = vmatpush1.bf16.msra.mxu0 0
        %2674 = vmatprep.subr.bf16.mxu0 0
        %2675 = vmatpush1.bf16.msra.mxu0 0
        %2676 = vmatprep.subr.bf16.mxu0 0
        %2677 = vmatpush1.bf16.msra.mxu0 0
        %2678 = vmatprep.subr.bf16.mxu0 0
        %2679 = vmatpush1.bf16.msra.mxu0 0
        %2680 = vmatprep.subr.bf16.mxu0 0
        %2681 = vmatpush1.bf16.msra.mxu0 0
        %2682 = vmatprep.mubr.bf16.mxu0 0
        %2683 = vmatmul.mubr.bf16.gmra.mrb[0].mxu0 %v2553
        %v2684 = vpop.f32.mrb[0].mxu0
        %v2685 = vadd.f32 0.0, %v2684
        %v2686 = vpop.f32.mrb[0].mxu0
        %v2687 = vadd.f32 0.0, %v2686
        %v2688 = vpop.f32.mrb[0].mxu0
        %v2689 = vpop.f32.mrb[0].mxu0
        %2690 = vdwg.mxu0
        %v2691 = vadd.f32 %v2547, %v2685
        %v2692 = vadd.f32 %v2548, %v2687
        %v2693 = vrot.slane %v1995, 2
        %v2695 = vrot.slane %v1968, 3
        %v2697 = vsel %vm1976, %v2693, %v2695
        %v2698 = vld [vmem:[%s313 + $0x280] sm:$0xff]
        %v2699 = vld [vmem:[%s313 + $0x288] sm:$0xff]
        %v2700 = vld [vmem:[%s313 + $0x290] sm:$0xff]
        %v2701 = vld [vmem:[%s313 + $0x298] sm:$0xff]
        %v2702 = vld [vmem:[%s313 + $0x2a0] sm:$0xff]
        %v2703 = vld [vmem:[%s313 + $0x2a8] sm:$0xff]
        %v2704 = vld [vmem:[%s313 + $0x2b0] sm:$0xff]
        %v2705 = vld [vmem:[%s313 + $0x2b8] sm:$0xff]
        %v2706 = vld [vmem:[%s313 + $0x2c0] sm:$0xff]
        %v2707 = vld [vmem:[%s313 + $0x2c8] sm:$0xff]
        %v2708 = vld [vmem:[%s313 + $0x2d0] sm:$0xff]
        %v2709 = vld [vmem:[%s313 + $0x2d8] sm:$0xff]
        %v2710 = vld [vmem:[%s313 + $0x2e0] sm:$0xff]
        %v2711 = vld [vmem:[%s313 + $0x2e8] sm:$0xff]
        %v2712 = vld [vmem:[%s313 + $0x2f0] sm:$0xff]
        %v2713 = vld [vmem:[%s313 + $0x2f8] sm:$0xff]
        %v2730 = vunpack.c.l.b16 %v2698
        %v2731 = vunpack.c.h.b16 %v2698
        %v2732 = vunpack.c.l.b16 %v2699
        %v2733 = vunpack.c.h.b16 %v2699
        %v2734 = vunpack.c.l.b16 %v2700
        %v2735 = vunpack.c.h.b16 %v2700
        %v2736 = vunpack.c.l.b16 %v2701
        %v2737 = vunpack.c.h.b16 %v2701
        %v2738 = vunpack.c.l.b16 %v2702
        %v2739 = vunpack.c.h.b16 %v2702
        %v2740 = vunpack.c.l.b16 %v2703
        %v2741 = vunpack.c.h.b16 %v2703
        %v2742 = vunpack.c.l.b16 %v2704
        %v2743 = vunpack.c.h.b16 %v2704
        %v2744 = vunpack.c.l.b16 %v2705
        %v2745 = vunpack.c.h.b16 %v2705
        %v2746 = vunpack.c.l.b16 %v2706
        %v2747 = vunpack.c.h.b16 %v2706
        %v2748 = vunpack.c.l.b16 %v2707
        %v2749 = vunpack.c.h.b16 %v2707
        %v2750 = vunpack.c.l.b16 %v2708
        %v2751 = vunpack.c.h.b16 %v2708
        %v2752 = vunpack.c.l.b16 %v2709
        %v2753 = vunpack.c.h.b16 %v2709
        %v2754 = vunpack.c.l.b16 %v2710
        %v2755 = vunpack.c.h.b16 %v2710
        %v2756 = vunpack.c.l.b16 %v2711
        %v2757 = vunpack.c.h.b16 %v2711
        %v2758 = vunpack.c.l.b16 %v2712
        %v2759 = vunpack.c.h.b16 %v2712
        %v2760 = vunpack.c.l.b16 %v2713
        %v2761 = vunpack.c.h.b16 %v2713
        %v2762 = vpack.c.b16 %v2732, %v2730
        %v2763 = vpack.c.b16 %v2733, %v2731
        %v2764 = vpack.c.b16 %v2736, %v2734
        %v2765 = vpack.c.b16 %v2737, %v2735
        %v2766 = vpack.c.b16 %v2740, %v2738
        %v2767 = vpack.c.b16 %v2741, %v2739
        %v2768 = vpack.c.b16 %v2744, %v2742
        %v2769 = vpack.c.b16 %v2745, %v2743
        %v2770 = vpack.c.b16 %v2748, %v2746
        %v2771 = vpack.c.b16 %v2749, %v2747
        %v2772 = vpack.c.b16 %v2752, %v2750
        %v2773 = vpack.c.b16 %v2753, %v2751
        %v2774 = vpack.c.b16 %v2756, %v2754
        %v2775 = vpack.c.b16 %v2757, %v2755
        %v2776 = vpack.c.b16 %v2760, %v2758
        %v2777 = vpack.c.b16 %v2761, %v2759
        %2794 = vmatprep.subr.bf16.mxu0 %v2763
        %2795 = vmatpush1.bf16.msra.mxu0 %v2762
        %2796 = vmatprep.subr.bf16.mxu0 %v2765
        %2797 = vmatpush1.bf16.msra.mxu0 %v2764
        %2798 = vmatprep.subr.bf16.mxu0 %v2767
        %2799 = vmatpush1.bf16.msra.mxu0 %v2766
        %2800 = vmatprep.subr.bf16.mxu0 %v2769
        %2801 = vmatpush1.bf16.msra.mxu0 %v2768
        %2802 = vmatprep.subr.bf16.mxu0 %v2771
        %2803 = vmatpush1.bf16.msra.mxu0 %v2770
        %2804 = vmatprep.subr.bf16.mxu0 %v2773
        %2805 = vmatpush1.bf16.msra.mxu0 %v2772
        %2806 = vmatprep.subr.bf16.mxu0 %v2775
        %2807 = vmatpush1.bf16.msra.mxu0 %v2774
        %2808 = vmatprep.subr.bf16.mxu0 %v2777
        %2809 = vmatpush1.bf16.msra.mxu0 %v2776
        %2810 = vmatprep.subr.bf16.mxu0 0
        %2811 = vmatpush1.bf16.msra.mxu0 0
        %2812 = vmatprep.subr.bf16.mxu0 0
        %2813 = vmatpush1.bf16.msra.mxu0 0
        %2814 = vmatprep.subr.bf16.mxu0 0
        %2815 = vmatpush1.bf16.msra.mxu0 0
        %2816 = vmatprep.subr.bf16.mxu0 0
        %2817 = vmatpush1.bf16.msra.mxu0 0
        %2818 = vmatprep.subr.bf16.mxu0 0
        %2819 = vmatpush1.bf16.msra.mxu0 0
        %2820 = vmatprep.subr.bf16.mxu0 0
        %2821 = vmatpush1.bf16.msra.mxu0 0
        %2822 = vmatprep.subr.bf16.mxu0 0
        %2823 = vmatpush1.bf16.msra.mxu0 0
        %2824 = vmatprep.subr.bf16.mxu0 0
        %2825 = vmatpush1.bf16.msra.mxu0 0
        %2826 = vmatprep.mubr.bf16.mxu0 0
        %2827 = vmatmul.mubr.bf16.gmra.mrb[0].mxu0 %v2697
        %v2828 = vpop.f32.mrb[0].mxu0
        %v2829 = vadd.f32 0.0, %v2828
        %v2830 = vpop.f32.mrb[0].mxu0
        %v2831 = vadd.f32 0.0, %v2830
        %v2832 = vpop.f32.mrb[0].mxu0
        %v2833 = vpop.f32.mrb[0].mxu0
        %2834 = vdwg.mxu0
        %v2835 = vadd.f32 %v2691, %v2829
        %v2836 = vadd.f32 %v2692, %v2831
        %v2837 = vrot.slane %v1967, 3
        %v2839 = vrot.slane %v1970, 4
        %v2841 = vsel %vm1976, %v2837, %v2839
        %v2842 = vld [vmem:[%s313 + $0x300] sm:$0xff]
        %v2843 = vld [vmem:[%s313 + $0x308] sm:$0xff]
        %v2844 = vld [vmem:[%s313 + $0x310] sm:$0xff]
        %v2845 = vld [vmem:[%s313 + $0x318] sm:$0xff]
        %v2846 = vld [vmem:[%s313 + $0x320] sm:$0xff]
        %v2847 = vld [vmem:[%s313 + $0x328] sm:$0xff]
        %v2848 = vld [vmem:[%s313 + $0x330] sm:$0xff]
        %v2849 = vld [vmem:[%s313 + $0x338] sm:$0xff]
        %v2850 = vld [vmem:[%s313 + $0x340] sm:$0xff]
        %v2851 = vld [vmem:[%s313 + $0x348] sm:$0xff]
        %v2852 = vld [vmem:[%s313 + $0x350] sm:$0xff]
        %v2853 = vld [vmem:[%s313 + $0x358] sm:$0xff]
        %v2854 = vld [vmem:[%s313 + $0x360] sm:$0xff]
        %v2855 = vld [vmem:[%s313 + $0x368] sm:$0xff]
        %v2856 = vld [vmem:[%s313 + $0x370] sm:$0xff]
        %v2857 = vld [vmem:[%s313 + $0x378] sm:$0xff]
        %v2874 = vunpack.c.l.b16 %v2842
        %v2875 = vunpack.c.h.b16 %v2842
        %v2876 = vunpack.c.l.b16 %v2843
        %v2877 = vunpack.c.h.b16 %v2843
        %v2878 = vunpack.c.l.b16 %v2844
        %v2879 = vunpack.c.h.b16 %v2844
        %v2880 = vunpack.c.l.b16 %v2845
        %v2881 = vunpack.c.h.b16 %v2845
        %v2882 = vunpack.c.l.b16 %v2846
        %v2883 = vunpack.c.h.b16 %v2846
        %v2884 = vunpack.c.l.b16 %v2847
        %v2885 = vunpack.c.h.b16 %v2847
        %v2886 = vunpack.c.l.b16 %v2848
        %v2887 = vunpack.c.h.b16 %v2848
        %v2888 = vunpack.c.l.b16 %v2849
        %v2889 = vunpack.c.h.b16 %v2849
        %v2890 = vunpack.c.l.b16 %v2850
        %v2891 = vunpack.c.h.b16 %v2850
        %v2892 = vunpack.c.l.b16 %v2851
        %v2893 = vunpack.c.h.b16 %v2851
        %v2894 = vunpack.c.l.b16 %v2852
        %v2895 = vunpack.c.h.b16 %v2852
        %v2896 = vunpack.c.l.b16 %v2853
        %v2897 = vunpack.c.h.b16 %v2853
        %v2898 = vunpack.c.l.b16 %v2854
        %v2899 = vunpack.c.h.b16 %v2854
        %v2900 = vunpack.c.l.b16 %v2855
        %v2901 = vunpack.c.h.b16 %v2855
        %v2902 = vunpack.c.l.b16 %v2856
        %v2903 = vunpack.c.h.b16 %v2856
        %v2904 = vunpack.c.l.b16 %v2857
        %v2905 = vunpack.c.h.b16 %v2857
        %v2906 = vpack.c.b16 %v2876, %v2874
        %v2907 = vpack.c.b16 %v2877, %v2875
        %v2908 = vpack.c.b16 %v2880, %v2878
        %v2909 = vpack.c.b16 %v2881, %v2879
        %v2910 = vpack.c.b16 %v2884, %v2882
        %v2911 = vpack.c.b16 %v2885, %v2883
        %v2912 = vpack.c.b16 %v2888, %v2886
        %v2913 = vpack.c.b16 %v2889, %v2887
        %v2914 = vpack.c.b16 %v2892, %v2890
        %v2915 = vpack.c.b16 %v2893, %v2891
        %v2916 = vpack.c.b16 %v2896, %v2894
        %v2917 = vpack.c.b16 %v2897, %v2895
        %v2918 = vpack.c.b16 %v2900, %v2898
        %v2919 = vpack.c.b16 %v2901, %v2899
        %v2920 = vpack.c.b16 %v2904, %v2902
        %v2921 = vpack.c.b16 %v2905, %v2903
        %2938 = vmatprep.subr.bf16.mxu0 %v2907
        %2939 = vmatpush1.bf16.msra.mxu0 %v2906
        %2940 = vmatprep.subr.bf16.mxu0 %v2909
        %2941 = vmatpush1.bf16.msra.mxu0 %v2908
        %2942 = vmatprep.subr.bf16.mxu0 %v2911
        %2943 = vmatpush1.bf16.msra.mxu0 %v2910
        %2944 = vmatprep.subr.bf16.mxu0 %v2913
        %2945 = vmatpush1.bf16.msra.mxu0 %v2912
        %2946 = vmatprep.subr.bf16.mxu0 %v2915
        %2947 = vmatpush1.bf16.msra.mxu0 %v2914
        %2948 = vmatprep.subr.bf16.mxu0 %v2917
        %2949 = vmatpush1.bf16.msra.mxu0 %v2916
        %2950 = vmatprep.subr.bf16.mxu0 %v2919
        %2951 = vmatpush1.bf16.msra.mxu0 %v2918
        %2952 = vmatprep.subr.bf16.mxu0 %v2921
        %2953 = vmatpush1.bf16.msra.mxu0 %v2920
        %2954 = vmatprep.subr.bf16.mxu0 0
        %2955 = vmatpush1.bf16.msra.mxu0 0
        %2956 = vmatprep.subr.bf16.mxu0 0
        %2957 = vmatpush1.bf16.msra.mxu0 0
        %2958 = vmatprep.subr.bf16.mxu0 0
        %2959 = vmatpush1.bf16.msra.mxu0 0
        %2960 = vmatprep.subr.bf16.mxu0 0
        %2961 = vmatpush1.bf16.msra.mxu0 0
        %2962 = vmatprep.subr.bf16.mxu0 0
        %2963 = vmatpush1.bf16.msra.mxu0 0
        %2964 = vmatprep.subr.bf16.mxu0 0
        %2965 = vmatpush1.bf16.msra.mxu0 0
        %2966 = vmatprep.subr.bf16.mxu0 0
        %2967 = vmatpush1.bf16.msra.mxu0 0
        %2968 = vmatprep.subr.bf16.mxu0 0
        %2969 = vmatpush1.bf16.msra.mxu0 0
        %2970 = vmatprep.mubr.bf16.mxu0 0
        %2971 = vmatmul.mubr.bf16.gmra.mrb[0].mxu0 %v2841
        %v2972 = vpop.f32.mrb[0].mxu0
        %v2973 = vadd.f32 0.0, %v2972
        %v2974 = vpop.f32.mrb[0].mxu0
        %v2975 = vadd.f32 0.0, %v2974
        %v2976 = vpop.f32.mrb[0].mxu0
        %v2977 = vpop.f32.mrb[0].mxu0
        %2978 = vdwg.mxu0
        %v2979 = vadd.f32 %v2835, %v2973
        %v2980 = vadd.f32 %v2836, %v2975
        %v2981 = vrot.slane %v1995, 3
        %v2983 = vrot.slane %v1968, 4
        %v2985 = vsel %vm1976, %v2981, %v2983
        %v2986 = vld [vmem:[%s313 + $0x380] sm:$0xff]
        %v2987 = vld [vmem:[%s313 + $0x388] sm:$0xff]
        %v2988 = vld [vmem:[%s313 + $0x390] sm:$0xff]
        %v2989 = vld [vmem:[%s313 + $0x398] sm:$0xff]
        %v2990 = vld [vmem:[%s313 + $0x3a0] sm:$0xff]
        %v2991 = vld [vmem:[%s313 + $0x3a8] sm:$0xff]
        %v2992 = vld [vmem:[%s313 + $0x3b0] sm:$0xff]
        %v2993 = vld [vmem:[%s313 + $0x3b8] sm:$0xff]
        %v2994 = vld [vmem:[%s313 + $0x3c0] sm:$0xff]
        %v2995 = vld [vmem:[%s313 + $0x3c8] sm:$0xff]
        %v2996 = vld [vmem:[%s313 + $0x3d0] sm:$0xff]
        %v2997 = vld [vmem:[%s313 + $0x3d8] sm:$0xff]
        %v2998 = vld [vmem:[%s313 + $0x3e0] sm:$0xff]
        %v2999 = vld [vmem:[%s313 + $0x3e8] sm:$0xff]
        %v3000 = vld [vmem:[%s313 + $0x3f0] sm:$0xff]
        %v3001 = vld [vmem:[%s313 + $0x3f8] sm:$0xff]
        %v3018 = vunpack.c.l.b16 %v2986
        %v3019 = vunpack.c.h.b16 %v2986
        %v3020 = vunpack.c.l.b16 %v2987
        %v3021 = vunpack.c.h.b16 %v2987
        %v3022 = vunpack.c.l.b16 %v2988
        %v3023 = vunpack.c.h.b16 %v2988
        %v3024 = vunpack.c.l.b16 %v2989
        %v3025 = vunpack.c.h.b16 %v2989
        %v3026 = vunpack.c.l.b16 %v2990
        %v3027 = vunpack.c.h.b16 %v2990
        %v3028 = vunpack.c.l.b16 %v2991
        %v3029 = vunpack.c.h.b16 %v2991
        %v3030 = vunpack.c.l.b16 %v2992
        %v3031 = vunpack.c.h.b16 %v2992
        %v3032 = vunpack.c.l.b16 %v2993
        %v3033 = vunpack.c.h.b16 %v2993
        %v3034 = vunpack.c.l.b16 %v2994
        %v3035 = vunpack.c.h.b16 %v2994
        %v3036 = vunpack.c.l.b16 %v2995
        %v3037 = vunpack.c.h.b16 %v2995
        %v3038 = vunpack.c.l.b16 %v2996
        %v3039 = vunpack.c.h.b16 %v2996
        %v3040 = vunpack.c.l.b16 %v2997
        %v3041 = vunpack.c.h.b16 %v2997
        %v3042 = vunpack.c.l.b16 %v2998
        %v3043 = vunpack.c.h.b16 %v2998
        %v3044 = vunpack.c.l.b16 %v2999
        %v3045 = vunpack.c.h.b16 %v2999
        %v3046 = vunpack.c.l.b16 %v3000
        %v3047 = vunpack.c.h.b16 %v3000
        %v3048 = vunpack.c.l.b16 %v3001
        %v3049 = vunpack.c.h.b16 %v3001
        %v3050 = vpack.c.b16 %v3020, %v3018
        %v3051 = vpack.c.b16 %v3021, %v3019
        %v3052 = vpack.c.b16 %v3024, %v3022
        %v3053 = vpack.c.b16 %v3025, %v3023
        %v3054 = vpack.c.b16 %v3028, %v3026
        %v3055 = vpack.c.b16 %v3029, %v3027
        %v3056 = vpack.c.b16 %v3032, %v3030
        %v3057 = vpack.c.b16 %v3033, %v3031
        %v3058 = vpack.c.b16 %v3036, %v3034
        %v3059 = vpack.c.b16 %v3037, %v3035
        %v3060 = vpack.c.b16 %v3040, %v3038
        %v3061 = vpack.c.b16 %v3041, %v3039
        %v3062 = vpack.c.b16 %v3044, %v3042
        %v3063 = vpack.c.b16 %v3045, %v3043
        %v3064 = vpack.c.b16 %v3048, %v3046
        %v3065 = vpack.c.b16 %v3049, %v3047
        %3082 = vmatprep.subr.bf16.mxu0 %v3051
        %3083 = vmatpush1.bf16.msra.mxu0 %v3050
        %3084 = vmatprep.subr.bf16.mxu0 %v3053
        %3085 = vmatpush1.bf16.msra.mxu0 %v3052
        %3086 = vmatprep.subr.bf16.mxu0 %v3055
        %3087 = vmatpush1.bf16.msra.mxu0 %v3054
        %3088 = vmatprep.subr.bf16.mxu0 %v3057
        %3089 = vmatpush1.bf16.msra.mxu0 %v3056
        %3090 = vmatprep.subr.bf16.mxu0 %v3059
        %3091 = vmatpush1.bf16.msra.mxu0 %v3058
        %3092 = vmatprep.subr.bf16.mxu0 %v3061
        %3093 = vmatpush1.bf16.msra.mxu0 %v3060
        %3094 = vmatprep.subr.bf16.mxu0 %v3063
        %3095 = vmatpush1.bf16.msra.mxu0 %v3062
        %3096 = vmatprep.subr.bf16.mxu0 %v3065
        %3097 = vmatpush1.bf16.msra.mxu0 %v3064
        %3098 = vmatprep.subr.bf16.mxu0 0
        %3099 = vmatpush1.bf16.msra.mxu0 0
        %3100 = vmatprep.subr.bf16.mxu0 0
        %3101 = vmatpush1.bf16.msra.mxu0 0
        %3102 = vmatprep.subr.bf16.mxu0 0
        %3103 = vmatpush1.bf16.msra.mxu0 0
        %3104 = vmatprep.subr.bf16.mxu0 0
        %3105 = vmatpush1.bf16.msra.mxu0 0
        %3106 = vmatprep.subr.bf16.mxu0 0
        %3107 = vmatpush1.bf16.msra.mxu0 0
        %3108 = vmatprep.subr.bf16.mxu0 0
        %3109 = vmatpush1.bf16.msra.mxu0 0
        %3110 = vmatprep.subr.bf16.mxu0 0
        %3111 = vmatpush1.bf16.msra.mxu0 0
        %3112 = vmatprep.subr.bf16.mxu0 0
        %3113 = vmatpush1.bf16.msra.mxu0 0
        %3114 = vmatprep.mubr.bf16.mxu0 0
        %3115 = vmatmul.mubr.bf16.gmra.mrb[0].mxu0 %v2985
        %v3116 = vpop.f32.mrb[0].mxu0
        %v3117 = vadd.f32 0.0, %v3116
        %v3118 = vpop.f32.mrb[0].mxu0
        %v3119 = vadd.f32 0.0, %v3118
        %v3120 = vpop.f32.mrb[0].mxu0
        %v3121 = vpop.f32.mrb[0].mxu0
        %3122 = vdwg.mxu0
        %v3123 = vadd.f32 %v2979, %v3117
        %v3124 = vadd.f32 %v2980, %v3119
        %v3125 = vrot.slane %v1967, 4
        %v3127 = vrot.slane %v1970, 5
        %v3129 = vsel %vm1976, %v3125, %v3127
        %v3130 = vld [vmem:[%s313 + $0x400] sm:$0xff]
        %v3131 = vld [vmem:[%s313 + $0x408] sm:$0xff]
        %v3132 = vld [vmem:[%s313 + $0x410] sm:$0xff]
        %v3133 = vld [vmem:[%s313 + $0x418] sm:$0xff]
        %v3134 = vld [vmem:[%s313 + $0x420] sm:$0xff]
        %v3135 = vld [vmem:[%s313 + $0x428] sm:$0xff]
        %v3136 = vld [vmem:[%s313 + $0x430] sm:$0xff]
        %v3137 = vld [vmem:[%s313 + $0x438] sm:$0xff]
        %v3138 = vld [vmem:[%s313 + $0x440] sm:$0xff]
        %v3139 = vld [vmem:[%s313 + $0x448] sm:$0xff]
        %v3140 = vld [vmem:[%s313 + $0x450] sm:$0xff]
        %v3141 = vld [vmem:[%s313 + $0x458] sm:$0xff]
        %v3142 = vld [vmem:[%s313 + $0x460] sm:$0xff]
        %v3143 = vld [vmem:[%s313 + $0x468] sm:$0xff]
        %v3144 = vld [vmem:[%s313 + $0x470] sm:$0xff]
        %v3145 = vld [vmem:[%s313 + $0x478] sm:$0xff]
        %v3162 = vunpack.c.l.b16 %v3130
        %v3163 = vunpack.c.h.b16 %v3130
        %v3164 = vunpack.c.l.b16 %v3131
        %v3165 = vunpack.c.h.b16 %v3131
        %v3166 = vunpack.c.l.b16 %v3132
        %v3167 = vunpack.c.h.b16 %v3132
        %v3168 = vunpack.c.l.b16 %v3133
        %v3169 = vunpack.c.h.b16 %v3133
        %v3170 = vunpack.c.l.b16 %v3134
        %v3171 = vunpack.c.h.b16 %v3134
        %v3172 = vunpack.c.l.b16 %v3135
        %v3173 = vunpack.c.h.b16 %v3135
        %v3174 = vunpack.c.l.b16 %v3136
        %v3175 = vunpack.c.h.b16 %v3136
        %v3176 = vunpack.c.l.b16 %v3137
        %v3177 = vunpack.c.h.b16 %v3137
        %v3178 = vunpack.c.l.b16 %v3138
        %v3179 = vunpack.c.h.b16 %v3138
        %v3180 = vunpack.c.l.b16 %v3139
        %v3181 = vunpack.c.h.b16 %v3139
        %v3182 = vunpack.c.l.b16 %v3140
        %v3183 = vunpack.c.h.b16 %v3140
        %v3184 = vunpack.c.l.b16 %v3141
        %v3185 = vunpack.c.h.b16 %v3141
        %v3186 = vunpack.c.l.b16 %v3142
        %v3187 = vunpack.c.h.b16 %v3142
        %v3188 = vunpack.c.l.b16 %v3143
        %v3189 = vunpack.c.h.b16 %v3143
        %v3190 = vunpack.c.l.b16 %v3144
        %v3191 = vunpack.c.h.b16 %v3144
        %v3192 = vunpack.c.l.b16 %v3145
        %v3193 = vunpack.c.h.b16 %v3145
        %v3194 = vpack.c.b16 %v3164, %v3162
        %v3195 = vpack.c.b16 %v3165, %v3163
        %v3196 = vpack.c.b16 %v3168, %v3166
        %v3197 = vpack.c.b16 %v3169, %v3167
        %v3198 = vpack.c.b16 %v3172, %v3170
        %v3199 = vpack.c.b16 %v3173, %v3171
        %v3200 = vpack.c.b16 %v3176, %v3174
        %v3201 = vpack.c.b16 %v3177, %v3175
        %v3202 = vpack.c.b16 %v3180, %v3178
        %v3203 = vpack.c.b16 %v3181, %v3179
        %v3204 = vpack.c.b16 %v3184, %v3182
        %v3205 = vpack.c.b16 %v3185, %v3183
        %v3206 = vpack.c.b16 %v3188, %v3186
        %v3207 = vpack.c.b16 %v3189, %v3187
        %v3208 = vpack.c.b16 %v3192, %v3190
        %v3209 = vpack.c.b16 %v3193, %v3191
        %3226 = vmatprep.subr.bf16.mxu0 %v3195
        %3227 = vmatpush1.bf16.msra.mxu0 %v3194
        %3228 = vmatprep.subr.bf16.mxu0 %v3197
        %3229 = vmatpush1.bf16.msra.mxu0 %v3196
        %3230 = vmatprep.subr.bf16.mxu0 %v3199
        %3231 = vmatpush1.bf16.msra.mxu0 %v3198
        %3232 = vmatprep.subr.bf16.mxu0 %v3201
        %3233 = vmatpush1.bf16.msra.mxu0 %v3200
        %3234 = vmatprep.subr.bf16.mxu0 %v3203
        %3235 = vmatpush1.bf16.msra.mxu0 %v3202
        %3236 = vmatprep.subr.bf16.mxu0 %v3205
        %3237 = vmatpush1.bf16.msra.mxu0 %v3204
        %3238 = vmatprep.subr.bf16.mxu0 %v3207
        %3239 = vmatpush1.bf16.msra.mxu0 %v3206
        %3240 = vmatprep.subr.bf16.mxu0 %v3209
        %3241 = vmatpush1.bf16.msra.mxu0 %v3208
        %3242 = vmatprep.subr.bf16.mxu0 0
        %3243 = vmatpush1.bf16.msra.mxu0 0
        %3244 = vmatprep.subr.bf16.mxu0 0
        %3245 = vmatpush1.bf16.msra.mxu0 0
        %3246 = vmatprep.subr.bf16.mxu0 0
        %3247 = vmatpush1.bf16.msra.mxu0 0
        %3248 = vmatprep.subr.bf16.mxu0 0
        %3249 = vmatpush1.bf16.msra.mxu0 0
        %3250 = vmatprep.subr.bf16.mxu0 0
        %3251 = vmatpush1.bf16.msra.mxu0 0
        %3252 = vmatprep.subr.bf16.mxu0 0
        %3253 = vmatpush1.bf16.msra.mxu0 0
        %3254 = vmatprep.subr.bf16.mxu0 0
        %3255 = vmatpush1.bf16.msra.mxu0 0
        %3256 = vmatprep.subr.bf16.mxu0 0
        %3257 = vmatpush1.bf16.msra.mxu0 0
        %3258 = vmatprep.mubr.bf16.mxu0 0
        %3259 = vmatmul.mubr.bf16.gmra.mrb[0].mxu0 %v3129
        %v3260 = vpop.f32.mrb[0].mxu0
        %v3261 = vadd.f32 0.0, %v3260
        %v3262 = vpop.f32.mrb[0].mxu0
        %v3263 = vadd.f32 0.0, %v3262
        %v3264 = vpop.f32.mrb[0].mxu0
        %v3265 = vpop.f32.mrb[0].mxu0
        %3266 = vdwg.mxu0
        %v3267 = vadd.f32 %v3123, %v3261
        %v3268 = vadd.f32 %v3124, %v3263
        %v3269 = vrot.slane %v1995, 4
        %v3271 = vrot.slane %v1968, 5
        %v3273 = vsel %vm1976, %v3269, %v3271
        %v3274 = vld [vmem:[%s313 + $0x480] sm:$0xff]
        %v3275 = vld [vmem:[%s313 + $0x488] sm:$0xff]
        %v3276 = vld [vmem:[%s313 + $0x490] sm:$0xff]
        %v3277 = vld [vmem:[%s313 + $0x498] sm:$0xff]
        %v3278 = vld [vmem:[%s313 + $0x4a0] sm:$0xff]
        %v3279 = vld [vmem:[%s313 + $0x4a8] sm:$0xff]
        %v3280 = vld [vmem:[%s313 + $0x4b0] sm:$0xff]
        %v3281 = vld [vmem:[%s313 + $0x4b8] sm:$0xff]
        %v3282 = vld [vmem:[%s313 + $0x4c0] sm:$0xff]
        %v3283 = vld [vmem:[%s313 + $0x4c8] sm:$0xff]
        %v3284 = vld [vmem:[%s313 + $0x4d0] sm:$0xff]
        %v3285 = vld [vmem:[%s313 + $0x4d8] sm:$0xff]
        %v3286 = vld [vmem:[%s313 + $0x4e0] sm:$0xff]
        %v3287 = vld [vmem:[%s313 + $0x4e8] sm:$0xff]
        %v3288 = vld [vmem:[%s313 + $0x4f0] sm:$0xff]
        %v3289 = vld [vmem:[%s313 + $0x4f8] sm:$0xff]
        %v3306 = vunpack.c.l.b16 %v3274
        %v3307 = vunpack.c.h.b16 %v3274
        %v3308 = vunpack.c.l.b16 %v3275
        %v3309 = vunpack.c.h.b16 %v3275
        %v3310 = vunpack.c.l.b16 %v3276
        %v3311 = vunpack.c.h.b16 %v3276
        %v3312 = vunpack.c.l.b16 %v3277
        %v3313 = vunpack.c.h.b16 %v3277
        %v3314 = vunpack.c.l.b16 %v3278
        %v3315 = vunpack.c.h.b16 %v3278
        %v3316 = vunpack.c.l.b16 %v3279
        %v3317 = vunpack.c.h.b16 %v3279
        %v3318 = vunpack.c.l.b16 %v3280
        %v3319 = vunpack.c.h.b16 %v3280
        %v3320 = vunpack.c.l.b16 %v3281
        %v3321 = vunpack.c.h.b16 %v3281
        %v3322 = vunpack.c.l.b16 %v3282
        %v3323 = vunpack.c.h.b16 %v3282
        %v3324 = vunpack.c.l.b16 %v3283
        %v3325 = vunpack.c.h.b16 %v3283
        %v3326 = vunpack.c.l.b16 %v3284
        %v3327 = vunpack.c.h.b16 %v3284
        %v3328 = vunpack.c.l.b16 %v3285
        %v3329 = vunpack.c.h.b16 %v3285
        %v3330 = vunpack.c.l.b16 %v3286
        %v3331 = vunpack.c.h.b16 %v3286
        %v3332 = vunpack.c.l.b16 %v3287
        %v3333 = vunpack.c.h.b16 %v3287
        %v3334 = vunpack.c.l.b16 %v3288
        %v3335 = vunpack.c.h.b16 %v3288
        %v3336 = vunpack.c.l.b16 %v3289
        %v3337 = vunpack.c.h.b16 %v3289
        %v3338 = vpack.c.b16 %v3308, %v3306
        %v3339 = vpack.c.b16 %v3309, %v3307
        %v3340 = vpack.c.b16 %v3312, %v3310
        %v3341 = vpack.c.b16 %v3313, %v3311
        %v3342 = vpack.c.b16 %v3316, %v3314
        %v3343 = vpack.c.b16 %v3317, %v3315
        %v3344 = vpack.c.b16 %v3320, %v3318
        %v3345 = vpack.c.b16 %v3321, %v3319
        %v3346 = vpack.c.b16 %v3324, %v3322
        %v3347 = vpack.c.b16 %v3325, %v3323
        %v3348 = vpack.c.b16 %v3328, %v3326
        %v3349 = vpack.c.b16 %v3329, %v3327
        %v3350 = vpack.c.b16 %v3332, %v3330
        %v3351 = vpack.c.b16 %v3333, %v3331
        %v3352 = vpack.c.b16 %v3336, %v3334
        %v3353 = vpack.c.b16 %v3337, %v3335
        %3370 = vmatprep.subr.bf16.mxu0 %v3339
        %3371 = vmatpush1.bf16.msra.mxu0 %v3338
        %3372 = vmatprep.subr.bf16.mxu0 %v3341
        %3373 = vmatpush1.bf16.msra.mxu0 %v3340
        %3374 = vmatprep.subr.bf16.mxu0 %v3343
        %3375 = vmatpush1.bf16.msra.mxu0 %v3342
        %3376 = vmatprep.subr.bf16.mxu0 %v3345
        %3377 = vmatpush1.bf16.msra.mxu0 %v3344
        %3378 = vmatprep.subr.bf16.mxu0 %v3347
        %3379 = vmatpush1.bf16.msra.mxu0 %v3346
        %3380 = vmatprep.subr.bf16.mxu0 %v3349
        %3381 = vmatpush1.bf16.msra.mxu0 %v3348
        %3382 = vmatprep.subr.bf16.mxu0 %v3351
        %3383 = vmatpush1.bf16.msra.mxu0 %v3350
        %3384 = vmatprep.subr.bf16.mxu0 %v3353
        %3385 = vmatpush1.bf16.msra.mxu0 %v3352
        %3386 = vmatprep.subr.bf16.mxu0 0
        %3387 = vmatpush1.bf16.msra.mxu0 0
        %3388 = vmatprep.subr.bf16.mxu0 0
        %3389 = vmatpush1.bf16.msra.mxu0 0
        %3390 = vmatprep.subr.bf16.mxu0 0
        %3391 = vmatpush1.bf16.msra.mxu0 0
        %3392 = vmatprep.subr.bf16.mxu0 0
        %3393 = vmatpush1.bf16.msra.mxu0 0
        %3394 = vmatprep.subr.bf16.mxu0 0
        %3395 = vmatpush1.bf16.msra.mxu0 0
        %3396 = vmatprep.subr.bf16.mxu0 0
        %3397 = vmatpush1.bf16.msra.mxu0 0
        %3398 = vmatprep.subr.bf16.mxu0 0
        %3399 = vmatpush1.bf16.msra.mxu0 0
        %3400 = vmatprep.subr.bf16.mxu0 0
        %3401 = vmatpush1.bf16.msra.mxu0 0
        %3402 = vmatprep.mubr.bf16.mxu0 0
        %3403 = vmatmul.mubr.bf16.gmra.mrb[0].mxu0 %v3273
        %v3404 = vpop.f32.mrb[0].mxu0
        %v3405 = vadd.f32 0.0, %v3404
        %v3406 = vpop.f32.mrb[0].mxu0
        %v3407 = vadd.f32 0.0, %v3406
        %v3408 = vpop.f32.mrb[0].mxu0
        %v3409 = vpop.f32.mrb[0].mxu0
        %3410 = vdwg.mxu0
        %v3411 = vadd.f32 %v3267, %v3405
        %v3412 = vadd.f32 %v3268, %v3407
        %v3413 = vrot.slane %v1967, 5
        %v3415 = vrot.slane %v1970, 6
        %v3417 = vsel %vm1976, %v3413, %v3415
        %v3418 = vld [vmem:[%s313 + $0x500] sm:$0xff]
        %v3419 = vld [vmem:[%s313 + $0x508] sm:$0xff]
        %v3420 = vld [vmem:[%s313 + $0x510] sm:$0xff]
        %v3421 = vld [vmem:[%s313 + $0x518] sm:$0xff]
        %v3422 = vld [vmem:[%s313 + $0x520] sm:$0xff]
        %v3423 = vld [vmem:[%s313 + $0x528] sm:$0xff]
        %v3424 = vld [vmem:[%s313 + $0x530] sm:$0xff]
        %v3425 = vld [vmem:[%s313 + $0x538] sm:$0xff]
        %v3426 = vld [vmem:[%s313 + $0x540] sm:$0xff]
        %v3427 = vld [vmem:[%s313 + $0x548] sm:$0xff]
        %v3428 = vld [vmem:[%s313 + $0x550] sm:$0xff]
        %v3429 = vld [vmem:[%s313 + $0x558] sm:$0xff]
        %v3430 = vld [vmem:[%s313 + $0x560] sm:$0xff]
        %v3431 = vld [vmem:[%s313 + $0x568] sm:$0xff]
        %v3432 = vld [vmem:[%s313 + $0x570] sm:$0xff]
        %v3433 = vld [vmem:[%s313 + $0x578] sm:$0xff]
        %v3450 = vunpack.c.l.b16 %v3418
        %v3451 = vunpack.c.h.b16 %v3418
        %v3452 = vunpack.c.l.b16 %v3419
        %v3453 = vunpack.c.h.b16 %v3419
        %v3454 = vunpack.c.l.b16 %v3420
        %v3455 = vunpack.c.h.b16 %v3420
        %v3456 = vunpack.c.l.b16 %v3421
        %v3457 = vunpack.c.h.b16 %v3421
        %v3458 = vunpack.c.l.b16 %v3422
        %v3459 = vunpack.c.h.b16 %v3422
        %v3460 = vunpack.c.l.b16 %v3423
        %v3461 = vunpack.c.h.b16 %v3423
        %v3462 = vunpack.c.l.b16 %v3424
        %v3463 = vunpack.c.h.b16 %v3424
        %v3464 = vunpack.c.l.b16 %v3425
        %v3465 = vunpack.c.h.b16 %v3425
        %v3466 = vunpack.c.l.b16 %v3426
        %v3467 = vunpack.c.h.b16 %v3426
        %v3468 = vunpack.c.l.b16 %v3427
        %v3469 = vunpack.c.h.b16 %v3427
        %v3470 = vunpack.c.l.b16 %v3428
        %v3471 = vunpack.c.h.b16 %v3428
        %v3472 = vunpack.c.l.b16 %v3429
        %v3473 = vunpack.c.h.b16 %v3429
        %v3474 = vunpack.c.l.b16 %v3430
        %v3475 = vunpack.c.h.b16 %v3430
        %v3476 = vunpack.c.l.b16 %v3431
        %v3477 = vunpack.c.h.b16 %v3431
        %v3478 = vunpack.c.l.b16 %v3432
        %v3479 = vunpack.c.h.b16 %v3432
        %v3480 = vunpack.c.l.b16 %v3433
        %v3481 = vunpack.c.h.b16 %v3433
        %v3482 = vpack.c.b16 %v3452, %v3450
        %v3483 = vpack.c.b16 %v3453, %v3451
        %v3484 = vpack.c.b16 %v3456, %v3454
        %v3485 = vpack.c.b16 %v3457, %v3455
        %v3486 = vpack.c.b16 %v3460, %v3458
        %v3487 = vpack.c.b16 %v3461, %v3459
        %v3488 = vpack.c.b16 %v3464, %v3462
        %v3489 = vpack.c.b16 %v3465, %v3463
        %v3490 = vpack.c.b16 %v3468, %v3466
        %v3491 = vpack.c.b16 %v3469, %v3467
        %v3492 = vpack.c.b16 %v3472, %v3470
        %v3493 = vpack.c.b16 %v3473, %v3471
        %v3494 = vpack.c.b16 %v3476, %v3474
        %v3495 = vpack.c.b16 %v3477, %v3475
        %v3496 = vpack.c.b16 %v3480, %v3478
        %v3497 = vpack.c.b16 %v3481, %v3479
        %3514 = vmatprep.subr.bf16.mxu0 %v3483
        %3515 = vmatpush1.bf16.msra.mxu0 %v3482
        %3516 = vmatprep.subr.bf16.mxu0 %v3485
        %3517 = vmatpush1.bf16.msra.mxu0 %v3484
        %3518 = vmatprep.subr.bf16.mxu0 %v3487
        %3519 = vmatpush1.bf16.msra.mxu0 %v3486
        %3520 = vmatprep.subr.bf16.mxu0 %v3489
        %3521 = vmatpush1.bf16.msra.mxu0 %v3488
        %3522 = vmatprep.subr.bf16.mxu0 %v3491
        %3523 = vmatpush1.bf16.msra.mxu0 %v3490
        %3524 = vmatprep.subr.bf16.mxu0 %v3493
        %3525 = vmatpush1.bf16.msra.mxu0 %v3492
        %3526 = vmatprep.subr.bf16.mxu0 %v3495
        %3527 = vmatpush1.bf16.msra.mxu0 %v3494
        %3528 = vmatprep.subr.bf16.mxu0 %v3497
        %3529 = vmatpush1.bf16.msra.mxu0 %v3496
        %3530 = vmatprep.subr.bf16.mxu0 0
        %3531 = vmatpush1.bf16.msra.mxu0 0
        %3532 = vmatprep.subr.bf16.mxu0 0
        %3533 = vmatpush1.bf16.msra.mxu0 0
        %3534 = vmatprep.subr.bf16.mxu0 0
        %3535 = vmatpush1.bf16.msra.mxu0 0
        %3536 = vmatprep.subr.bf16.mxu0 0
        %3537 = vmatpush1.bf16.msra.mxu0 0
        %3538 = vmatprep.subr.bf16.mxu0 0
        %3539 = vmatpush1.bf16.msra.mxu0 0
        %3540 = vmatprep.subr.bf16.mxu0 0
        %3541 = vmatpush1.bf16.msra.mxu0 0
        %3542 = vmatprep.subr.bf16.mxu0 0
        %3543 = vmatpush1.bf16.msra.mxu0 0
        %3544 = vmatprep.subr.bf16.mxu0 0
        %3545 = vmatpush1.bf16.msra.mxu0 0
        %3546 = vmatprep.mubr.bf16.mxu0 0
        %3547 = vmatmul.mubr.bf16.gmra.mrb[0].mxu0 %v3417
        %v3548 = vpop.f32.mrb[0].mxu0
        %v3549 = vadd.f32 0.0, %v3548
        %v3550 = vpop.f32.mrb[0].mxu0
        %v3551 = vadd.f32 0.0, %v3550
        %v3552 = vpop.f32.mrb[0].mxu0
        %v3553 = vpop.f32.mrb[0].mxu0
        %3554 = vdwg.mxu0
        %v3555 = vadd.f32 %v3411, %v3549
        %v3556 = vadd.f32 %v3412, %v3551
        %v3557 = vrot.slane %v1995, 5
        %v3559 = vrot.slane %v1968, 6
        %v3561 = vsel %vm1976, %v3557, %v3559
        %v3562 = vld [vmem:[%s313 + $0x580] sm:$0xff]
        %v3563 = vld [vmem:[%s313 + $0x588] sm:$0xff]
        %v3564 = vld [vmem:[%s313 + $0x590] sm:$0xff]
        %v3565 = vld [vmem:[%s313 + $0x598] sm:$0xff]
        %v3566 = vld [vmem:[%s313 + $0x5a0] sm:$0xff]
        %v3567 = vld [vmem:[%s313 + $0x5a8] sm:$0xff]
        %v3568 = vld [vmem:[%s313 + $0x5b0] sm:$0xff]
        %v3569 = vld [vmem:[%s313 + $0x5b8] sm:$0xff]
        %v3570 = vld [vmem:[%s313 + $0x5c0] sm:$0xff]
        %v3571 = vld [vmem:[%s313 + $0x5c8] sm:$0xff]
        %v3572 = vld [vmem:[%s313 + $0x5d0] sm:$0xff]
        %v3573 = vld [vmem:[%s313 + $0x5d8] sm:$0xff]
        %v3574 = vld [vmem:[%s313 + $0x5e0] sm:$0xff]
        %v3575 = vld [vmem:[%s313 + $0x5e8] sm:$0xff]
        %v3576 = vld [vmem:[%s313 + $0x5f0] sm:$0xff]
        %v3577 = vld [vmem:[%s313 + $0x5f8] sm:$0xff]
        %v3594 = vunpack.c.l.b16 %v3562
        %v3595 = vunpack.c.h.b16 %v3562
        %v3596 = vunpack.c.l.b16 %v3563
        %v3597 = vunpack.c.h.b16 %v3563
        %v3598 = vunpack.c.l.b16 %v3564
        %v3599 = vunpack.c.h.b16 %v3564
        %v3600 = vunpack.c.l.b16 %v3565
        %v3601 = vunpack.c.h.b16 %v3565
        %v3602 = vunpack.c.l.b16 %v3566
        %v3603 = vunpack.c.h.b16 %v3566
        %v3604 = vunpack.c.l.b16 %v3567
        %v3605 = vunpack.c.h.b16 %v3567
        %v3606 = vunpack.c.l.b16 %v3568
        %v3607 = vunpack.c.h.b16 %v3568
        %v3608 = vunpack.c.l.b16 %v3569
        %v3609 = vunpack.c.h.b16 %v3569
        %v3610 = vunpack.c.l.b16 %v3570
        %v3611 = vunpack.c.h.b16 %v3570
        %v3612 = vunpack.c.l.b16 %v3571
        %v3613 = vunpack.c.h.b16 %v3571
        %v3614 = vunpack.c.l.b16 %v3572
        %v3615 = vunpack.c.h.b16 %v3572
        %v3616 = vunpack.c.l.b16 %v3573
        %v3617 = vunpack.c.h.b16 %v3573
        %v3618 = vunpack.c.l.b16 %v3574
        %v3619 = vunpack.c.h.b16 %v3574
        %v3620 = vunpack.c.l.b16 %v3575
        %v3621 = vunpack.c.h.b16 %v3575
        %v3622 = vunpack.c.l.b16 %v3576
        %v3623 = vunpack.c.h.b16 %v3576
        %v3624 = vunpack.c.l.b16 %v3577
        %v3625 = vunpack.c.h.b16 %v3577
        %v3626 = vpack.c.b16 %v3596, %v3594
        %v3627 = vpack.c.b16 %v3597, %v3595
        %v3628 = vpack.c.b16 %v3600, %v3598
        %v3629 = vpack.c.b16 %v3601, %v3599
        %v3630 = vpack.c.b16 %v3604, %v3602
        %v3631 = vpack.c.b16 %v3605, %v3603
        %v3632 = vpack.c.b16 %v3608, %v3606
        %v3633 = vpack.c.b16 %v3609, %v3607
        %v3634 = vpack.c.b16 %v3612, %v3610
        %v3635 = vpack.c.b16 %v3613, %v3611
        %v3636 = vpack.c.b16 %v3616, %v3614
        %v3637 = vpack.c.b16 %v3617, %v3615
        %v3638 = vpack.c.b16 %v3620, %v3618
        %v3639 = vpack.c.b16 %v3621, %v3619
        %v3640 = vpack.c.b16 %v3624, %v3622
        %v3641 = vpack.c.b16 %v3625, %v3623
        %3658 = vmatprep.subr.bf16.mxu0 %v3627
        %3659 = vmatpush1.bf16.msra.mxu0 %v3626
        %3660 = vmatprep.subr.bf16.mxu0 %v3629
        %3661 = vmatpush1.bf16.msra.mxu0 %v3628
        %3662 = vmatprep.subr.bf16.mxu0 %v3631
        %3663 = vmatpush1.bf16.msra.mxu0 %v3630
        %3664 = vmatprep.subr.bf16.mxu0 %v3633
        %3665 = vmatpush1.bf16.msra.mxu0 %v3632
        %3666 = vmatprep.subr.bf16.mxu0 %v3635
        %3667 = vmatpush1.bf16.msra.mxu0 %v3634
        %3668 = vmatprep.subr.bf16.mxu0 %v3637
        %3669 = vmatpush1.bf16.msra.mxu0 %v3636
        %3670 = vmatprep.subr.bf16.mxu0 %v3639
        %3671 = vmatpush1.bf16.msra.mxu0 %v3638
        %3672 = vmatprep.subr.bf16.mxu0 %v3641
        %3673 = vmatpush1.bf16.msra.mxu0 %v3640
        %3674 = vmatprep.subr.bf16.mxu0 0
        %3675 = vmatpush1.bf16.msra.mxu0 0
        %3676 = vmatprep.subr.bf16.mxu0 0
        %3677 = vmatpush1.bf16.msra.mxu0 0
        %3678 = vmatprep.subr.bf16.mxu0 0
        %3679 = vmatpush1.bf16.msra.mxu0 0
        %3680 = vmatprep.subr.bf16.mxu0 0
        %3681 = vmatpush1.bf16.msra.mxu0 0
        %3682 = vmatprep.subr.bf16.mxu0 0
        %3683 = vmatpush1.bf16.msra.mxu0 0
        %3684 = vmatprep.subr.bf16.mxu0 0
        %3685 = vmatpush1.bf16.msra.mxu0 0
        %3686 = vmatprep.subr.bf16.mxu0 0
        %3687 = vmatpush1.bf16.msra.mxu0 0
        %3688 = vmatprep.subr.bf16.mxu0 0
        %3689 = vmatpush1.bf16.msra.mxu0 0
        %3690 = vmatprep.mubr.bf16.mxu0 0
        %3691 = vmatmul.mubr.bf16.gmra.mrb[0].mxu0 %v3561
        %v3692 = vpop.f32.mrb[0].mxu0
        %v3693 = vadd.f32 0.0, %v3692
        %v3694 = vpop.f32.mrb[0].mxu0
        %v3695 = vadd.f32 0.0, %v3694
        %v3696 = vpop.f32.mrb[0].mxu0
        %v3697 = vpop.f32.mrb[0].mxu0
        %3698 = vdwg.mxu0
        %v3699 = vadd.f32 %v3555, %v3693
        %v3700 = vadd.f32 %v3556, %v3695
        %v3701 = vrot.slane %v1967, 6
        %v3703 = vrot.slane %v1970, 7
        %v3705 = vsel %vm1976, %v3701, %v3703
        %v3706 = vld [vmem:[%s313 + $0x600] sm:$0xff]
        %v3707 = vld [vmem:[%s313 + $0x608] sm:$0xff]
        %v3708 = vld [vmem:[%s313 + $0x610] sm:$0xff]
        %v3709 = vld [vmem:[%s313 + $0x618] sm:$0xff]
        %v3710 = vld [vmem:[%s313 + $0x620] sm:$0xff]
        %v3711 = vld [vmem:[%s313 + $0x628] sm:$0xff]
        %v3712 = vld [vmem:[%s313 + $0x630] sm:$0xff]
        %v3713 = vld [vmem:[%s313 + $0x638] sm:$0xff]
        %v3714 = vld [vmem:[%s313 + $0x640] sm:$0xff]
        %v3715 = vld [vmem:[%s313 + $0x648] sm:$0xff]
        %v3716 = vld [vmem:[%s313 + $0x650] sm:$0xff]
        %v3717 = vld [vmem:[%s313 + $0x658] sm:$0xff]
        %v3718 = vld [vmem:[%s313 + $0x660] sm:$0xff]
        %v3719 = vld [vmem:[%s313 + $0x668] sm:$0xff]
        %v3720 = vld [vmem:[%s313 + $0x670] sm:$0xff]
        %v3721 = vld [vmem:[%s313 + $0x678] sm:$0xff]
        %v3738 = vunpack.c.l.b16 %v3706
        %v3739 = vunpack.c.h.b16 %v3706
        %v3740 = vunpack.c.l.b16 %v3707
        %v3741 = vunpack.c.h.b16 %v3707
        %v3742 = vunpack.c.l.b16 %v3708
        %v3743 = vunpack.c.h.b16 %v3708
        %v3744 = vunpack.c.l.b16 %v3709
        %v3745 = vunpack.c.h.b16 %v3709
        %v3746 = vunpack.c.l.b16 %v3710
        %v3747 = vunpack.c.h.b16 %v3710
        %v3748 = vunpack.c.l.b16 %v3711
        %v3749 = vunpack.c.h.b16 %v3711
        %v3750 = vunpack.c.l.b16 %v3712
        %v3751 = vunpack.c.h.b16 %v3712
        %v3752 = vunpack.c.l.b16 %v3713
        %v3753 = vunpack.c.h.b16 %v3713
        %v3754 = vunpack.c.l.b16 %v3714
        %v3755 = vunpack.c.h.b16 %v3714
        %v3756 = vunpack.c.l.b16 %v3715
        %v3757 = vunpack.c.h.b16 %v3715
        %v3758 = vunpack.c.l.b16 %v3716
        %v3759 = vunpack.c.h.b16 %v3716
        %v3760 = vunpack.c.l.b16 %v3717
        %v3761 = vunpack.c.h.b16 %v3717
        %v3762 = vunpack.c.l.b16 %v3718
        %v3763 = vunpack.c.h.b16 %v3718
        %v3764 = vunpack.c.l.b16 %v3719
        %v3765 = vunpack.c.h.b16 %v3719
        %v3766 = vunpack.c.l.b16 %v3720
        %v3767 = vunpack.c.h.b16 %v3720
        %v3768 = vunpack.c.l.b16 %v3721
        %v3769 = vunpack.c.h.b16 %v3721
        %v3770 = vpack.c.b16 %v3740, %v3738
        %v3771 = vpack.c.b16 %v3741, %v3739
        %v3772 = vpack.c.b16 %v3744, %v3742
        %v3773 = vpack.c.b16 %v3745, %v3743
        %v3774 = vpack.c.b16 %v3748, %v3746
        %v3775 = vpack.c.b16 %v3749, %v3747
        %v3776 = vpack.c.b16 %v3752, %v3750
        %v3777 = vpack.c.b16 %v3753, %v3751
        %v3778 = vpack.c.b16 %v3756, %v3754
        %v3779 = vpack.c.b16 %v3757, %v3755
        %v3780 = vpack.c.b16 %v3760, %v3758
        %v3781 = vpack.c.b16 %v3761, %v3759
        %v3782 = vpack.c.b16 %v3764, %v3762
        %v3783 = vpack.c.b16 %v3765, %v3763
        %v3784 = vpack.c.b16 %v3768, %v3766
        %v3785 = vpack.c.b16 %v3769, %v3767
        %3802 = vmatprep.subr.bf16.mxu0 %v3771
        %3803 = vmatpush1.bf16.msra.mxu0 %v3770
        %3804 = vmatprep.subr.bf16.mxu0 %v3773
        %3805 = vmatpush1.bf16.msra.mxu0 %v3772
        %3806 = vmatprep.subr.bf16.mxu0 %v3775
        %3807 = vmatpush1.bf16.msra.mxu0 %v3774
        %3808 = vmatprep.subr.bf16.mxu0 %v3777
        %3809 = vmatpush1.bf16.msra.mxu0 %v3776
        %3810 = vmatprep.subr.bf16.mxu0 %v3779
        %3811 = vmatpush1.bf16.msra.mxu0 %v3778
        %3812 = vmatprep.subr.bf16.mxu0 %v3781
        %3813 = vmatpush1.bf16.msra.mxu0 %v3780
        %3814 = vmatprep.subr.bf16.mxu0 %v3783
        %3815 = vmatpush1.bf16.msra.mxu0 %v3782
        %3816 = vmatprep.subr.bf16.mxu0 %v3785
        %3817 = vmatpush1.bf16.msra.mxu0 %v3784
        %3818 = vmatprep.subr.bf16.mxu0 0
        %3819 = vmatpush1.bf16.msra.mxu0 0
        %3820 = vmatprep.subr.bf16.mxu0 0
        %3821 = vmatpush1.bf16.msra.mxu0 0
        %3822 = vmatprep.subr.bf16.mxu0 0
        %3823 = vmatpush1.bf16.msra.mxu0 0
        %3824 = vmatprep.subr.bf16.mxu0 0
        %3825 = vmatpush1.bf16.msra.mxu0 0
        %3826 = vmatprep.subr.bf16.mxu0 0
        %3827 = vmatpush1.bf16.msra.mxu0 0
        %3828 = vmatprep.subr.bf16.mxu0 0
        %3829 = vmatpush1.bf16.msra.mxu0 0
        %3830 = vmatprep.subr.bf16.mxu0 0
        %3831 = vmatpush1.bf16.msra.mxu0 0
        %3832 = vmatprep.subr.bf16.mxu0 0
        %3833 = vmatpush1.bf16.msra.mxu0 0
        %3834 = vmatprep.mubr.bf16.mxu0 0
        %3835 = vmatmul.mubr.bf16.gmra.mrb[0].mxu0 %v3705
        %v3836 = vpop.f32.mrb[0].mxu0
        %v3837 = vadd.f32 0.0, %v3836
        %v3838 = vpop.f32.mrb[0].mxu0
        %v3839 = vadd.f32 0.0, %v3838
        %v3840 = vpop.f32.mrb[0].mxu0
        %v3841 = vpop.f32.mrb[0].mxu0
        %3842 = vdwg.mxu0
        %v3843 = vadd.f32 %v3699, %v3837
        %v3844 = vadd.f32 %v3700, %v3839
        %v3845 = vrot.slane %v1995, 6
        %v3847 = vrot.slane %v1968, 7
        %v3849 = vsel %vm1976, %v3845, %v3847
        %v3850 = vld [vmem:[%s313 + $0x680] sm:$0xff]
        %v3851 = vld [vmem:[%s313 + $0x688] sm:$0xff]
        %v3852 = vld [vmem:[%s313 + $0x690] sm:$0xff]
        %v3853 = vld [vmem:[%s313 + $0x698] sm:$0xff]
        %v3854 = vld [vmem:[%s313 + $0x6a0] sm:$0xff]
        %v3855 = vld [vmem:[%s313 + $0x6a8] sm:$0xff]
        %v3856 = vld [vmem:[%s313 + $0x6b0] sm:$0xff]
        %v3857 = vld [vmem:[%s313 + $0x6b8] sm:$0xff]
        %v3858 = vld [vmem:[%s313 + $0x6c0] sm:$0xff]
        %v3859 = vld [vmem:[%s313 + $0x6c8] sm:$0xff]
        %v3860 = vld [vmem:[%s313 + $0x6d0] sm:$0xff]
        %v3861 = vld [vmem:[%s313 + $0x6d8] sm:$0xff]
        %v3862 = vld [vmem:[%s313 + $0x6e0] sm:$0xff]
        %v3863 = vld [vmem:[%s313 + $0x6e8] sm:$0xff]
        %v3864 = vld [vmem:[%s313 + $0x6f0] sm:$0xff]
        %v3865 = vld [vmem:[%s313 + $0x6f8] sm:$0xff]
        %v3882 = vunpack.c.l.b16 %v3850
        %v3883 = vunpack.c.h.b16 %v3850
        %v3884 = vunpack.c.l.b16 %v3851
        %v3885 = vunpack.c.h.b16 %v3851
        %v3886 = vunpack.c.l.b16 %v3852
        %v3887 = vunpack.c.h.b16 %v3852
        %v3888 = vunpack.c.l.b16 %v3853
        %v3889 = vunpack.c.h.b16 %v3853
        %v3890 = vunpack.c.l.b16 %v3854
        %v3891 = vunpack.c.h.b16 %v3854
        %v3892 = vunpack.c.l.b16 %v3855
        %v3893 = vunpack.c.h.b16 %v3855
        %v3894 = vunpack.c.l.b16 %v3856
        %v3895 = vunpack.c.h.b16 %v3856
        %v3896 = vunpack.c.l.b16 %v3857
        %v3897 = vunpack.c.h.b16 %v3857
        %v3898 = vunpack.c.l.b16 %v3858
        %v3899 = vunpack.c.h.b16 %v3858
        %v3900 = vunpack.c.l.b16 %v3859
        %v3901 = vunpack.c.h.b16 %v3859
        %v3902 = vunpack.c.l.b16 %v3860
        %v3903 = vunpack.c.h.b16 %v3860
        %v3904 = vunpack.c.l.b16 %v3861
        %v3905 = vunpack.c.h.b16 %v3861
        %v3906 = vunpack.c.l.b16 %v3862
        %v3907 = vunpack.c.h.b16 %v3862
        %v3908 = vunpack.c.l.b16 %v3863
        %v3909 = vunpack.c.h.b16 %v3863
        %v3910 = vunpack.c.l.b16 %v3864
        %v3911 = vunpack.c.h.b16 %v3864
        %v3912 = vunpack.c.l.b16 %v3865
        %v3913 = vunpack.c.h.b16 %v3865
        %v3914 = vpack.c.b16 %v3884, %v3882
        %v3915 = vpack.c.b16 %v3885, %v3883
        %v3916 = vpack.c.b16 %v3888, %v3886
        %v3917 = vpack.c.b16 %v3889, %v3887
        %v3918 = vpack.c.b16 %v3892, %v3890
        %v3919 = vpack.c.b16 %v3893, %v3891
        %v3920 = vpack.c.b16 %v3896, %v3894
        %v3921 = vpack.c.b16 %v3897, %v3895
        %v3922 = vpack.c.b16 %v3900, %v3898
        %v3923 = vpack.c.b16 %v3901, %v3899
        %v3924 = vpack.c.b16 %v3904, %v3902
        %v3925 = vpack.c.b16 %v3905, %v3903
        %v3926 = vpack.c.b16 %v3908, %v3906
        %v3927 = vpack.c.b16 %v3909, %v3907
        %v3928 = vpack.c.b16 %v3912, %v3910
        %v3929 = vpack.c.b16 %v3913, %v3911
        %3946 = vmatprep.subr.bf16.mxu0 %v3915
        %3947 = vmatpush1.bf16.msra.mxu0 %v3914
        %3948 = vmatprep.subr.bf16.mxu0 %v3917
        %3949 = vmatpush1.bf16.msra.mxu0 %v3916
        %3950 = vmatprep.subr.bf16.mxu0 %v3919
        %3951 = vmatpush1.bf16.msra.mxu0 %v3918
        %3952 = vmatprep.subr.bf16.mxu0 %v3921
        %3953 = vmatpush1.bf16.msra.mxu0 %v3920
        %3954 = vmatprep.subr.bf16.mxu0 %v3923
        %3955 = vmatpush1.bf16.msra.mxu0 %v3922
        %3956 = vmatprep.subr.bf16.mxu0 %v3925
        %3957 = vmatpush1.bf16.msra.mxu0 %v3924
        %3958 = vmatprep.subr.bf16.mxu0 %v3927
        %3959 = vmatpush1.bf16.msra.mxu0 %v3926
        %3960 = vmatprep.subr.bf16.mxu0 %v3929
        %3961 = vmatpush1.bf16.msra.mxu0 %v3928
        %3962 = vmatprep.subr.bf16.mxu0 0
        %3963 = vmatpush1.bf16.msra.mxu0 0
        %3964 = vmatprep.subr.bf16.mxu0 0
        %3965 = vmatpush1.bf16.msra.mxu0 0
        %3966 = vmatprep.subr.bf16.mxu0 0
        %3967 = vmatpush1.bf16.msra.mxu0 0
        %3968 = vmatprep.subr.bf16.mxu0 0
        %3969 = vmatpush1.bf16.msra.mxu0 0
        %3970 = vmatprep.subr.bf16.mxu0 0
        %3971 = vmatpush1.bf16.msra.mxu0 0
        %3972 = vmatprep.subr.bf16.mxu0 0
        %3973 = vmatpush1.bf16.msra.mxu0 0
        %3974 = vmatprep.subr.bf16.mxu0 0
        %3975 = vmatpush1.bf16.msra.mxu0 0
        %3976 = vmatprep.subr.bf16.mxu0 0
        %3977 = vmatpush1.bf16.msra.mxu0 0
        %3978 = vmatprep.mubr.bf16.mxu0 0
        %3979 = vmatmul.mubr.bf16.gmra.mrb[0].mxu0 %v3849
        %v3980 = vpop.f32.mrb[0].mxu0
        %v3981 = vadd.f32 0.0, %v3980
        %v3982 = vpop.f32.mrb[0].mxu0
        %v3983 = vadd.f32 0.0, %v3982
        %v3984 = vpop.f32.mrb[0].mxu0
        %v3985 = vpop.f32.mrb[0].mxu0
        %3986 = vdwg.mxu0
        %v3987 = vadd.f32 %v3843, %v3981
        %v3988 = vadd.f32 %v3844, %v3983
        %v3990 = vlaneseq
        %v3991 = vshrl.u32 %v3990, 7
        %v3992 = vsub.s32 0, %v3991
        %v3993 = vrot.slane %v403, %v3992
        %v3994 = vlaneseq
        %v3995 = vshrl.u32 %v3994, 7
        %v3996 = vsub.s32 1, %v3995
        %v3997 = vrot.slane %v403, %v3996
        %v4000 = vadd.f32 %v3987, %v3993
        %v4001 = vadd.f32 %v3988, %v3997
        %v4002 = vmax.f32 %v4000, 0.0
        %v4003 = vmax.f32 %v4001, 0.0
        %v4004 = vpack.c.bf16 %v4002, %v4002
        %v4005 = vpack.c.bf16 %v4003, %v4003
        %v4006 = vld [vmem:[%s387] sm:$0xf]
        %v4007 = vld [vmem:[%s387 + $0x4] sm:$0xf]
        %v4008 = vld [vmem:[%s387 + $0x8] sm:$0xf]
        %v4009 = vld [vmem:[%s387 + $0xc] sm:$0xf]
        %v4010 = vld [vmem:[%s387 + $0x10] sm:$0xf]
        %v4011 = vld [vmem:[%s387 + $0x14] sm:$0xf]
        %v4012 = vld [vmem:[%s387 + $0x18] sm:$0xf]
        %v4013 = vld [vmem:[%s387 + $0x1c] sm:$0xf]
        %v4014 = vld [vmem:[%s387 + $0x20] sm:$0xf]
        %v4015 = vld [vmem:[%s387 + $0x24] sm:$0xf]
        %v4016 = vld [vmem:[%s387 + $0x28] sm:$0xf]
        %v4017 = vld [vmem:[%s387 + $0x2c] sm:$0xf]
        %v4018 = vld [vmem:[%s387 + $0x30] sm:$0xf]
        %v4019 = vld [vmem:[%s387 + $0x34] sm:$0xf]
        %v4020 = vld [vmem:[%s387 + $0x38] sm:$0xf]
        %v4021 = vld [vmem:[%s387 + $0x3c] sm:$0xf]
        %v4022 = vld [vmem:[%s387 + $0x40] sm:$0xf]
        %v4023 = vld [vmem:[%s387 + $0x44] sm:$0xf]
        %v4024 = vld [vmem:[%s387 + $0x48] sm:$0xf]
        %v4025 = vld [vmem:[%s387 + $0x4c] sm:$0xf]
        %v4026 = vld [vmem:[%s387 + $0x50] sm:$0xf]
        %v4027 = vld [vmem:[%s387 + $0x54] sm:$0xf]
        %v4028 = vld [vmem:[%s387 + $0x58] sm:$0xf]
        %v4029 = vld [vmem:[%s387 + $0x5c] sm:$0xf]
        %v4030 = vld [vmem:[%s387 + $0x60] sm:$0xf]
        %v4031 = vld [vmem:[%s387 + $0x64] sm:$0xf]
        %v4032 = vld [vmem:[%s387 + $0x68] sm:$0xf]
        %v4033 = vld [vmem:[%s387 + $0x6c] sm:$0xf]
        %v4034 = vld [vmem:[%s387 + $0x70] sm:$0xf]
        %v4035 = vld [vmem:[%s387 + $0x74] sm:$0xf]
        %v4036 = vld [vmem:[%s387 + $0x78] sm:$0xf]
        %v4037 = vld [vmem:[%s387 + $0x7c] sm:$0xf]
        %v4070 = vunpack.c.l.b16 %v4006
        %v4071 = vunpack.c.l.b16 %v4007
        %v4072 = vunpack.c.l.b16 %v4008
        %v4073 = vunpack.c.l.b16 %v4009
        %v4074 = vunpack.c.l.b16 %v4010
        %v4075 = vunpack.c.l.b16 %v4011
        %v4076 = vunpack.c.l.b16 %v4012
        %v4077 = vunpack.c.l.b16 %v4013
        %v4078 = vunpack.c.l.b16 %v4014
        %v4079 = vunpack.c.l.b16 %v4015
        %v4080 = vunpack.c.l.b16 %v4016
        %v4081 = vunpack.c.l.b16 %v4017
        %v4082 = vunpack.c.l.b16 %v4018
        %v4083 = vunpack.c.l.b16 %v4019
        %v4084 = vunpack.c.l.b16 %v4020
        %v4085 = vunpack.c.l.b16 %v4021
        %v4086 = vunpack.c.l.b16 %v4022
        %v4087 = vunpack.c.l.b16 %v4023
        %v4088 = vunpack.c.l.b16 %v4024
        %v4089 = vunpack.c.l.b16 %v4025
        %v4090 = vunpack.c.l.b16 %v4026
        %v4091 = vunpack.c.l.b16 %v4027
        %v4092 = vunpack.c.l.b16 %v4028
        %v4093 = vunpack.c.l.b16 %v4029
        %v4094 = vunpack.c.l.b16 %v4030
        %v4095 = vunpack.c.l.b16 %v4031
        %v4096 = vunpack.c.l.b16 %v4032
        %v4097 = vunpack.c.l.b16 %v4033
        %v4098 = vunpack.c.l.b16 %v4034
        %v4099 = vunpack.c.l.b16 %v4035
        %v4100 = vunpack.c.l.b16 %v4036
        %v4101 = vunpack.c.l.b16 %v4037
        %v4102 = vpack.c.b16 %v4071, %v4070
        %v4103 = vpack.c.b16 %v4073, %v4072
        %v4104 = vpack.c.b16 %v4075, %v4074
        %v4105 = vpack.c.b16 %v4077, %v4076
        %v4106 = vpack.c.b16 %v4079, %v4078
        %v4107 = vpack.c.b16 %v4081, %v4080
        %v4108 = vpack.c.b16 %v4083, %v4082
        %v4109 = vpack.c.b16 %v4085, %v4084
        %v4110 = vpack.c.b16 %v4087, %v4086
        %v4111 = vpack.c.b16 %v4089, %v4088
        %v4112 = vpack.c.b16 %v4091, %v4090
        %v4113 = vpack.c.b16 %v4093, %v4092
        %v4114 = vpack.c.b16 %v4095, %v4094
        %v4115 = vpack.c.b16 %v4097, %v4096
        %v4116 = vpack.c.b16 %v4099, %v4098
        %v4117 = vpack.c.b16 %v4101, %v4100
        %4134 = vmatprep.subr.bf16.mxu0 0
        %4135 = vmatpush1.bf16.msra.mxu0 %v4102
        %4136 = vmatprep.subr.bf16.mxu0 0
        %4137 = vmatpush1.bf16.msra.mxu0 %v4103
        %4138 = vmatprep.subr.bf16.mxu0 0
        %4139 = vmatpush1.bf16.msra.mxu0 %v4104
        %4140 = vmatprep.subr.bf16.mxu0 0
        %4141 = vmatpush1.bf16.msra.mxu0 %v4105
        %4142 = vmatprep.subr.bf16.mxu0 0
        %4143 = vmatpush1.bf16.msra.mxu0 %v4106
        %4144 = vmatprep.subr.bf16.mxu0 0
        %4145 = vmatpush1.bf16.msra.mxu0 %v4107
        %4146 = vmatprep.subr.bf16.mxu0 0
        %4147 = vmatpush1.bf16.msra.mxu0 %v4108
        %4148 = vmatprep.subr.bf16.mxu0 0
        %4149 = vmatpush1.bf16.msra.mxu0 %v4109
        %4150 = vmatprep.subr.bf16.mxu0 0
        %4151 = vmatpush1.bf16.msra.mxu0 %v4110
        %4152 = vmatprep.subr.bf16.mxu0 0
        %4153 = vmatpush1.bf16.msra.mxu0 %v4111
        %4154 = vmatprep.subr.bf16.mxu0 0
        %4155 = vmatpush1.bf16.msra.mxu0 %v4112
        %4156 = vmatprep.subr.bf16.mxu0 0
        %4157 = vmatpush1.bf16.msra.mxu0 %v4113
        %4158 = vmatprep.subr.bf16.mxu0 0
        %4159 = vmatpush1.bf16.msra.mxu0 %v4114
        %4160 = vmatprep.subr.bf16.mxu0 0
        %4161 = vmatpush1.bf16.msra.mxu0 %v4115
        %4162 = vmatprep.subr.bf16.mxu0 0
        %4163 = vmatpush1.bf16.msra.mxu0 %v4116
        %4164 = vmatprep.subr.bf16.mxu0 0
        %4165 = vmatpush1.bf16.msra.mxu0 %v4117
        %4166 = vmatprep.mubr.bf16.mxu0 %v4005
        %4167 = vmatmul.mubr.bf16.gmra.mrb[0].mxu0 %v4004
        %v4168 = vpop.f32.mrb[0].mxu0
        %v4169 = vadd.f32 %v404, %v4168
        %v4170 = vpop.f32.mrb[0].mxu0
        %v4171 = vpop.f32.mrb[0].mxu0
        %v4172 = vpop.f32.mrb[0].mxu0
        %4173 = vdwg.mxu0
        %vm4174 = vcmask 58368
        %4175 = vst.msk [vmem:[%s396] sm:$0x3] %vm4174, %v4169
        %p4176 = scmp.lt.s32.totalorder %s21, 4
        %s4177 = scalar_select %p4176, %s21, 4
        %s4178 = smul.addr %s4177, 2
        %s4179 = scalar_lea.vmem %s7, %s4178
        // Predicated region
        $region53: #{ensemble_forward.1} parent=47 // pred_check
          %p4180 = pneg %p216
        $region54: #{ensemble_forward.1} parent=47 // pred_check_branch
          %4182 = sbr.rel (%p4180) target = $region56
        $region55: #{ensemble_forward.1} parent=47 // pred_region
          _
        $region56: #{ensemble_forward.1} parent=47 // pred_fallthru
          _
      $region48: #{ensemble_forward.1} parent=5 // pred_fallthru
        _
      %p4183 = scmp.le.s32.totalorder 2, %s16
      // Predicated region
      $region57: #{ensemble_forward.1} parent=5 // pred_check
        %p4184 = pneg %p4183
      $region58: #{ensemble_forward.1} parent=5 // pred_check_branch
        %4186 = sbr.rel (%p4184) target = $region60
      $region59: #{ensemble_forward.1} parent=5 // pred_region
        %s4187 = ssub.s32 %s16, 2
        // Predicated region
        $region61: #{ensemble_forward.1} parent=59 // pred_check
          %p4188 = pneg %p222
        $region62: #{ensemble_forward.1} parent=59 // pred_check_branch
          %4190 = sbr.rel (%p4188) target = $region64
        $region63: #{ensemble_forward.1} parent=59 // pred_region
          %p4191 = scmp.lt.s32.totalorder %s22, 4
          %s4192 = scalar_select %p4191, %s22, 4
          %s4193 = smul.addr %s4192, 2
          %s4194 = scalar_lea.vmem %s7, %s4193
        $region64: #{ensemble_forward.1} parent=59 // pred_fallthru
          _
      $region60: #{ensemble_forward.1} parent=5 // pred_fallthru
        _
    $region6: #{ensemble_forward.1} parent=1 // loop_footer
      %s20 = sadd.s32 1, %s16
    $region7: #{ensemble_forward.1} parent=1 // loop_footer_branch
      %15 = sbr.rel target = $region3
    $region8: #{ensemble_forward.1} parent=1 // loop_exit
      _
    %4195 = vsyncpa [#allocation3], 1
    %s4196 = scalar_lea.sflag [#allocation3], 1
    %4197 = vsyncpa %s4196, 1

</llo_original>
